<compile_context>
chip_gen: v5e
topology: v5e:2x2
jax: 0.10.0
libtpu: 0.0.40
codegen_flags: <defaults>
</compile_context>

<pallas_src>
import math
from functools import partial

import jax
import jax.numpy as jnp
from jax.experimental import pallas as pl
from jax.experimental.pallas import tpu as pltpu

_INV_SQRT2 = 1.0 / math.sqrt(2.0)


def _gelu_erf(h):
    # Exact erf-based GELU in f32 -- matches PyTorch nn.GELU() default.
    # (tanh-approx GELU would ride the EUP slot if VALU ever binds, but deviates
    #  slightly from the PyTorch reference, so we keep erf.)
    return 0.5 * h * (1.0 + jax.lax.erf(h * _INV_SQRT2))


def _ffn_kernel_single(x_ref, w1_ref, b1_ref, w2_ref, b2_ref, o_ref):
    """Whole hidden dim resident in VMEM; grid = (M tiles,)."""
    h = jnp.dot(x_ref[...], w1_ref[...], preferred_element_type=jnp.float32)
    h = _gelu_erf(h + b1_ref[...].astype(jnp.float32))
    acc = jnp.dot(h.astype(w2_ref.dtype), w2_ref[...],
                  preferred_element_type=jnp.float32)
    o_ref[...] = (acc + b2_ref[...].astype(jnp.float32)).astype(o_ref.dtype)


def _ffn_kernel_stream(x_ref, w1_ref, b1_ref, w2_ref, b2_ref, o_ref, acc_ref):
    """Hidden dim streamed; grid = (M tiles [parallel], hidden tiles [reduction])."""
    k = pl.program_id(1)

    @pl.when(k == 0)
    def _init():
        acc_ref[...] = jnp.zeros_like(acc_ref)

    # Linear 1 on this hidden slice: (TM, d_in) @ (d_in, TH), f32 accumulation.
    h = jnp.dot(x_ref[...], w1_ref[...], preferred_element_type=jnp.float32)
    h = _gelu_erf(h + b1_ref[...].astype(jnp.float32))

    # Partial second matmul, accumulated in the f32 scratch.
    acc_ref[...] += jnp.dot(h.astype(w2_ref.dtype), w2_ref[...],
                            preferred_element_type=jnp.float32)

    @pl.when(k == pl.num_programs(1) - 1)
    def _finalize():
        o_ref[...] = (acc_ref[...]
                      + b2_ref[...].astype(jnp.float32)).astype(o_ref.dtype)


def _round_up(x, n):
    return ((x + n - 1) // n) * n


def _chip_budget():
    """Returns (usable VMEM bytes, default M-tile target). Safe fallbacks."""
    vmem_cap = 64 * 1024 * 1024          # conservative (v7x per-TC size)
    tm_target = 512
    try:
        info = pltpu.get_tpu_info()
        cap = getattr(info, "vmem_capacity_bytes", None)
        if cap:
            vmem_cap = int(cap)
    except Exception:
        pass
    try:
        kind = jax.devices()[0].device_kind.lower()
        if "v6" in kind:
            tm_target = 1024             # highest MXU:HBM ratio -> most reuse
    except Exception:
        pass
    # ~20% headroom for Mosaic internal scratch / pipelining slack.
    return int(0.8 * vmem_cap), tm_target


def _pick_th(hidden, target):
    """Largest multiple of 128 that divides `hidden` and is <= target;
    otherwise `hidden` itself (full block -> no weight padding, ever)."""
    if hidden % 128 == 0:
        cand = max(128, (min(target, hidden) // 128) * 128)
        while cand >= 128:
            if hidden % cand == 0:
                return cand
            cand -= 128
    return hidden


def _vmem_estimate(tm, th, d_in, d_out, elt, streaming):
    # Double-buffered in/out tiles + f32 GELU intermediate (and its cast copy
    # fed to the second matmul) + the f32 accumulator (streaming path only).
    bufs = 2 * (tm * d_in + d_in * th + th + th * d_out + d_out + tm * d_out) * elt
    h_tmp = tm * th * (4 + elt)
    acc = tm * d_out * 4 if streaming else 0
    return bufs + h_tmp + acc


def _shrink_tm(t):
    t = max(8, t // 2)
    if t >= 256:
        t -= t % 256
    return _round_up(t, 8)


@partial(jax.jit, static_argnames=("tm", "th", "cast_to_bf16"))
def feed_forward(x, w1, b1, w2, b2, *, tm=None, th=None, cast_to_bf16=False):
    """x: (batch, seq, d_in) -> (batch, seq, d_out). Weights stored (in, out)."""
    batch, seq, d_in = x.shape
    hidden = w1.shape[1]
    d_out = w2.shape[1]
    m = batch * seq
    out_dtype = x.dtype

    vmem_budget, tm_target = _chip_budget()

    if cast_to_bf16:
        # Optional (v5e / bandwidth): bf16 MXU operands, f32 accumulation kept.
        x, w1, w2 = (a.astype(jnp.bfloat16) for a in (x, w1, w2))
    elt = x.dtype.itemsize

    # ---- M tile: multiple of 8 (256-aligned when large), no weight padding cost.
    m_ru8 = _round_up(m, 8)
    tm = tm_target if tm is None else tm
    tm = min(tm, m_ru8)
    if tm >= 256:
        tm -= tm % 256
    else:
        tm = _round_up(tm, 8)
    m_pad = _round_up(m, tm)
    # Megacore (v7x): prefer >= 2 M tiles so the "parallel" axis can split TCs.
    if m_pad // tm < 2 and tm >= 512:
        tm //= 2
        m_pad = _round_up(m, tm)

    # ---- hidden tile: multiple of 128 dividing `hidden` (else full hidden).
    th = _pick_th(hidden, 512 if th is None else th)

    # ---- fit in VMEM: shrink th first (cancels out of flops/byte), then tm.
    while _vmem_estimate(tm, th, d_in, d_out, elt, th < hidden) > vmem_budget:
        if hidden % 128 == 0 and th > 128:
            th = _pick_th(hidden, th // 2)
        elif tm > 8:
            tm = _shrink_tm(tm)
            m_pad = _round_up(m, tm)
        else:
            break

    x2d = x.reshape(m, d_in)
    if m_pad != m:
        x2d = jnp.pad(x2d, ((0, m_pad - m), (0, 0)))
    b1_2d = b1.reshape(1, hidden)
    b2_2d = b2.reshape(1, d_out)

    n_m_tiles = m_pad // tm
    streaming = th < hidden
    weight_reads = n_m_tiles if streaming else 1   # resident vs re-streamed
    cost = pl.CostEstimate(
        flops=2 * m_pad * hidden * (d_in + d_out),
        transcendentals=m_pad * hidden,
        bytes_accessed=(m_pad * d_in + m_pad * d_out + d_out
                        + weight_reads * (d_in * hidden + hidden + hidden * d_out)
                        ) * elt,
    )
    compiler_params = pltpu.CompilerParams(
        dimension_semantics=("parallel",) if not streaming
        else ("parallel", "arbitrary"),
        vmem_limit_bytes=vmem_budget,
    )

    if not streaming:
        out2d = pl.pallas_call(
            _ffn_kernel_single,
            out_shape=jax.ShapeDtypeStruct((m_pad, d_out), out_dtype),
            grid_spec=pltpu.PrefetchScalarGridSpec(
                num_scalar_prefetch=0,
                grid=(n_m_tiles,),
                in_specs=[
                    pl.BlockSpec((tm, d_in), lambda i: (i, 0)),        # x rows
                    pl.BlockSpec((d_in, hidden), lambda i: (0, 0)),    # w1 resident
                    pl.BlockSpec((1, hidden), lambda i: (0, 0)),       # b1 resident
                    pl.BlockSpec((hidden, d_out), lambda i: (0, 0)),   # w2 resident
                    pl.BlockSpec((1, d_out), lambda i: (0, 0)),        # b2 resident
                ],
                out_specs=pl.BlockSpec((tm, d_out), lambda i: (i, 0)),
            ),
            compiler_params=compiler_params,
            cost_estimate=cost,
        )(x2d, w1, b1_2d, w2, b2_2d)
    else:
        out2d = pl.pallas_call(
            _ffn_kernel_stream,
            out_shape=jax.ShapeDtypeStruct((m_pad, d_out), out_dtype),
            grid_spec=pltpu.PrefetchScalarGridSpec(
                num_scalar_prefetch=0,
                grid=(n_m_tiles, hidden // th),
                in_specs=[
                    pl.BlockSpec((tm, d_in), lambda i, k: (i, 0)),     # x rows
                    pl.BlockSpec((d_in, th), lambda i, k: (0, k)),     # w1 hidden slice
                    pl.BlockSpec((1, th), lambda i, k: (0, k)),        # b1 hidden slice
                    pl.BlockSpec((th, d_out), lambda i, k: (k, 0)),    # w2 hidden slice
                    pl.BlockSpec((1, d_out), lambda i, k: (0, 0)),     # b2 resident
                ],
                out_specs=pl.BlockSpec((tm, d_out), lambda i, k: (i, 0)),
                scratch_shapes=[pltpu.VMEM((tm, d_out), jnp.float32)],
            ),
            compiler_params=compiler_params,
            cost_estimate=cost,
        )(x2d, w1, b1_2d, w2, b2_2d)

    return out2d[:m].reshape(batch, seq, d_out)


def _init_params(key, input_size, hidden_dim, output_size, dtype=jnp.float32):
    """Deterministic init mimicking nn.Linear's uniform(-1/sqrt(fan_in), ...)."""
    k1, k2, k3, k4 = jax.random.split(key, 4)
    lim1 = 1.0 / math.sqrt(input_size)
    lim2 = 1.0 / math.sqrt(hidden_dim)
    # stored as (in_features, out_features)
    w1 = jax.random.uniform(k1, (input_size, hidden_dim), dtype, -lim1, lim1)
    b1 = jax.random.uniform(k2, (hidden_dim,), dtype, -lim1, lim1)
    w2 = jax.random.uniform(k3, (hidden_dim, output_size), dtype, -lim2, lim2)
    b2 = jax.random.uniform(k4, (output_size,), dtype, -lim2, lim2)
    return w1, b1, w2, b2


if __name__ == "__main__":
    input_size = 128      # lane-dense (multiple of 128) last dims
    hidden_dim = 256
    output_size = 128
    batch, seq = 2, 128   # M = 256 rows

    key = jax.random.PRNGKey(0)
    kx, kp = jax.random.split(key)
    x = jax.random.normal(kx, (batch, seq, input_size), jnp.float32)
    w1, b1, w2, b2 = _init_params(kp, input_size, hidden_dim, output_size)

    # Small problem -> the wrapper collapses to the single-pass (resident-weight)
    # kernel automatically; tile selection is chip-aware at larger sizes.
    out = feed_forward(x, w1, b1, w2, b2)
    jax.block_until_ready(out)

    # Also exercise the streaming (hidden-reduction) path on the same data.
    out_stream = feed_forward(x, w1, b1, w2, b2, tm=128, th=128)
    jax.block_until_ready(out_stream)

    # Sanity check against a plain-JAX reference (exact erf GELU, f32).
    hp = jax.lax.Precision.HIGHEST
    h_ref = jnp.dot(x.reshape(-1, input_size), w1, precision=hp,
                    preferred_element_type=jnp.float32) + b1
    h_ref = 0.5 * h_ref * (1.0 + jax.lax.erf(h_ref * _INV_SQRT2))
    y_ref = (jnp.dot(h_ref, w2, precision=hp,
                     preferred_element_type=jnp.float32) + b2)
    y_ref = y_ref.reshape(batch, seq, output_size)
    assert jnp.allclose(out, y_ref, atol=5e-3, rtol=5e-3), "mismatch (single-pass)"
    assert jnp.allclose(out_stream, y_ref, atol=5e-3, rtol=5e-3), "mismatch (streaming)"

    print("KERNEL_OK")
</pallas_src>

<mosaic_0001>
module attributes {stable_mosaic.version = 11 : i64} {
  func.func @_ffn_kernel_single(%arg0: i32, %arg1: memref<256x128xf32, #tpu.memory_space<vmem>>, %arg2: memref<128x256xf32, #tpu.memory_space<vmem>>, %arg3: memref<1x256xf32, #tpu.memory_space<vmem>>, %arg4: memref<256x128xf32, #tpu.memory_space<vmem>>, %arg5: memref<1x128xf32, #tpu.memory_space<vmem>>, %arg6: memref<256x128xf32, #tpu.memory_space<vmem>>) attributes {dimension_semantics = [#tpu.dimension_semantics<parallel>], iteration_bounds = array<i64: 1>, scalar_prefetch = 0 : i64, scratch_operands = 0 : i64, tpu.core_type = #tpu.core_type<tc>, window_params = [{transform_indices = @transform_0, window_bounds = array<i64: 256, 128>}, {pipeline_mode = #tpu.pipeline_mode<synchronous>, transform_indices = @transform_1, window_bounds = array<i64: 128, 256>}, {pipeline_mode = #tpu.pipeline_mode<synchronous>, transform_indices = @transform_2, window_bounds = array<i64: 1, 256>}, {pipeline_mode = #tpu.pipeline_mode<synchronous>, transform_indices = @transform_3, window_bounds = array<i64: 256, 128>}, {pipeline_mode = #tpu.pipeline_mode<synchronous>, transform_indices = @transform_4, window_bounds = array<i64: 1, 128>}, {transform_indices = @transform_5, window_bounds = array<i64: 256, 128>}]} {
    %c0 = arith.constant 0 : index
    %c0_0 = arith.constant 0 : index
    %0 = vector.load %arg1[%c0, %c0_0] : memref<256x128xf32, #tpu.memory_space<vmem>>, vector<256x128xf32>
    %c0_1 = arith.constant 0 : index
    %c0_2 = arith.constant 0 : index
    %1 = vector.load %arg2[%c0_1, %c0_2] : memref<128x256xf32, #tpu.memory_space<vmem>>, vector<128x256xf32>
    %cst = arith.constant dense<0.000000e+00> : vector<256x256xf32>
    %2 = tpu.matmul %0, %1, %cst {dimension_numbers = #tpu.dot_dimension_numbers<[1], [0], [0], [1], [0, 0, 1, 1], [], []>} : vector<256x128xf32>, vector<128x256xf32>, vector<256x256xf32> -> vector<256x256xf32>
    %c0_3 = arith.constant 0 : index
    %c0_4 = arith.constant 0 : index
    %3 = vector.load %arg3[%c0_3, %c0_4] : memref<1x256xf32, #tpu.memory_space<vmem>>, vector<1x256xf32>
    %4 = vector.broadcast %3 : vector<1x256xf32> to vector<256x256xf32>
    %5 = arith.addf %2, %4 : vector<256x256xf32>
    %cst_5 = arith.constant 5.000000e-01 : f32
    %6 = vector.broadcast %cst_5 : f32 to vector<256x256xf32>
    %7 = arith.mulf %6, %5 : vector<256x256xf32>
    %cst_6 = arith.constant 0.707106769 : f32
    %8 = vector.broadcast %cst_6 : f32 to vector<256x256xf32>
    %9 = arith.mulf %5, %8 : vector<256x256xf32>
    %10 = math.erf %9 : vector<256x256xf32>
    %cst_7 = arith.constant 1.000000e+00 : f32
    %11 = vector.broadcast %cst_7 : f32 to vector<256x256xf32>
    %12 = arith.addf %11, %10 : vector<256x256xf32>
    %13 = arith.mulf %7, %12 : vector<256x256xf32>
    %c0_8 = arith.constant 0 : index
    %c0_9 = arith.constant 0 : index
    %14 = vector.load %arg4[%c0_8, %c0_9] : memref<256x128xf32, #tpu.memory_space<vmem>>, vector<256x128xf32>
    %cst_10 = arith.constant dense<0.000000e+00> : vector<256x128xf32>
    %15 = tpu.matmul %13, %14, %cst_10 {dimension_numbers = #tpu.dot_dimension_numbers<[1], [0], [0], [1], [0, 0, 1, 1], [], []>} : vector<256x256xf32>, vector<256x128xf32>, vector<256x128xf32> -> vector<256x128xf32>
    %c0_11 = arith.constant 0 : index
    %c0_12 = arith.constant 0 : index
    %16 = vector.load %arg5[%c0_11, %c0_12] : memref<1x128xf32, #tpu.memory_space<vmem>>, vector<1x128xf32>
    %17 = vector.broadcast %16 : vector<1x128xf32> to vector<256x128xf32>
    %18 = arith.addf %15, %17 : vector<256x128xf32>
    %c0_13 = arith.constant 0 : index
    %c0_14 = arith.constant 0 : index
    %19 = vector.load %arg6[%c0_13, %c0_14] : memref<256x128xf32, #tpu.memory_space<vmem>>, vector<256x128xf32>
    tpu.vector_store %arg6[%c0_13, %c0_14], %18 {strides = array<i32>} : memref<256x128xf32, #tpu.memory_space<vmem>>, vector<256x128xf32>,
    return
  }
  func.func @transform_0(%arg0: i32) -> (i32, i32) {
    %c0_i32 = arith.constant 0 : i32
    %c0_i32_0 = arith.constant 0 : i32
    return %arg0, %c0_i32 : i32, i32
  }
  func.func @transform_1(%arg0: i32) -> (i32, i32) {
    %c0_i32 = arith.constant 0 : i32
    %c0_i32_0 = arith.constant 0 : i32
    %c0_i32_1 = arith.constant 0 : i32
    return %c0_i32, %c0_i32_0 : i32, i32
  }
  func.func @transform_2(%arg0: i32) -> (i32, i32) {
    %c0_i32 = arith.constant 0 : i32
    %c0_i32_0 = arith.constant 0 : i32
    %c0_i32_1 = arith.constant 0 : i32
    return %c0_i32, %c0_i32_0 : i32, i32
  }
  func.func @transform_3(%arg0: i32) -> (i32, i32) {
    %c0_i32 = arith.constant 0 : i32
    %c0_i32_0 = arith.constant 0 : i32
    %c0_i32_1 = arith.constant 0 : i32
    return %c0_i32, %c0_i32_0 : i32, i32
  }
  func.func @transform_4(%arg0: i32) -> (i32, i32) {
    %c0_i32 = arith.constant 0 : i32
    %c0_i32_0 = arith.constant 0 : i32
    %c0_i32_1 = arith.constant 0 : i32
    return %c0_i32, %c0_i32_0 : i32, i32
  }
  func.func @transform_5(%arg0: i32) -> (i32, i32) {
    %c0_i32 = arith.constant 0 : i32
    %c0_i32_0 = arith.constant 0 : i32
    return %arg0, %c0_i32 : i32, i32
  }
}

</mosaic_0001>

<llo_original>
// kernel: feed_forward.1
$region0: #{feed_forward.1}
  #allocation0 [shape = 'u32[]', space=smem, size = 0x4, offset = 0x4, fixed_abs, tag = 'smem constant byte address 0x4 - core index']
  #allocation1 [shape = 'u32[72,128]{1,0:T(1,128)}', space=vmem, size = 0x9000, scoped, tag = 'internal scratch']
  %s0 = inlined_call_operand.hbm [shape: f32[256,128], index: 0, kind: input, shape index: {}]
  %s1 = inlined_call_operand.hbm [shape: f32[128,256], index: 1, kind: input, shape index: {}]
  %s2 = inlined_call_operand.vmem [shape: f32[1,256], index: 2, kind: input, shape index: {}]
  %s3 = inlined_call_operand.hbm [shape: f32[256,128], index: 3, kind: input, shape index: {}]
  %s4 = inlined_call_operand.vmem [shape: f32[1,128], index: 4, kind: input, shape index: {}]
  %s5 = inlined_call_operand.hbm [shape: f32[256,128], index: 5, kind: output, shape index: {}]
  %s6 = sld [smem:[#allocation0]]
  $region42: #{feed_forward.1} parent=0
    _
  %s8 = ssub.s32 1, %s6
  %s9 = scalar_select 0, %s8, %s6
  $region1: #{feed_forward.1} parent=0
    #allocation2 [shape = 'u8[131072]{0}', space=vmem, size = 0x20000, scoped, tag = 'input window, operand 0, single buffered']
    #allocation3 [shape = 's32[1]{0}', space=sflag, size = 0x4, scoped, tag = 'scoped memory for feed_forward.1']
    #allocation4 [shape = 's32[1]{0}', space=sflag, size = 0x4, scoped, tag = 'scoped memory for feed_forward.1']
    #allocation5 [shape = 'u8[131072]{0}', space=vmem, size = 0x20000, scoped, tag = 'input window, operand 1, single buffered']
    #allocation6 [shape = 's32[1]{0}', space=sflag, size = 0x4, scoped, tag = 'scoped memory for feed_forward.1']
    #allocation7 [shape = 'u8[131072]{0}', space=vmem, size = 0x20000, scoped, tag = 'input window, operand 3, single buffered']
    #allocation8 [shape = 'u8[131072]{0}', space=vmem, size = 0x20000, scoped, tag = 'output window, operand 0, single buffered']
    %10 = vsyncpa [#allocation3], 0
    %11 = vsyncpa [#allocation6], 0
    %12 = vsyncpa [#allocation4], 0
    // Predicated region
    $region2: #{feed_forward.1} parent=1 // pred_check
      _
    $region3: #{feed_forward.1} parent=1 // pred_check_branch
      %14 = sbr.rel (0) target = $region5
    $region4: #{feed_forward.1} parent=1 // pred_region
      %16 = vsyncadd [#allocation3], 0
      %s17 = sshll.u32 %s0, 4
      %s18 = int_to_ptr.hbm [resolvable:$true] %s17
      %s19 = sshll.u32 [#allocation2], 4
      %s20 = int_to_ptr.vmem [resolvable:$true] %s19
      %25 = dma.hbm_to_vmem [thread:$0]  %s18, 4096, %s20, [#allocation3], 128, 128, 8
    $region5: #{feed_forward.1} parent=1 // pred_fallthru
      _
    // Predicated region
    $region6: #{feed_forward.1} parent=1 // pred_check
      _
    $region7: #{feed_forward.1} parent=1 // pred_check_branch
      %27 = sbr.rel (0) target = $region9
    $region8: #{feed_forward.1} parent=1 // pred_region
      %29 = vsyncadd [#allocation6], 0
      %s30 = sshll.u32 %s1, 4
      %s31 = int_to_ptr.hbm [resolvable:$true] %s30
      %s32 = sshll.u32 [#allocation5], 4
      %s33 = int_to_ptr.vmem [resolvable:$true] %s32
      %38 = dma.hbm_to_vmem [thread:$0]  %s31, 4096, %s33, [#allocation6], 256, 256, 16
    $region9: #{feed_forward.1} parent=1 // pred_fallthru
      _
    // Predicated region
    $region10: #{feed_forward.1} parent=1 // pred_check
      _
    $region11: #{feed_forward.1} parent=1 // pred_check_branch
      %40 = sbr.rel (0) target = $region13
    $region12: #{feed_forward.1} parent=1 // pred_region
      _
    $region13: #{feed_forward.1} parent=1 // pred_fallthru
      _
    // Predicated region
    $region14: #{feed_forward.1} parent=1 // pred_check
      _
    $region15: #{feed_forward.1} parent=1 // pred_check_branch
      %42 = sbr.rel (0) target = $region17
    $region16: #{feed_forward.1} parent=1 // pred_region
      %44 = vsyncadd [#allocation6], 0
      %s45 = sshll.u32 %s3, 4
      %s46 = int_to_ptr.hbm [resolvable:$true] %s45
      %s47 = sshll.u32 [#allocation7], 4
      %s48 = int_to_ptr.vmem [resolvable:$true] %s47
      %53 = dma.hbm_to_vmem [thread:$0]  %s46, 4096, %s48, [#allocation6], 128, 128, 8
    $region17: #{feed_forward.1} parent=1 // pred_fallthru
      _
    // Predicated region
    $region18: #{feed_forward.1} parent=1 // pred_check
      _
    $region19: #{feed_forward.1} parent=1 // pred_check_branch
      %55 = sbr.rel (0) target = $region21
    $region20: #{feed_forward.1} parent=1 // pred_region
      _
    $region21: #{feed_forward.1} parent=1 // pred_fallthru
      _
    // Predicated region
    $region22: #{feed_forward.1} parent=1 // pred_check
      _
    $region23: #{feed_forward.1} parent=1 // pred_check_branch
      %57 = sbr.rel (0) target = $region25
    $region24: #{feed_forward.1} parent=1 // pred_region
      %59 = dma.done [#allocation3], 4096
    $region25: #{feed_forward.1} parent=1 // pred_fallthru
      _
    // Predicated region
    $region26: #{feed_forward.1} parent=1 // pred_check
      _
    $region27: #{feed_forward.1} parent=1 // pred_check_branch
      %61 = sbr.rel (0) target = $region29
    $region28: #{feed_forward.1} parent=1 // pred_region
      %63 = dma.done [#allocation6], 4096
    $region29: #{feed_forward.1} parent=1 // pred_fallthru
      _
    // Predicated region
    $region30: #{feed_forward.1} parent=1 // pred_check
      _
    $region31: #{feed_forward.1} parent=1 // pred_check_branch
      %65 = sbr.rel (0) target = $region33
    $region32: #{feed_forward.1} parent=1 // pred_region
      %67 = dma.done [#allocation6], 4096
    $region33: #{feed_forward.1} parent=1 // pred_fallthru
      _
    %v68 = vld [vmem:[#allocation2] sm:$0xff]
    %v69 = vld [vmem:[#allocation2 + $0x8] sm:$0xff]
    %v70 = vld [vmem:[#allocation2 + $0x10] sm:$0xff]
    %v71 = vld [vmem:[#allocation2 + $0x18] sm:$0xff]
    %v72 = vld [vmem:[#allocation2 + $0x20] sm:$0xff]
    %v73 = vld [vmem:[#allocation2 + $0x28] sm:$0xff]
    %v74 = vld [vmem:[#allocation2 + $0x30] sm:$0xff]
    %v75 = vld [vmem:[#allocation2 + $0x38] sm:$0xff]
    %v76 = vld [vmem:[#allocation2 + $0x40] sm:$0xff]
    %v77 = vld [vmem:[#allocation2 + $0x48] sm:$0xff]
    %v78 = vld [vmem:[#allocation2 + $0x50] sm:$0xff]
    %v79 = vld [vmem:[#allocation2 + $0x58] sm:$0xff]
    %v80 = vld [vmem:[#allocation2 + $0x60] sm:$0xff]
    %v81 = vld [vmem:[#allocation2 + $0x68] sm:$0xff]
    %v82 = vld [vmem:[#allocation2 + $0x70] sm:$0xff]
    %v83 = vld [vmem:[#allocation2 + $0x78] sm:$0xff]
    %v84 = vld [vmem:[#allocation2 + $0x80] sm:$0xff]
    %v85 = vld [vmem:[#allocation2 + $0x88] sm:$0xff]
    %v86 = vld [vmem:[#allocation2 + $0x90] sm:$0xff]
    %v87 = vld [vmem:[#allocation2 + $0x98] sm:$0xff]
    %v88 = vld [vmem:[#allocation2 + $0xa0] sm:$0xff]
    %v89 = vld [vmem:[#allocation2 + $0xa8] sm:$0xff]
    %v90 = vld [vmem:[#allocation2 + $0xb0] sm:$0xff]
    %v91 = vld [vmem:[#allocation2 + $0xb8] sm:$0xff]
    %v92 = vld [vmem:[#allocation2 + $0xc0] sm:$0xff]
    %v93 = vld [vmem:[#allocation2 + $0xc8] sm:$0xff]
    %v94 = vld [vmem:[#allocation2 + $0xd0] sm:$0xff]
    %v95 = vld [vmem:[#allocation2 + $0xd8] sm:$0xff]
    %v96 = vld [vmem:[#allocation2 + $0xe0] sm:$0xff]
    %v97 = vld [vmem:[#allocation2 + $0xe8] sm:$0xff]
    %v98 = vld [vmem:[#allocation2 + $0xf0] sm:$0xff]
    %v99 = vld [vmem:[#allocation2 + $0xf8] sm:$0xff]
    %v100 = vld [vmem:[#allocation5] sm:$0xff]
    %v101 = vld [vmem:[#allocation5 + $0x8] sm:$0xff]
    %v102 = vld [vmem:[#allocation5 + $0x10] sm:$0xff]
    %v103 = vld [vmem:[#allocation5 + $0x18] sm:$0xff]
    %v104 = vld [vmem:[#allocation5 + $0x20] sm:$0xff]
    %v105 = vld [vmem:[#allocation5 + $0x28] sm:$0xff]
    %v106 = vld [vmem:[#allocation5 + $0x30] sm:$0xff]
    %v107 = vld [vmem:[#allocation5 + $0x38] sm:$0xff]
    %v108 = vld [vmem:[#allocation5 + $0x40] sm:$0xff]
    %v109 = vld [vmem:[#allocation5 + $0x48] sm:$0xff]
    %v110 = vld [vmem:[#allocation5 + $0x50] sm:$0xff]
    %v111 = vld [vmem:[#allocation5 + $0x58] sm:$0xff]
    %v112 = vld [vmem:[#allocation5 + $0x60] sm:$0xff]
    %v113 = vld [vmem:[#allocation5 + $0x68] sm:$0xff]
    %v114 = vld [vmem:[#allocation5 + $0x70] sm:$0xff]
    %v115 = vld [vmem:[#allocation5 + $0x78] sm:$0xff]
    %v116 = vld [vmem:[#allocation5 + $0x80] sm:$0xff]
    %v117 = vld [vmem:[#allocation5 + $0x88] sm:$0xff]
    %v118 = vld [vmem:[#allocation5 + $0x90] sm:$0xff]
    %v119 = vld [vmem:[#allocation5 + $0x98] sm:$0xff]
    %v120 = vld [vmem:[#allocation5 + $0xa0] sm:$0xff]
    %v121 = vld [vmem:[#allocation5 + $0xa8] sm:$0xff]
    %v122 = vld [vmem:[#allocation5 + $0xb0] sm:$0xff]
    %v123 = vld [vmem:[#allocation5 + $0xb8] sm:$0xff]
    %v124 = vld [vmem:[#allocation5 + $0xc0] sm:$0xff]
    %v125 = vld [vmem:[#allocation5 + $0xc8] sm:$0xff]
    %v126 = vld [vmem:[#allocation5 + $0xd0] sm:$0xff]
    %v127 = vld [vmem:[#allocation5 + $0xd8] sm:$0xff]
    %v128 = vld [vmem:[#allocation5 + $0xe0] sm:$0xff]
    %v129 = vld [vmem:[#allocation5 + $0xe8] sm:$0xff]
    %v130 = vld [vmem:[#allocation5 + $0xf0] sm:$0xff]
    %v131 = vld [vmem:[#allocation5 + $0xf8] sm:$0xff]
    %v132 = vld [vmem:[%s2] sm:$0x3]
    %v134 = vperm.slane %v132, 0
    %v135 = vperm.slane %v132, 1
    %138 = vmatpush.msra.mxu0 %v130
    %139 = vmatpush.msra.mxu0 %v128
    %140 = vmatpush.msra.mxu0 %v126
    %141 = vmatpush.msra.mxu0 %v124
    %142 = vmatpush.msra.mxu0 %v122
    %143 = vmatpush.msra.mxu0 %v120
    %144 = vmatpush.msra.mxu0 %v118
    %145 = vmatpush.msra.mxu0 %v116
    %146 = vmatpush.msra.mxu0 %v114
    %147 = vmatpush.msra.mxu0 %v112
    %148 = vmatpush.msra.mxu0 %v110
    %149 = vmatpush.msra.mxu0 %v108
    %150 = vmatpush.msra.mxu0 %v106
    %151 = vmatpush.msra.mxu0 %v104
    %152 = vmatpush.msra.mxu0 %v102
    %153 = vmatpush.msra.mxu0 %v100
    %154 = vmatmul.f32.gmra.mxu0 %v68
    %v155 = vpop.f32.mrf.mxu0
    %v156 = vadd.f32 %v134, %v155
    %157 = vmatmul.f32.gmra.mxu0 %v69
    %v158 = vpop.f32.mrf.mxu0
    %v159 = vadd.f32 %v134, %v158
    %160 = vmatmul.f32.gmra.mxu0 %v70
    %v161 = vpop.f32.mrf.mxu0
    %v162 = vadd.f32 %v134, %v161
    %163 = vmatmul.f32.gmra.mxu0 %v71
    %v164 = vpop.f32.mrf.mxu0
    %v165 = vadd.f32 %v134, %v164
    %166 = vmatmul.f32.gmra.mxu0 %v72
    %v167 = vpop.f32.mrf.mxu0
    %v168 = vadd.f32 %v134, %v167
    %169 = vmatmul.f32.gmra.mxu0 %v73
    %v170 = vpop.f32.mrf.mxu0
    %v171 = vadd.f32 %v134, %v170
    %172 = vmatmul.f32.gmra.mxu0 %v74
    %v173 = vpop.f32.mrf.mxu0
    %v174 = vadd.f32 %v134, %v173
    %175 = vmatmul.f32.gmra.mxu0 %v75
    %v176 = vpop.f32.mrf.mxu0
    %v177 = vadd.f32 %v134, %v176
    %178 = vmatmul.f32.gmra.mxu0 %v76
    %v179 = vpop.f32.mrf.mxu0
    %v180 = vadd.f32 %v134, %v179
    %181 = vmatmul.f32.gmra.mxu0 %v77
    %v182 = vpop.f32.mrf.mxu0
    %v183 = vadd.f32 %v134, %v182
    %184 = vmatmul.f32.gmra.mxu0 %v78
    %v185 = vpop.f32.mrf.mxu0
    %v186 = vadd.f32 %v134, %v185
    %187 = vmatmul.f32.gmra.mxu0 %v79
    %v188 = vpop.f32.mrf.mxu0
    %v189 = vadd.f32 %v134, %v188
    %190 = vmatmul.f32.gmra.mxu0 %v80
    %v191 = vpop.f32.mrf.mxu0
    %v192 = vadd.f32 %v134, %v191
    %193 = vmatmul.f32.gmra.mxu0 %v81
    %v194 = vpop.f32.mrf.mxu0
    %v195 = vadd.f32 %v134, %v194
    %196 = vmatmul.f32.gmra.mxu0 %v82
    %v197 = vpop.f32.mrf.mxu0
    %v198 = vadd.f32 %v134, %v197
    %199 = vmatmul.f32.gmra.mxu0 %v83
    %v200 = vpop.f32.mrf.mxu0
    %v201 = vadd.f32 %v134, %v200
    %202 = vmatmul.f32.gmra.mxu0 %v84
    %v203 = vpop.f32.mrf.mxu0
    %v204 = vadd.f32 %v134, %v203
    %205 = vmatmul.f32.gmra.mxu0 %v85
    %v206 = vpop.f32.mrf.mxu0
    %v207 = vadd.f32 %v134, %v206
    %208 = vmatmul.f32.gmra.mxu0 %v86
    %v209 = vpop.f32.mrf.mxu0
    %v210 = vadd.f32 %v134, %v209
    %211 = vmatmul.f32.gmra.mxu0 %v87
    %v212 = vpop.f32.mrf.mxu0
    %v213 = vadd.f32 %v134, %v212
    %214 = vmatmul.f32.gmra.mxu0 %v88
    %v215 = vpop.f32.mrf.mxu0
    %v216 = vadd.f32 %v134, %v215
    %217 = vmatmul.f32.gmra.mxu0 %v89
    %v218 = vpop.f32.mrf.mxu0
    %v219 = vadd.f32 %v134, %v218
    %220 = vmatmul.f32.gmra.mxu0 %v90
    %v221 = vpop.f32.mrf.mxu0
    %v222 = vadd.f32 %v134, %v221
    %223 = vmatmul.f32.gmra.mxu0 %v91
    %v224 = vpop.f32.mrf.mxu0
    %v225 = vadd.f32 %v134, %v224
    %226 = vmatmul.f32.gmra.mxu0 %v92
    %v227 = vpop.f32.mrf.mxu0
    %v228 = vadd.f32 %v134, %v227
    %229 = vmatmul.f32.gmra.mxu0 %v93
    %v230 = vpop.f32.mrf.mxu0
    %v231 = vadd.f32 %v134, %v230
    %232 = vmatmul.f32.gmra.mxu0 %v94
    %v233 = vpop.f32.mrf.mxu0
    %v234 = vadd.f32 %v134, %v233
    %235 = vmatmul.f32.gmra.mxu0 %v95
    %v236 = vpop.f32.mrf.mxu0
    %v237 = vadd.f32 %v134, %v236
    %238 = vmatmul.f32.gmra.mxu0 %v96
    %v239 = vpop.f32.mrf.mxu0
    %v240 = vadd.f32 %v134, %v239
    %241 = vmatmul.f32.gmra.mxu0 %v97
    %v242 = vpop.f32.mrf.mxu0
    %v243 = vadd.f32 %v134, %v242
    %244 = vmatmul.f32.gmra.mxu0 %v98
    %v245 = vpop.f32.mrf.mxu0
    %v246 = vadd.f32 %v134, %v245
    %247 = vmatmul.f32.gmra.mxu0 %v99
    %v248 = vpop.f32.mrf.mxu0
    %v249 = vadd.f32 %v134, %v248
    %250 = vdwg.mxu0
    %251 = vmatpush.msra.mxu0 %v131
    %252 = vmatpush.msra.mxu0 %v129
    %253 = vmatpush.msra.mxu0 %v127
    %254 = vmatpush.msra.mxu0 %v125
    %255 = vmatpush.msra.mxu0 %v123
    %256 = vmatpush.msra.mxu0 %v121
    %257 = vmatpush.msra.mxu0 %v119
    %258 = vmatpush.msra.mxu0 %v117
    %259 = vmatpush.msra.mxu0 %v115
    %260 = vmatpush.msra.mxu0 %v113
    %261 = vmatpush.msra.mxu0 %v111
    %262 = vmatpush.msra.mxu0 %v109
    %263 = vmatpush.msra.mxu0 %v107
    %264 = vmatpush.msra.mxu0 %v105
    %265 = vmatpush.msra.mxu0 %v103
    %266 = vmatpush.msra.mxu0 %v101
    %267 = vmatmul.f32.gmra.mxu0 %v68
    %v268 = vpop.f32.mrf.mxu0
    %v269 = vadd.f32 %v135, %v268
    %270 = vmatmul.f32.gmra.mxu0 %v69
    %v271 = vpop.f32.mrf.mxu0
    %v272 = vadd.f32 %v135, %v271
    %273 = vmatmul.f32.gmra.mxu0 %v70
    %v274 = vpop.f32.mrf.mxu0
    %v275 = vadd.f32 %v135, %v274
    %276 = vmatmul.f32.gmra.mxu0 %v71
    %v277 = vpop.f32.mrf.mxu0
    %v278 = vadd.f32 %v135, %v277
    %279 = vmatmul.f32.gmra.mxu0 %v72
    %v280 = vpop.f32.mrf.mxu0
    %v281 = vadd.f32 %v135, %v280
    %282 = vmatmul.f32.gmra.mxu0 %v73
    %v283 = vpop.f32.mrf.mxu0
    %v284 = vadd.f32 %v135, %v283
    %285 = vmatmul.f32.gmra.mxu0 %v74
    %v286 = vpop.f32.mrf.mxu0
    %v287 = vadd.f32 %v135, %v286
    %288 = vmatmul.f32.gmra.mxu0 %v75
    %v289 = vpop.f32.mrf.mxu0
    %v290 = vadd.f32 %v135, %v289
    %291 = vmatmul.f32.gmra.mxu0 %v76
    %v292 = vpop.f32.mrf.mxu0
    %v293 = vadd.f32 %v135, %v292
    %294 = vmatmul.f32.gmra.mxu0 %v77
    %v295 = vpop.f32.mrf.mxu0
    %v296 = vadd.f32 %v135, %v295
    %297 = vmatmul.f32.gmra.mxu0 %v78
    %v298 = vpop.f32.mrf.mxu0
    %v299 = vadd.f32 %v135, %v298
    %300 = vmatmul.f32.gmra.mxu0 %v79
    %v301 = vpop.f32.mrf.mxu0
    %v302 = vadd.f32 %v135, %v301
    %303 = vmatmul.f32.gmra.mxu0 %v80
    %v304 = vpop.f32.mrf.mxu0
    %v305 = vadd.f32 %v135, %v304
    %306 = vmatmul.f32.gmra.mxu0 %v81
    %v307 = vpop.f32.mrf.mxu0
    %v308 = vadd.f32 %v135, %v307
    %309 = vmatmul.f32.gmra.mxu0 %v82
    %v310 = vpop.f32.mrf.mxu0
    %v311 = vadd.f32 %v135, %v310
    %312 = vmatmul.f32.gmra.mxu0 %v83
    %v313 = vpop.f32.mrf.mxu0
    %v314 = vadd.f32 %v135, %v313
    %315 = vmatmul.f32.gmra.mxu0 %v84
    %v316 = vpop.f32.mrf.mxu0
    %v317 = vadd.f32 %v135, %v316
    %318 = vmatmul.f32.gmra.mxu0 %v85
    %v319 = vpop.f32.mrf.mxu0
    %v320 = vadd.f32 %v135, %v319
    %321 = vmatmul.f32.gmra.mxu0 %v86
    %v322 = vpop.f32.mrf.mxu0
    %v323 = vadd.f32 %v135, %v322
    %324 = vmatmul.f32.gmra.mxu0 %v87
    %v325 = vpop.f32.mrf.mxu0
    %v326 = vadd.f32 %v135, %v325
    %327 = vmatmul.f32.gmra.mxu0 %v88
    %v328 = vpop.f32.mrf.mxu0
    %v329 = vadd.f32 %v135, %v328
    %330 = vmatmul.f32.gmra.mxu0 %v89
    %v331 = vpop.f32.mrf.mxu0
    %v332 = vadd.f32 %v135, %v331
    %333 = vmatmul.f32.gmra.mxu0 %v90
    %v334 = vpop.f32.mrf.mxu0
    %v335 = vadd.f32 %v135, %v334
    %336 = vmatmul.f32.gmra.mxu0 %v91
    %v337 = vpop.f32.mrf.mxu0
    %v338 = vadd.f32 %v135, %v337
    %339 = vmatmul.f32.gmra.mxu0 %v92
    %v340 = vpop.f32.mrf.mxu0
    %v341 = vadd.f32 %v135, %v340
    %342 = vmatmul.f32.gmra.mxu0 %v93
    %v343 = vpop.f32.mrf.mxu0
    %v344 = vadd.f32 %v135, %v343
    %345 = vmatmul.f32.gmra.mxu0 %v94
    %v346 = vpop.f32.mrf.mxu0
    %v347 = vadd.f32 %v135, %v346
    %348 = vmatmul.f32.gmra.mxu0 %v95
    %v349 = vpop.f32.mrf.mxu0
    %v350 = vadd.f32 %v135, %v349
    %351 = vmatmul.f32.gmra.mxu0 %v96
    %v352 = vpop.f32.mrf.mxu0
    %v353 = vadd.f32 %v135, %v352
    %354 = vmatmul.f32.gmra.mxu0 %v97
    %v355 = vpop.f32.mrf.mxu0
    %v356 = vadd.f32 %v135, %v355
    %357 = vmatmul.f32.gmra.mxu0 %v98
    %v358 = vpop.f32.mrf.mxu0
    %v359 = vadd.f32 %v135, %v358
    %360 = vmatmul.f32.gmra.mxu0 %v99
    %v361 = vpop.f32.mrf.mxu0
    %v362 = vadd.f32 %v135, %v361
    %363 = vdwg.mxu0
    %v364 = vmul.f32 %v156, 0.5
    %v365 = vmul.f32 %v269, 0.5
    %v366 = vmul.f32 %v159, 0.5
    %v367 = vmul.f32 %v272, 0.5
    %v368 = vmul.f32 %v162, 0.5
    %v369 = vmul.f32 %v275, 0.5
    %v370 = vmul.f32 %v165, 0.5
    %v371 = vmul.f32 %v278, 0.5
    %v372 = vmul.f32 %v168, 0.5
    %v373 = vmul.f32 %v281, 0.5
    %v374 = vmul.f32 %v171, 0.5
    %v375 = vmul.f32 %v284, 0.5
    %v376 = vmul.f32 %v174, 0.5
    %v377 = vmul.f32 %v287, 0.5
    %v378 = vmul.f32 %v177, 0.5
    %v379 = vmul.f32 %v290, 0.5
    %v380 = vmul.f32 %v180, 0.5
    %v381 = vmul.f32 %v293, 0.5
    %v382 = vmul.f32 %v183, 0.5
    %v383 = vmul.f32 %v296, 0.5
    %v384 = vmul.f32 %v186, 0.5
    %v385 = vmul.f32 %v299, 0.5
    %v386 = vmul.f32 %v189, 0.5
    %v387 = vmul.f32 %v302, 0.5
    %v388 = vmul.f32 %v192, 0.5
    %v389 = vmul.f32 %v305, 0.5
    %v390 = vmul.f32 %v195, 0.5
    %v391 = vmul.f32 %v308, 0.5
    %v392 = vmul.f32 %v198, 0.5
    %v393 = vmul.f32 %v311, 0.5
    %v394 = vmul.f32 %v201, 0.5
    %v395 = vmul.f32 %v314, 0.5
    %v396 = vmul.f32 %v204, 0.5
    %v397 = vmul.f32 %v317, 0.5
    %v398 = vmul.f32 %v207, 0.5
    %v399 = vmul.f32 %v320, 0.5
    %v400 = vmul.f32 %v210, 0.5
    %v401 = vmul.f32 %v323, 0.5
    %v402 = vmul.f32 %v213, 0.5
    %v403 = vmul.f32 %v326, 0.5
    %v404 = vmul.f32 %v216, 0.5
    %v405 = vmul.f32 %v329, 0.5
    %v406 = vmul.f32 %v219, 0.5
    %v407 = vmul.f32 %v332, 0.5
    %v408 = vmul.f32 %v222, 0.5
    %v409 = vmul.f32 %v335, 0.5
    %v410 = vmul.f32 %v225, 0.5
    %v411 = vmul.f32 %v338, 0.5
    %v412 = vmul.f32 %v228, 0.5
    %v413 = vmul.f32 %v341, 0.5
    %v414 = vmul.f32 %v231, 0.5
    %v415 = vmul.f32 %v344, 0.5
    %v416 = vmul.f32 %v234, 0.5
    %v417 = vmul.f32 %v347, 0.5
    %v418 = vmul.f32 %v237, 0.5
    %v419 = vmul.f32 %v350, 0.5
    %v420 = vmul.f32 %v240, 0.5
    %v421 = vmul.f32 %v353, 0.5
    %v422 = vmul.f32 %v243, 0.5
    %v423 = vmul.f32 %v356, 0.5
    %v424 = vmul.f32 %v246, 0.5
    %v425 = vmul.f32 %v359, 0.5
    %v426 = vmul.f32 %v249, 0.5
    %v427 = vmul.f32 %v362, 0.5
    %v428 = vmul.f32 %v156, 0.70710677
    %v429 = vmul.f32 %v269, 0.70710677
    %v430 = vmul.f32 %v159, 0.70710677
    %v431 = vmul.f32 %v272, 0.70710677
    %v432 = vmul.f32 %v162, 0.70710677
    %v433 = vmul.f32 %v275, 0.70710677
    %v434 = vmul.f32 %v165, 0.70710677
    %v435 = vmul.f32 %v278, 0.70710677
    %v436 = vmul.f32 %v168, 0.70710677
    %v437 = vmul.f32 %v281, 0.70710677
    %v438 = vmul.f32 %v171, 0.70710677
    %v439 = vmul.f32 %v284, 0.70710677
    %v440 = vmul.f32 %v174, 0.70710677
    %v441 = vmul.f32 %v287, 0.70710677
    %v442 = vmul.f32 %v177, 0.70710677
    %v443 = vmul.f32 %v290, 0.70710677
    %v444 = vmul.f32 %v180, 0.70710677
    %v445 = vmul.f32 %v293, 0.70710677
    %v446 = vmul.f32 %v183, 0.70710677
    %v447 = vmul.f32 %v296, 0.70710677
    %v448 = vmul.f32 %v186, 0.70710677
    %v449 = vmul.f32 %v299, 0.70710677
    %v450 = vmul.f32 %v189, 0.70710677
    %v451 = vmul.f32 %v302, 0.70710677
    %v452 = vmul.f32 %v192, 0.70710677
    %v453 = vmul.f32 %v305, 0.70710677
    %v454 = vmul.f32 %v195, 0.70710677
    %v455 = vmul.f32 %v308, 0.70710677
    %v456 = vmul.f32 %v198, 0.70710677
    %v457 = vmul.f32 %v311, 0.70710677
    %v458 = vmul.f32 %v201, 0.70710677
    %v459 = vmul.f32 %v314, 0.70710677
    %v460 = vmul.f32 %v204, 0.70710677
    %v461 = vmul.f32 %v317, 0.70710677
    %v462 = vmul.f32 %v207, 0.70710677
    %v463 = vmul.f32 %v320, 0.70710677
    %v464 = vmul.f32 %v210, 0.70710677
    %v465 = vmul.f32 %v323, 0.70710677
    %v466 = vmul.f32 %v213, 0.70710677
    %v467 = vmul.f32 %v326, 0.70710677
    %v468 = vmul.f32 %v216, 0.70710677
    %v469 = vmul.f32 %v329, 0.70710677
    %v470 = vmul.f32 %v219, 0.70710677
    %v471 = vmul.f32 %v332, 0.70710677
    %v472 = vmul.f32 %v222, 0.70710677
    %v473 = vmul.f32 %v335, 0.70710677
    %v474 = vmul.f32 %v225, 0.70710677
    %v475 = vmul.f32 %v338, 0.70710677
    %v476 = vmul.f32 %v228, 0.70710677
    %v477 = vmul.f32 %v341, 0.70710677
    %v478 = vmul.f32 %v231, 0.70710677
    %v479 = vmul.f32 %v344, 0.70710677
    %v480 = vmul.f32 %v234, 0.70710677
    %v481 = vmul.f32 %v347, 0.70710677
    %v482 = vmul.f32 %v237, 0.70710677
    %v483 = vmul.f32 %v350, 0.70710677
    %v484 = vmul.f32 %v240, 0.70710677
    %v485 = vmul.f32 %v353, 0.70710677
    %v486 = vmul.f32 %v243, 0.70710677
    %v487 = vmul.f32 %v356, 0.70710677
    %v488 = vmul.f32 %v246, 0.70710677
    %v489 = vmul.f32 %v359, 0.70710677
    %v490 = vmul.f32 %v249, 0.70710677
    %v491 = vmul.f32 %v362, 0.70710677
    %v492 = vmul.f32 %v428, %v428
    %v493 = vmin.f32 16.0, %v492
    %v494 = vmul.f32 %v493, 2.1237322e-06
    %v495 = vadd.f32 %v494, 0.00028619796
    %v496 = vmul.f32 %v493, %v495
    %v497 = vadd.f32 %v496, 0.0036580483
    %v498 = vmul.f32 %v493, %v497
    %v499 = vadd.f32 %v498, 0.05243302
    %v500 = vmul.f32 %v493, %v499
    %v501 = vadd.f32 %v500, 0.18741608
    %v502 = vmul.f32 %v493, %v501
    %v503 = vadd.f32 %v502, 1.1283791
    %v504 = vmul.f32 %v428, %v503
    %v505 = vmul.f32 %v493, 3.8918573e-05
    %v506 = vadd.f32 %v505, 0.001143296
    %v507 = vmul.f32 %v493, %v506
    %v508 = vadd.f32 %v507, 0.014752088
    %v509 = vmul.f32 %v493, %v508
    %v510 = vadd.f32 %v509, 0.112945676
    %v511 = vmul.f32 %v493, %v510
    %v512 = vadd.f32 %v511, 0.4994258
    %v513 = vmul.f32 %v493, %v512
    %v514 = vadd.f32 %v513, 1.0
    %v515 = vrcp.pop %v514
    %v516 = vmul.f32 %v514, %v515
    %v517 = vsub.f32 1.0, %v516
    %v518 = vmul.f32 %v515, %v517
    %v519 = vadd.f32 %v515, %v518
    %vm520 = vweird.f32 %v514
    %vm521 = vweird.f32 %v515
    %vm522 = vmor %vm520, %vm521
    %v523 = vsel %vm522, %v515, %v519
    %v524 = vand.u32 2147483647, %v514
    %vm525 = vcmp.eq.f32.partialorder %v524, 8.507059e+37
    %v526 = vand.u32 %v514, 2147483648
    %v527 = vor.u32 1.1754944e-38, %v526
    %v528 = vsel %vm525, %v527, %v523
    %v529 = vmul.f32 %v504, %v528
    %v530 = vmin.f32 %v529, 1.0
    %v531 = vmax.f32 %v530, -1.0
    %v532 = vmul.f32 %v429, %v429
    %v533 = vmin.f32 16.0, %v532
    %v534 = vmul.f32 %v533, 2.1237322e-06
    %v535 = vadd.f32 %v534, 0.00028619796
    %v536 = vmul.f32 %v533, %v535
    %v537 = vadd.f32 %v536, 0.0036580483
    %v538 = vmul.f32 %v533, %v537
    %v539 = vadd.f32 %v538, 0.05243302
    %v540 = vmul.f32 %v533, %v539
    %v541 = vadd.f32 %v540, 0.18741608
    %v542 = vmul.f32 %v533, %v541
    %v543 = vadd.f32 %v542, 1.1283791
    %v544 = vmul.f32 %v429, %v543
    %v545 = vmul.f32 %v533, 3.8918573e-05
    %v546 = vadd.f32 %v545, 0.001143296
    %v547 = vmul.f32 %v533, %v546
    %v548 = vadd.f32 %v547, 0.014752088
    %v549 = vmul.f32 %v533, %v548
    %v550 = vadd.f32 %v549, 0.112945676
    %v551 = vmul.f32 %v533, %v550
    %v552 = vadd.f32 %v551, 0.4994258
    %v553 = vmul.f32 %v533, %v552
    %v554 = vadd.f32 %v553, 1.0
    %v555 = vrcp.pop %v554
    %v556 = vmul.f32 %v554, %v555
    %v557 = vsub.f32 1.0, %v556
    %v558 = vmul.f32 %v555, %v557
    %v559 = vadd.f32 %v555, %v558
    %vm560 = vweird.f32 %v554
    %vm561 = vweird.f32 %v555
    %vm562 = vmor %vm560, %vm561
    %v563 = vsel %vm562, %v555, %v559
    %v564 = vand.u32 2147483647, %v554
    %vm565 = vcmp.eq.f32.partialorder %v564, 8.507059e+37
    %v566 = vand.u32 %v554, 2147483648
    %v567 = vor.u32 1.1754944e-38, %v566
    %v568 = vsel %vm565, %v567, %v563
    %v569 = vmul.f32 %v544, %v568
    %v570 = vmin.f32 %v569, 1.0
    %v571 = vmax.f32 %v570, -1.0
    %v572 = vmul.f32 %v430, %v430
    %v573 = vmin.f32 16.0, %v572
    %v574 = vmul.f32 %v573, 2.1237322e-06
    %v575 = vadd.f32 %v574, 0.00028619796
    %v576 = vmul.f32 %v573, %v575
    %v577 = vadd.f32 %v576, 0.0036580483
    %v578 = vmul.f32 %v573, %v577
    %v579 = vadd.f32 %v578, 0.05243302
    %v580 = vmul.f32 %v573, %v579
    %v581 = vadd.f32 %v580, 0.18741608
    %v582 = vmul.f32 %v573, %v581
    %v583 = vadd.f32 %v582, 1.1283791
    %v584 = vmul.f32 %v430, %v583
    %v585 = vmul.f32 %v573, 3.8918573e-05
    %v586 = vadd.f32 %v585, 0.001143296
    %v587 = vmul.f32 %v573, %v586
    %v588 = vadd.f32 %v587, 0.014752088
    %v589 = vmul.f32 %v573, %v588
    %v590 = vadd.f32 %v589, 0.112945676
    %v591 = vmul.f32 %v573, %v590
    %v592 = vadd.f32 %v591, 0.4994258
    %v593 = vmul.f32 %v573, %v592
    %v594 = vadd.f32 %v593, 1.0
    %v595 = vrcp.pop %v594
    %v596 = vmul.f32 %v594, %v595
    %v597 = vsub.f32 1.0, %v596
    %v598 = vmul.f32 %v595, %v597
    %v599 = vadd.f32 %v595, %v598
    %vm600 = vweird.f32 %v594
    %vm601 = vweird.f32 %v595
    %vm602 = vmor %vm600, %vm601
    %v603 = vsel %vm602, %v595, %v599
    %v604 = vand.u32 2147483647, %v594
    %vm605 = vcmp.eq.f32.partialorder %v604, 8.507059e+37
    %v606 = vand.u32 %v594, 2147483648
    %v607 = vor.u32 1.1754944e-38, %v606
    %v608 = vsel %vm605, %v607, %v603
    %v609 = vmul.f32 %v584, %v608
    %v610 = vmin.f32 %v609, 1.0
    %v611 = vmax.f32 %v610, -1.0
    %v612 = vmul.f32 %v431, %v431
    %v613 = vmin.f32 16.0, %v612
    %v614 = vmul.f32 %v613, 2.1237322e-06
    %v615 = vadd.f32 %v614, 0.00028619796
    %v616 = vmul.f32 %v613, %v615
    %v617 = vadd.f32 %v616, 0.0036580483
    %v618 = vmul.f32 %v613, %v617
    %v619 = vadd.f32 %v618, 0.05243302
    %v620 = vmul.f32 %v613, %v619
    %v621 = vadd.f32 %v620, 0.18741608
    %v622 = vmul.f32 %v613, %v621
    %v623 = vadd.f32 %v622, 1.1283791
    %v624 = vmul.f32 %v431, %v623
    %v625 = vmul.f32 %v613, 3.8918573e-05
    %v626 = vadd.f32 %v625, 0.001143296
    %v627 = vmul.f32 %v613, %v626
    %v628 = vadd.f32 %v627, 0.014752088
    %v629 = vmul.f32 %v613, %v628
    %v630 = vadd.f32 %v629, 0.112945676
    %v631 = vmul.f32 %v613, %v630
    %v632 = vadd.f32 %v631, 0.4994258
    %v633 = vmul.f32 %v613, %v632
    %v634 = vadd.f32 %v633, 1.0
    %v635 = vrcp.pop %v634
    %v636 = vmul.f32 %v634, %v635
    %v637 = vsub.f32 1.0, %v636
    %v638 = vmul.f32 %v635, %v637
    %v639 = vadd.f32 %v635, %v638
    %vm640 = vweird.f32 %v634
    %vm641 = vweird.f32 %v635
    %vm642 = vmor %vm640, %vm641
    %v643 = vsel %vm642, %v635, %v639
    %v644 = vand.u32 2147483647, %v634
    %vm645 = vcmp.eq.f32.partialorder %v644, 8.507059e+37
    %v646 = vand.u32 %v634, 2147483648
    %v647 = vor.u32 1.1754944e-38, %v646
    %v648 = vsel %vm645, %v647, %v643
    %v649 = vmul.f32 %v624, %v648
    %v650 = vmin.f32 %v649, 1.0
    %v651 = vmax.f32 %v650, -1.0
    %v652 = vmul.f32 %v432, %v432
    %v653 = vmin.f32 16.0, %v652
    %v654 = vmul.f32 %v653, 2.1237322e-06
    %v655 = vadd.f32 %v654, 0.00028619796
    %v656 = vmul.f32 %v653, %v655
    %v657 = vadd.f32 %v656, 0.0036580483
    %v658 = vmul.f32 %v653, %v657
    %v659 = vadd.f32 %v658, 0.05243302
    %v660 = vmul.f32 %v653, %v659
    %v661 = vadd.f32 %v660, 0.18741608
    %v662 = vmul.f32 %v653, %v661
    %v663 = vadd.f32 %v662, 1.1283791
    %v664 = vmul.f32 %v432, %v663
    %v665 = vmul.f32 %v653, 3.8918573e-05
    %v666 = vadd.f32 %v665, 0.001143296
    %v667 = vmul.f32 %v653, %v666
    %v668 = vadd.f32 %v667, 0.014752088
    %v669 = vmul.f32 %v653, %v668
    %v670 = vadd.f32 %v669, 0.112945676
    %v671 = vmul.f32 %v653, %v670
    %v672 = vadd.f32 %v671, 0.4994258
    %v673 = vmul.f32 %v653, %v672
    %v674 = vadd.f32 %v673, 1.0
    %v675 = vrcp.pop %v674
    %v676 = vmul.f32 %v674, %v675
    %v677 = vsub.f32 1.0, %v676
    %v678 = vmul.f32 %v675, %v677
    %v679 = vadd.f32 %v675, %v678
    %vm680 = vweird.f32 %v674
    %vm681 = vweird.f32 %v675
    %vm682 = vmor %vm680, %vm681
    %v683 = vsel %vm682, %v675, %v679
    %v684 = vand.u32 2147483647, %v674
    %vm685 = vcmp.eq.f32.partialorder %v684, 8.507059e+37
    %v686 = vand.u32 %v674, 2147483648
    %v687 = vor.u32 1.1754944e-38, %v686
    %v688 = vsel %vm685, %v687, %v683
    %v689 = vmul.f32 %v664, %v688
    %v690 = vmin.f32 %v689, 1.0
    %v691 = vmax.f32 %v690, -1.0
    %v692 = vmul.f32 %v433, %v433
    %v693 = vmin.f32 16.0, %v692
    %v694 = vmul.f32 %v693, 2.1237322e-06
    %v695 = vadd.f32 %v694, 0.00028619796
    %v696 = vmul.f32 %v693, %v695
    %v697 = vadd.f32 %v696, 0.0036580483
    %v698 = vmul.f32 %v693, %v697
    %v699 = vadd.f32 %v698, 0.05243302
    %v700 = vmul.f32 %v693, %v699
    %v701 = vadd.f32 %v700, 0.18741608
    %v702 = vmul.f32 %v693, %v701
    %v703 = vadd.f32 %v702, 1.1283791
    %v704 = vmul.f32 %v433, %v703
    %v705 = vmul.f32 %v693, 3.8918573e-05
    %v706 = vadd.f32 %v705, 0.001143296
    %v707 = vmul.f32 %v693, %v706
    %v708 = vadd.f32 %v707, 0.014752088
    %v709 = vmul.f32 %v693, %v708
    %v710 = vadd.f32 %v709, 0.112945676
    %v711 = vmul.f32 %v693, %v710
    %v712 = vadd.f32 %v711, 0.4994258
    %v713 = vmul.f32 %v693, %v712
    %v714 = vadd.f32 %v713, 1.0
    %v715 = vrcp.pop %v714
    %v716 = vmul.f32 %v714, %v715
    %v717 = vsub.f32 1.0, %v716
    %v718 = vmul.f32 %v715, %v717
    %v719 = vadd.f32 %v715, %v718
    %vm720 = vweird.f32 %v714
    %vm721 = vweird.f32 %v715
    %vm722 = vmor %vm720, %vm721
    %v723 = vsel %vm722, %v715, %v719
    %v724 = vand.u32 2147483647, %v714
    %vm725 = vcmp.eq.f32.partialorder %v724, 8.507059e+37
    %v726 = vand.u32 %v714, 2147483648
    %v727 = vor.u32 1.1754944e-38, %v726
    %v728 = vsel %vm725, %v727, %v723
    %v729 = vmul.f32 %v704, %v728
    %v730 = vmin.f32 %v729, 1.0
    %v731 = vmax.f32 %v730, -1.0
    %v732 = vmul.f32 %v434, %v434
    %v733 = vmin.f32 16.0, %v732
    %v734 = vmul.f32 %v733, 2.1237322e-06
    %v735 = vadd.f32 %v734, 0.00028619796
    %v736 = vmul.f32 %v733, %v735
    %v737 = vadd.f32 %v736, 0.0036580483
    %v738 = vmul.f32 %v733, %v737
    %v739 = vadd.f32 %v738, 0.05243302
    %v740 = vmul.f32 %v733, %v739
    %v741 = vadd.f32 %v740, 0.18741608
    %v742 = vmul.f32 %v733, %v741
    %v743 = vadd.f32 %v742, 1.1283791
    %v744 = vmul.f32 %v434, %v743
    %v745 = vmul.f32 %v733, 3.8918573e-05
    %v746 = vadd.f32 %v745, 0.001143296
    %v747 = vmul.f32 %v733, %v746
    %v748 = vadd.f32 %v747, 0.014752088
    %v749 = vmul.f32 %v733, %v748
    %v750 = vadd.f32 %v749, 0.112945676
    %v751 = vmul.f32 %v733, %v750
    %v752 = vadd.f32 %v751, 0.4994258
    %v753 = vmul.f32 %v733, %v752
    %v754 = vadd.f32 %v753, 1.0
    %v755 = vrcp.pop %v754
    %v756 = vmul.f32 %v754, %v755
    %v757 = vsub.f32 1.0, %v756
    %v758 = vmul.f32 %v755, %v757
    %v759 = vadd.f32 %v755, %v758
    %vm760 = vweird.f32 %v754
    %vm761 = vweird.f32 %v755
    %vm762 = vmor %vm760, %vm761
    %v763 = vsel %vm762, %v755, %v759
    %v764 = vand.u32 2147483647, %v754
    %vm765 = vcmp.eq.f32.partialorder %v764, 8.507059e+37
    %v766 = vand.u32 %v754, 2147483648
    %v767 = vor.u32 1.1754944e-38, %v766
    %v768 = vsel %vm765, %v767, %v763
    %v769 = vmul.f32 %v744, %v768
    %v770 = vmin.f32 %v769, 1.0
    %v771 = vmax.f32 %v770, -1.0
    %v772 = vmul.f32 %v435, %v435
    %v773 = vmin.f32 16.0, %v772
    %v774 = vmul.f32 %v773, 2.1237322e-06
    %v775 = vadd.f32 %v774, 0.00028619796
    %v776 = vmul.f32 %v773, %v775
    %v777 = vadd.f32 %v776, 0.0036580483
    %v778 = vmul.f32 %v773, %v777
    %v779 = vadd.f32 %v778, 0.05243302
    %v780 = vmul.f32 %v773, %v779
    %v781 = vadd.f32 %v780, 0.18741608
    %v782 = vmul.f32 %v773, %v781
    %v783 = vadd.f32 %v782, 1.1283791
    %v784 = vmul.f32 %v435, %v783
    %v785 = vmul.f32 %v773, 3.8918573e-05
    %v786 = vadd.f32 %v785, 0.001143296
    %v787 = vmul.f32 %v773, %v786
    %v788 = vadd.f32 %v787, 0.014752088
    %v789 = vmul.f32 %v773, %v788
    %v790 = vadd.f32 %v789, 0.112945676
    %v791 = vmul.f32 %v773, %v790
    %v792 = vadd.f32 %v791, 0.4994258
    %v793 = vmul.f32 %v773, %v792
    %v794 = vadd.f32 %v793, 1.0
    %v795 = vrcp.pop %v794
    %v796 = vmul.f32 %v794, %v795
    %v797 = vsub.f32 1.0, %v796
    %v798 = vmul.f32 %v795, %v797
    %v799 = vadd.f32 %v795, %v798
    %vm800 = vweird.f32 %v794
    %vm801 = vweird.f32 %v795
    %vm802 = vmor %vm800, %vm801
    %v803 = vsel %vm802, %v795, %v799
    %v804 = vand.u32 2147483647, %v794
    %vm805 = vcmp.eq.f32.partialorder %v804, 8.507059e+37
    %v806 = vand.u32 %v794, 2147483648
    %v807 = vor.u32 1.1754944e-38, %v806
    %v808 = vsel %vm805, %v807, %v803
    %v809 = vmul.f32 %v784, %v808
    %v810 = vmin.f32 %v809, 1.0
    %v811 = vmax.f32 %v810, -1.0
    %v812 = vmul.f32 %v436, %v436
    %v813 = vmin.f32 16.0, %v812
    %v814 = vmul.f32 %v813, 2.1237322e-06
    %v815 = vadd.f32 %v814, 0.00028619796
    %v816 = vmul.f32 %v813, %v815
    %v817 = vadd.f32 %v816, 0.0036580483
    %v818 = vmul.f32 %v813, %v817
    %v819 = vadd.f32 %v818, 0.05243302
    %v820 = vmul.f32 %v813, %v819
    %v821 = vadd.f32 %v820, 0.18741608
    %v822 = vmul.f32 %v813, %v821
    %v823 = vadd.f32 %v822, 1.1283791
    %v824 = vmul.f32 %v436, %v823
    %v825 = vmul.f32 %v813, 3.8918573e-05
    %v826 = vadd.f32 %v825, 0.001143296
    %v827 = vmul.f32 %v813, %v826
    %v828 = vadd.f32 %v827, 0.014752088
    %v829 = vmul.f32 %v813, %v828
    %v830 = vadd.f32 %v829, 0.112945676
    %v831 = vmul.f32 %v813, %v830
    %v832 = vadd.f32 %v831, 0.4994258
    %v833 = vmul.f32 %v813, %v832
    %v834 = vadd.f32 %v833, 1.0
    %v835 = vrcp.pop %v834
    %v836 = vmul.f32 %v834, %v835
    %v837 = vsub.f32 1.0, %v836
    %v838 = vmul.f32 %v835, %v837
    %v839 = vadd.f32 %v835, %v838
    %vm840 = vweird.f32 %v834
    %vm841 = vweird.f32 %v835
    %vm842 = vmor %vm840, %vm841
    %v843 = vsel %vm842, %v835, %v839
    %v844 = vand.u32 2147483647, %v834
    %vm845 = vcmp.eq.f32.partialorder %v844, 8.507059e+37
    %v846 = vand.u32 %v834, 2147483648
    %v847 = vor.u32 1.1754944e-38, %v846
    %v848 = vsel %vm845, %v847, %v843
    %v849 = vmul.f32 %v824, %v848
    %v850 = vmin.f32 %v849, 1.0
    %v851 = vmax.f32 %v850, -1.0
    %v852 = vmul.f32 %v437, %v437
    %v853 = vmin.f32 16.0, %v852
    %v854 = vmul.f32 %v853, 2.1237322e-06
    %v855 = vadd.f32 %v854, 0.00028619796
    %v856 = vmul.f32 %v853, %v855
    %v857 = vadd.f32 %v856, 0.0036580483
    %v858 = vmul.f32 %v853, %v857
    %v859 = vadd.f32 %v858, 0.05243302
    %v860 = vmul.f32 %v853, %v859
    %v861 = vadd.f32 %v860, 0.18741608
    %v862 = vmul.f32 %v853, %v861
    %v863 = vadd.f32 %v862, 1.1283791
    %v864 = vmul.f32 %v437, %v863
    %v865 = vmul.f32 %v853, 3.8918573e-05
    %v866 = vadd.f32 %v865, 0.001143296
    %v867 = vmul.f32 %v853, %v866
    %v868 = vadd.f32 %v867, 0.014752088
    %v869 = vmul.f32 %v853, %v868
    %v870 = vadd.f32 %v869, 0.112945676
    %v871 = vmul.f32 %v853, %v870
    %v872 = vadd.f32 %v871, 0.4994258
    %v873 = vmul.f32 %v853, %v872
    %v874 = vadd.f32 %v873, 1.0
    %v875 = vrcp.pop %v874
    %v876 = vmul.f32 %v874, %v875
    %v877 = vsub.f32 1.0, %v876
    %v878 = vmul.f32 %v875, %v877
    %v879 = vadd.f32 %v875, %v878
    %vm880 = vweird.f32 %v874
    %vm881 = vweird.f32 %v875
    %vm882 = vmor %vm880, %vm881
    %v883 = vsel %vm882, %v875, %v879
    %v884 = vand.u32 2147483647, %v874
    %vm885 = vcmp.eq.f32.partialorder %v884, 8.507059e+37
    %v886 = vand.u32 %v874, 2147483648
    %v887 = vor.u32 1.1754944e-38, %v886
    %v888 = vsel %vm885, %v887, %v883
    %v889 = vmul.f32 %v864, %v888
    %v890 = vmin.f32 %v889, 1.0
    %v891 = vmax.f32 %v890, -1.0
    %v892 = vmul.f32 %v438, %v438
    %v893 = vmin.f32 16.0, %v892
    %v894 = vmul.f32 %v893, 2.1237322e-06
    %v895 = vadd.f32 %v894, 0.00028619796
    %v896 = vmul.f32 %v893, %v895
    %v897 = vadd.f32 %v896, 0.0036580483
    %v898 = vmul.f32 %v893, %v897
    %v899 = vadd.f32 %v898, 0.05243302
    %v900 = vmul.f32 %v893, %v899
    %v901 = vadd.f32 %v900, 0.18741608
    %v902 = vmul.f32 %v893, %v901
    %v903 = vadd.f32 %v902, 1.1283791
    %v904 = vmul.f32 %v438, %v903
    %v905 = vmul.f32 %v893, 3.8918573e-05
    %v906 = vadd.f32 %v905, 0.001143296
    %v907 = vmul.f32 %v893, %v906
    %v908 = vadd.f32 %v907, 0.014752088
    %v909 = vmul.f32 %v893, %v908
    %v910 = vadd.f32 %v909, 0.112945676
    %v911 = vmul.f32 %v893, %v910
    %v912 = vadd.f32 %v911, 0.4994258
    %v913 = vmul.f32 %v893, %v912
    %v914 = vadd.f32 %v913, 1.0
    %v915 = vrcp.pop %v914
    %v916 = vmul.f32 %v914, %v915
    %v917 = vsub.f32 1.0, %v916
    %v918 = vmul.f32 %v915, %v917
    %v919 = vadd.f32 %v915, %v918
    %vm920 = vweird.f32 %v914
    %vm921 = vweird.f32 %v915
    %vm922 = vmor %vm920, %vm921
    %v923 = vsel %vm922, %v915, %v919
    %v924 = vand.u32 2147483647, %v914
    %vm925 = vcmp.eq.f32.partialorder %v924, 8.507059e+37
    %v926 = vand.u32 %v914, 2147483648
    %v927 = vor.u32 1.1754944e-38, %v926
    %v928 = vsel %vm925, %v927, %v923
    %v929 = vmul.f32 %v904, %v928
    %v930 = vmin.f32 %v929, 1.0
    %v931 = vmax.f32 %v930, -1.0
    %v932 = vmul.f32 %v439, %v439
    %v933 = vmin.f32 16.0, %v932
    %v934 = vmul.f32 %v933, 2.1237322e-06
    %v935 = vadd.f32 %v934, 0.00028619796
    %v936 = vmul.f32 %v933, %v935
    %v937 = vadd.f32 %v936, 0.0036580483
    %v938 = vmul.f32 %v933, %v937
    %v939 = vadd.f32 %v938, 0.05243302
    %v940 = vmul.f32 %v933, %v939
    %v941 = vadd.f32 %v940, 0.18741608
    %v942 = vmul.f32 %v933, %v941
    %v943 = vadd.f32 %v942, 1.1283791
    %v944 = vmul.f32 %v439, %v943
    %v945 = vmul.f32 %v933, 3.8918573e-05
    %v946 = vadd.f32 %v945, 0.001143296
    %v947 = vmul.f32 %v933, %v946
    %v948 = vadd.f32 %v947, 0.014752088
    %v949 = vmul.f32 %v933, %v948
    %v950 = vadd.f32 %v949, 0.112945676
    %v951 = vmul.f32 %v933, %v950
    %v952 = vadd.f32 %v951, 0.4994258
    %v953 = vmul.f32 %v933, %v952
    %v954 = vadd.f32 %v953, 1.0
    %v955 = vrcp.pop %v954
    %v956 = vmul.f32 %v954, %v955
    %v957 = vsub.f32 1.0, %v956
    %v958 = vmul.f32 %v955, %v957
    %v959 = vadd.f32 %v955, %v958
    %vm960 = vweird.f32 %v954
    %vm961 = vweird.f32 %v955
    %vm962 = vmor %vm960, %vm961
    %v963 = vsel %vm962, %v955, %v959
    %v964 = vand.u32 2147483647, %v954
    %vm965 = vcmp.eq.f32.partialorder %v964, 8.507059e+37
    %v966 = vand.u32 %v954, 2147483648
    %v967 = vor.u32 1.1754944e-38, %v966
    %v968 = vsel %vm965, %v967, %v963
    %v969 = vmul.f32 %v944, %v968
    %v970 = vmin.f32 %v969, 1.0
    %v971 = vmax.f32 %v970, -1.0
    %v972 = vmul.f32 %v440, %v440
    %v973 = vmin.f32 16.0, %v972
    %v974 = vmul.f32 %v973, 2.1237322e-06
    %v975 = vadd.f32 %v974, 0.00028619796
    %v976 = vmul.f32 %v973, %v975
    %v977 = vadd.f32 %v976, 0.0036580483
    %v978 = vmul.f32 %v973, %v977
    %v979 = vadd.f32 %v978, 0.05243302
    %v980 = vmul.f32 %v973, %v979
    %v981 = vadd.f32 %v980, 0.18741608
    %v982 = vmul.f32 %v973, %v981
    %v983 = vadd.f32 %v982, 1.1283791
    %v984 = vmul.f32 %v440, %v983
    %v985 = vmul.f32 %v973, 3.8918573e-05
    %v986 = vadd.f32 %v985, 0.001143296
    %v987 = vmul.f32 %v973, %v986
    %v988 = vadd.f32 %v987, 0.014752088
    %v989 = vmul.f32 %v973, %v988
    %v990 = vadd.f32 %v989, 0.112945676
    %v991 = vmul.f32 %v973, %v990
    %v992 = vadd.f32 %v991, 0.4994258
    %v993 = vmul.f32 %v973, %v992
    %v994 = vadd.f32 %v993, 1.0
    %v995 = vrcp.pop %v994
    %v996 = vmul.f32 %v994, %v995
    %v997 = vsub.f32 1.0, %v996
    %v998 = vmul.f32 %v995, %v997
    %v999 = vadd.f32 %v995, %v998
    %vm1000 = vweird.f32 %v994
    %vm1001 = vweird.f32 %v995
    %vm1002 = vmor %vm1000, %vm1001
    %v1003 = vsel %vm1002, %v995, %v999
    %v1004 = vand.u32 2147483647, %v994
    %vm1005 = vcmp.eq.f32.partialorder %v1004, 8.507059e+37
    %v1006 = vand.u32 %v994, 2147483648
    %v1007 = vor.u32 1.1754944e-38, %v1006
    %v1008 = vsel %vm1005, %v1007, %v1003
    %v1009 = vmul.f32 %v984, %v1008
    %v1010 = vmin.f32 %v1009, 1.0
    %v1011 = vmax.f32 %v1010, -1.0
    %v1012 = vmul.f32 %v441, %v441
    %v1013 = vmin.f32 16.0, %v1012
    %v1014 = vmul.f32 %v1013, 2.1237322e-06
    %v1015 = vadd.f32 %v1014, 0.00028619796
    %v1016 = vmul.f32 %v1013, %v1015
    %v1017 = vadd.f32 %v1016, 0.0036580483
    %v1018 = vmul.f32 %v1013, %v1017
    %v1019 = vadd.f32 %v1018, 0.05243302
    %v1020 = vmul.f32 %v1013, %v1019
    %v1021 = vadd.f32 %v1020, 0.18741608
    %v1022 = vmul.f32 %v1013, %v1021
    %v1023 = vadd.f32 %v1022, 1.1283791
    %v1024 = vmul.f32 %v441, %v1023
    %v1025 = vmul.f32 %v1013, 3.8918573e-05
    %v1026 = vadd.f32 %v1025, 0.001143296
    %v1027 = vmul.f32 %v1013, %v1026
    %v1028 = vadd.f32 %v1027, 0.014752088
    %v1029 = vmul.f32 %v1013, %v1028
    %v1030 = vadd.f32 %v1029, 0.112945676
    %v1031 = vmul.f32 %v1013, %v1030
    %v1032 = vadd.f32 %v1031, 0.4994258
    %v1033 = vmul.f32 %v1013, %v1032
    %v1034 = vadd.f32 %v1033, 1.0
    %v1035 = vrcp.pop %v1034
    %v1036 = vmul.f32 %v1034, %v1035
    %v1037 = vsub.f32 1.0, %v1036
    %v1038 = vmul.f32 %v1035, %v1037
    %v1039 = vadd.f32 %v1035, %v1038
    %vm1040 = vweird.f32 %v1034
    %vm1041 = vweird.f32 %v1035
    %vm1042 = vmor %vm1040, %vm1041
    %v1043 = vsel %vm1042, %v1035, %v1039
    %v1044 = vand.u32 2147483647, %v1034
    %vm1045 = vcmp.eq.f32.partialorder %v1044, 8.507059e+37
    %v1046 = vand.u32 %v1034, 2147483648
    %v1047 = vor.u32 1.1754944e-38, %v1046
    %v1048 = vsel %vm1045, %v1047, %v1043
    %v1049 = vmul.f32 %v1024, %v1048
    %v1050 = vmin.f32 %v1049, 1.0
    %v1051 = vmax.f32 %v1050, -1.0
    %v1052 = vmul.f32 %v442, %v442
    %v1053 = vmin.f32 16.0, %v1052
    %v1054 = vmul.f32 %v1053, 2.1237322e-06
    %v1055 = vadd.f32 %v1054, 0.00028619796
    %v1056 = vmul.f32 %v1053, %v1055
    %v1057 = vadd.f32 %v1056, 0.0036580483
    %v1058 = vmul.f32 %v1053, %v1057
    %v1059 = vadd.f32 %v1058, 0.05243302
    %v1060 = vmul.f32 %v1053, %v1059
    %v1061 = vadd.f32 %v1060, 0.18741608
    %v1062 = vmul.f32 %v1053, %v1061
    %v1063 = vadd.f32 %v1062, 1.1283791
    %v1064 = vmul.f32 %v442, %v1063
    %v1065 = vmul.f32 %v1053, 3.8918573e-05
    %v1066 = vadd.f32 %v1065, 0.001143296
    %v1067 = vmul.f32 %v1053, %v1066
    %v1068 = vadd.f32 %v1067, 0.014752088
    %v1069 = vmul.f32 %v1053, %v1068
    %v1070 = vadd.f32 %v1069, 0.112945676
    %v1071 = vmul.f32 %v1053, %v1070
    %v1072 = vadd.f32 %v1071, 0.4994258
    %v1073 = vmul.f32 %v1053, %v1072
    %v1074 = vadd.f32 %v1073, 1.0
    %v1075 = vrcp.pop %v1074
    %v1076 = vmul.f32 %v1074, %v1075
    %v1077 = vsub.f32 1.0, %v1076
    %v1078 = vmul.f32 %v1075, %v1077
    %v1079 = vadd.f32 %v1075, %v1078
    %vm1080 = vweird.f32 %v1074
    %vm1081 = vweird.f32 %v1075
    %vm1082 = vmor %vm1080, %vm1081
    %v1083 = vsel %vm1082, %v1075, %v1079
    %v1084 = vand.u32 2147483647, %v1074
    %vm1085 = vcmp.eq.f32.partialorder %v1084, 8.507059e+37
    %v1086 = vand.u32 %v1074, 2147483648
    %v1087 = vor.u32 1.1754944e-38, %v1086
    %v1088 = vsel %vm1085, %v1087, %v1083
    %v1089 = vmul.f32 %v1064, %v1088
    %v1090 = vmin.f32 %v1089, 1.0
    %v1091 = vmax.f32 %v1090, -1.0
    %v1092 = vmul.f32 %v443, %v443
    %v1093 = vmin.f32 16.0, %v1092
    %v1094 = vmul.f32 %v1093, 2.1237322e-06
    %v1095 = vadd.f32 %v1094, 0.00028619796
    %v1096 = vmul.f32 %v1093, %v1095
    %v1097 = vadd.f32 %v1096, 0.0036580483
    %v1098 = vmul.f32 %v1093, %v1097
    %v1099 = vadd.f32 %v1098, 0.05243302
    %v1100 = vmul.f32 %v1093, %v1099
    %v1101 = vadd.f32 %v1100, 0.18741608
    %v1102 = vmul.f32 %v1093, %v1101
    %v1103 = vadd.f32 %v1102, 1.1283791
    %v1104 = vmul.f32 %v443, %v1103
    %v1105 = vmul.f32 %v1093, 3.8918573e-05
    %v1106 = vadd.f32 %v1105, 0.001143296
    %v1107 = vmul.f32 %v1093, %v1106
    %v1108 = vadd.f32 %v1107, 0.014752088
    %v1109 = vmul.f32 %v1093, %v1108
    %v1110 = vadd.f32 %v1109, 0.112945676
    %v1111 = vmul.f32 %v1093, %v1110
    %v1112 = vadd.f32 %v1111, 0.4994258
    %v1113 = vmul.f32 %v1093, %v1112
    %v1114 = vadd.f32 %v1113, 1.0
    %v1115 = vrcp.pop %v1114
    %v1116 = vmul.f32 %v1114, %v1115
    %v1117 = vsub.f32 1.0, %v1116
    %v1118 = vmul.f32 %v1115, %v1117
    %v1119 = vadd.f32 %v1115, %v1118
    %vm1120 = vweird.f32 %v1114
    %vm1121 = vweird.f32 %v1115
    %vm1122 = vmor %vm1120, %vm1121
    %v1123 = vsel %vm1122, %v1115, %v1119
    %v1124 = vand.u32 2147483647, %v1114
    %vm1125 = vcmp.eq.f32.partialorder %v1124, 8.507059e+37
    %v1126 = vand.u32 %v1114, 2147483648
    %v1127 = vor.u32 1.1754944e-38, %v1126
    %v1128 = vsel %vm1125, %v1127, %v1123
    %v1129 = vmul.f32 %v1104, %v1128
    %v1130 = vmin.f32 %v1129, 1.0
    %v1131 = vmax.f32 %v1130, -1.0
    %v1132 = vmul.f32 %v444, %v444
    %v1133 = vmin.f32 16.0, %v1132
    %v1134 = vmul.f32 %v1133, 2.1237322e-06
    %v1135 = vadd.f32 %v1134, 0.00028619796
    %v1136 = vmul.f32 %v1133, %v1135
    %v1137 = vadd.f32 %v1136, 0.0036580483
    %v1138 = vmul.f32 %v1133, %v1137
    %v1139 = vadd.f32 %v1138, 0.05243302
    %v1140 = vmul.f32 %v1133, %v1139
    %v1141 = vadd.f32 %v1140, 0.18741608
    %v1142 = vmul.f32 %v1133, %v1141
    %v1143 = vadd.f32 %v1142, 1.1283791
    %v1144 = vmul.f32 %v444, %v1143
    %v1145 = vmul.f32 %v1133, 3.8918573e-05
    %v1146 = vadd.f32 %v1145, 0.001143296
    %v1147 = vmul.f32 %v1133, %v1146
    %v1148 = vadd.f32 %v1147, 0.014752088
    %v1149 = vmul.f32 %v1133, %v1148
    %v1150 = vadd.f32 %v1149, 0.112945676
    %v1151 = vmul.f32 %v1133, %v1150
    %v1152 = vadd.f32 %v1151, 0.4994258
    %v1153 = vmul.f32 %v1133, %v1152
    %v1154 = vadd.f32 %v1153, 1.0
    %v1155 = vrcp.pop %v1154
    %v1156 = vmul.f32 %v1154, %v1155
    %v1157 = vsub.f32 1.0, %v1156
    %v1158 = vmul.f32 %v1155, %v1157
    %v1159 = vadd.f32 %v1155, %v1158
    %vm1160 = vweird.f32 %v1154
    %vm1161 = vweird.f32 %v1155
    %vm1162 = vmor %vm1160, %vm1161
    %v1163 = vsel %vm1162, %v1155, %v1159
    %v1164 = vand.u32 2147483647, %v1154
    %vm1165 = vcmp.eq.f32.partialorder %v1164, 8.507059e+37
    %v1166 = vand.u32 %v1154, 2147483648
    %v1167 = vor.u32 1.1754944e-38, %v1166
    %v1168 = vsel %vm1165, %v1167, %v1163
    %v1169 = vmul.f32 %v1144, %v1168
    %v1170 = vmin.f32 %v1169, 1.0
    %v1171 = vmax.f32 %v1170, -1.0
    %v1172 = vmul.f32 %v445, %v445
    %v1173 = vmin.f32 16.0, %v1172
    %v1174 = vmul.f32 %v1173, 2.1237322e-06
    %v1175 = vadd.f32 %v1174, 0.00028619796
    %v1176 = vmul.f32 %v1173, %v1175
    %v1177 = vadd.f32 %v1176, 0.0036580483
    %v1178 = vmul.f32 %v1173, %v1177
    %v1179 = vadd.f32 %v1178, 0.05243302
    %v1180 = vmul.f32 %v1173, %v1179
    %v1181 = vadd.f32 %v1180, 0.18741608
    %v1182 = vmul.f32 %v1173, %v1181
    %v1183 = vadd.f32 %v1182, 1.1283791
    %v1184 = vmul.f32 %v445, %v1183
    %v1185 = vmul.f32 %v1173, 3.8918573e-05
    %v1186 = vadd.f32 %v1185, 0.001143296
    %v1187 = vmul.f32 %v1173, %v1186
    %v1188 = vadd.f32 %v1187, 0.014752088
    %v1189 = vmul.f32 %v1173, %v1188
    %v1190 = vadd.f32 %v1189, 0.112945676
    %v1191 = vmul.f32 %v1173, %v1190
    %v1192 = vadd.f32 %v1191, 0.4994258
    %v1193 = vmul.f32 %v1173, %v1192
    %v1194 = vadd.f32 %v1193, 1.0
    %v1195 = vrcp.pop %v1194
    %v1196 = vmul.f32 %v1194, %v1195
    %v1197 = vsub.f32 1.0, %v1196
    %v1198 = vmul.f32 %v1195, %v1197
    %v1199 = vadd.f32 %v1195, %v1198
    %vm1200 = vweird.f32 %v1194
    %vm1201 = vweird.f32 %v1195
    %vm1202 = vmor %vm1200, %vm1201
    %v1203 = vsel %vm1202, %v1195, %v1199
    %v1204 = vand.u32 2147483647, %v1194
    %vm1205 = vcmp.eq.f32.partialorder %v1204, 8.507059e+37
    %v1206 = vand.u32 %v1194, 2147483648
    %v1207 = vor.u32 1.1754944e-38, %v1206
    %v1208 = vsel %vm1205, %v1207, %v1203
    %v1209 = vmul.f32 %v1184, %v1208
    %v1210 = vmin.f32 %v1209, 1.0
    %v1211 = vmax.f32 %v1210, -1.0
    %v1212 = vmul.f32 %v446, %v446
    %v1213 = vmin.f32 16.0, %v1212
    %v1214 = vmul.f32 %v1213, 2.1237322e-06
    %v1215 = vadd.f32 %v1214, 0.00028619796
    %v1216 = vmul.f32 %v1213, %v1215
    %v1217 = vadd.f32 %v1216, 0.0036580483
    %v1218 = vmul.f32 %v1213, %v1217
    %v1219 = vadd.f32 %v1218, 0.05243302
    %v1220 = vmul.f32 %v1213, %v1219
    %v1221 = vadd.f32 %v1220, 0.18741608
    %v1222 = vmul.f32 %v1213, %v1221
    %v1223 = vadd.f32 %v1222, 1.1283791
    %v1224 = vmul.f32 %v446, %v1223
    %v1225 = vmul.f32 %v1213, 3.8918573e-05
    %v1226 = vadd.f32 %v1225, 0.001143296
    %v1227 = vmul.f32 %v1213, %v1226
    %v1228 = vadd.f32 %v1227, 0.014752088
    %v1229 = vmul.f32 %v1213, %v1228
    %v1230 = vadd.f32 %v1229, 0.112945676
    %v1231 = vmul.f32 %v1213, %v1230
    %v1232 = vadd.f32 %v1231, 0.4994258
    %v1233 = vmul.f32 %v1213, %v1232
    %v1234 = vadd.f32 %v1233, 1.0
    %v1235 = vrcp.pop %v1234
    %v1236 = vmul.f32 %v1234, %v1235
    %v1237 = vsub.f32 1.0, %v1236
    %v1238 = vmul.f32 %v1235, %v1237
    %v1239 = vadd.f32 %v1235, %v1238
    %vm1240 = vweird.f32 %v1234
    %vm1241 = vweird.f32 %v1235
    %vm1242 = vmor %vm1240, %vm1241
    %v1243 = vsel %vm1242, %v1235, %v1239
    %v1244 = vand.u32 2147483647, %v1234
    %vm1245 = vcmp.eq.f32.partialorder %v1244, 8.507059e+37
    %v1246 = vand.u32 %v1234, 2147483648
    %v1247 = vor.u32 1.1754944e-38, %v1246
    %v1248 = vsel %vm1245, %v1247, %v1243
    %v1249 = vmul.f32 %v1224, %v1248
    %v1250 = vmin.f32 %v1249, 1.0
    %v1251 = vmax.f32 %v1250, -1.0
    %v1252 = vmul.f32 %v447, %v447
    %v1253 = vmin.f32 16.0, %v1252
    %v1254 = vmul.f32 %v1253, 2.1237322e-06
    %v1255 = vadd.f32 %v1254, 0.00028619796
    %v1256 = vmul.f32 %v1253, %v1255
    %v1257 = vadd.f32 %v1256, 0.0036580483
    %v1258 = vmul.f32 %v1253, %v1257
    %v1259 = vadd.f32 %v1258, 0.05243302
    %v1260 = vmul.f32 %v1253, %v1259
    %v1261 = vadd.f32 %v1260, 0.18741608
    %v1262 = vmul.f32 %v1253, %v1261
    %v1263 = vadd.f32 %v1262, 1.1283791
    %v1264 = vmul.f32 %v447, %v1263
    %v1265 = vmul.f32 %v1253, 3.8918573e-05
    %v1266 = vadd.f32 %v1265, 0.001143296
    %v1267 = vmul.f32 %v1253, %v1266
    %v1268 = vadd.f32 %v1267, 0.014752088
    %v1269 = vmul.f32 %v1253, %v1268
    %v1270 = vadd.f32 %v1269, 0.112945676
    %v1271 = vmul.f32 %v1253, %v1270
    %v1272 = vadd.f32 %v1271, 0.4994258
    %v1273 = vmul.f32 %v1253, %v1272
    %v1274 = vadd.f32 %v1273, 1.0
    %v1275 = vrcp.pop %v1274
    %v1276 = vmul.f32 %v1274, %v1275
    %v1277 = vsub.f32 1.0, %v1276
    %v1278 = vmul.f32 %v1275, %v1277
    %v1279 = vadd.f32 %v1275, %v1278
    %vm1280 = vweird.f32 %v1274
    %vm1281 = vweird.f32 %v1275
    %vm1282 = vmor %vm1280, %vm1281
    %v1283 = vsel %vm1282, %v1275, %v1279
    %v1284 = vand.u32 2147483647, %v1274
    %vm1285 = vcmp.eq.f32.partialorder %v1284, 8.507059e+37
    %v1286 = vand.u32 %v1274, 2147483648
    %v1287 = vor.u32 1.1754944e-38, %v1286
    %v1288 = vsel %vm1285, %v1287, %v1283
    %v1289 = vmul.f32 %v1264, %v1288
    %v1290 = vmin.f32 %v1289, 1.0
    %v1291 = vmax.f32 %v1290, -1.0
    %v1292 = vmul.f32 %v448, %v448
    %v1293 = vmin.f32 16.0, %v1292
    %v1294 = vmul.f32 %v1293, 2.1237322e-06
    %v1295 = vadd.f32 %v1294, 0.00028619796
    %v1296 = vmul.f32 %v1293, %v1295
    %v1297 = vadd.f32 %v1296, 0.0036580483
    %v1298 = vmul.f32 %v1293, %v1297
    %v1299 = vadd.f32 %v1298, 0.05243302
    %v1300 = vmul.f32 %v1293, %v1299
    %v1301 = vadd.f32 %v1300, 0.18741608
    %v1302 = vmul.f32 %v1293, %v1301
    %v1303 = vadd.f32 %v1302, 1.1283791
    %v1304 = vmul.f32 %v448, %v1303
    %v1305 = vmul.f32 %v1293, 3.8918573e-05
    %v1306 = vadd.f32 %v1305, 0.001143296
    %v1307 = vmul.f32 %v1293, %v1306
    %v1308 = vadd.f32 %v1307, 0.014752088
    %v1309 = vmul.f32 %v1293, %v1308
    %v1310 = vadd.f32 %v1309, 0.112945676
    %v1311 = vmul.f32 %v1293, %v1310
    %v1312 = vadd.f32 %v1311, 0.4994258
    %v1313 = vmul.f32 %v1293, %v1312
    %v1314 = vadd.f32 %v1313, 1.0
    %v1315 = vrcp.pop %v1314
    %v1316 = vmul.f32 %v1314, %v1315
    %v1317 = vsub.f32 1.0, %v1316
    %v1318 = vmul.f32 %v1315, %v1317
    %v1319 = vadd.f32 %v1315, %v1318
    %vm1320 = vweird.f32 %v1314
    %vm1321 = vweird.f32 %v1315
    %vm1322 = vmor %vm1320, %vm1321
    %v1323 = vsel %vm1322, %v1315, %v1319
    %v1324 = vand.u32 2147483647, %v1314
    %vm1325 = vcmp.eq.f32.partialorder %v1324, 8.507059e+37
    %v1326 = vand.u32 %v1314, 2147483648
    %v1327 = vor.u32 1.1754944e-38, %v1326
    %v1328 = vsel %vm1325, %v1327, %v1323
    %v1329 = vmul.f32 %v1304, %v1328
    %v1330 = vmin.f32 %v1329, 1.0
    %v1331 = vmax.f32 %v1330, -1.0
    %v1332 = vmul.f32 %v449, %v449
    %v1333 = vmin.f32 16.0, %v1332
    %v1334 = vmul.f32 %v1333, 2.1237322e-06
    %v1335 = vadd.f32 %v1334, 0.00028619796
    %v1336 = vmul.f32 %v1333, %v1335
    %v1337 = vadd.f32 %v1336, 0.0036580483
    %v1338 = vmul.f32 %v1333, %v1337
    %v1339 = vadd.f32 %v1338, 0.05243302
    %v1340 = vmul.f32 %v1333, %v1339
    %v1341 = vadd.f32 %v1340, 0.18741608
    %v1342 = vmul.f32 %v1333, %v1341
    %v1343 = vadd.f32 %v1342, 1.1283791
    %v1344 = vmul.f32 %v449, %v1343
    %v1345 = vmul.f32 %v1333, 3.8918573e-05
    %v1346 = vadd.f32 %v1345, 0.001143296
    %v1347 = vmul.f32 %v1333, %v1346
    %v1348 = vadd.f32 %v1347, 0.014752088
    %v1349 = vmul.f32 %v1333, %v1348
    %v1350 = vadd.f32 %v1349, 0.112945676
    %v1351 = vmul.f32 %v1333, %v1350
    %v1352 = vadd.f32 %v1351, 0.4994258
    %v1353 = vmul.f32 %v1333, %v1352
    %v1354 = vadd.f32 %v1353, 1.0
    %v1355 = vrcp.pop %v1354
    %v1356 = vmul.f32 %v1354, %v1355
    %v1357 = vsub.f32 1.0, %v1356
    %v1358 = vmul.f32 %v1355, %v1357
    %v1359 = vadd.f32 %v1355, %v1358
    %vm1360 = vweird.f32 %v1354
    %vm1361 = vweird.f32 %v1355
    %vm1362 = vmor %vm1360, %vm1361
    %v1363 = vsel %vm1362, %v1355, %v1359
    %v1364 = vand.u32 2147483647, %v1354
    %vm1365 = vcmp.eq.f32.partialorder %v1364, 8.507059e+37
    %v1366 = vand.u32 %v1354, 2147483648
    %v1367 = vor.u32 1.1754944e-38, %v1366
    %v1368 = vsel %vm1365, %v1367, %v1363
    %v1369 = vmul.f32 %v1344, %v1368
    %v1370 = vmin.f32 %v1369, 1.0
    %v1371 = vmax.f32 %v1370, -1.0
    %v1372 = vmul.f32 %v450, %v450
    %v1373 = vmin.f32 16.0, %v1372
    %v1374 = vmul.f32 %v1373, 2.1237322e-06
    %v1375 = vadd.f32 %v1374, 0.00028619796
    %v1376 = vmul.f32 %v1373, %v1375
    %v1377 = vadd.f32 %v1376, 0.0036580483
    %v1378 = vmul.f32 %v1373, %v1377
    %v1379 = vadd.f32 %v1378, 0.05243302
    %v1380 = vmul.f32 %v1373, %v1379
    %v1381 = vadd.f32 %v1380, 0.18741608
    %v1382 = vmul.f32 %v1373, %v1381
    %v1383 = vadd.f32 %v1382, 1.1283791
    %v1384 = vmul.f32 %v450, %v1383
    %v1385 = vmul.f32 %v1373, 3.8918573e-05
    %v1386 = vadd.f32 %v1385, 0.001143296
    %v1387 = vmul.f32 %v1373, %v1386
    %v1388 = vadd.f32 %v1387, 0.014752088
    %v1389 = vmul.f32 %v1373, %v1388
    %v1390 = vadd.f32 %v1389, 0.112945676
    %v1391 = vmul.f32 %v1373, %v1390
    %v1392 = vadd.f32 %v1391, 0.4994258
    %v1393 = vmul.f32 %v1373, %v1392
    %v1394 = vadd.f32 %v1393, 1.0
    %v1395 = vrcp.pop %v1394
    %v1396 = vmul.f32 %v1394, %v1395
    %v1397 = vsub.f32 1.0, %v1396
    %v1398 = vmul.f32 %v1395, %v1397
    %v1399 = vadd.f32 %v1395, %v1398
    %vm1400 = vweird.f32 %v1394
    %vm1401 = vweird.f32 %v1395
    %vm1402 = vmor %vm1400, %vm1401
    %v1403 = vsel %vm1402, %v1395, %v1399
    %v1404 = vand.u32 2147483647, %v1394
    %vm1405 = vcmp.eq.f32.partialorder %v1404, 8.507059e+37
    %v1406 = vand.u32 %v1394, 2147483648
    %v1407 = vor.u32 1.1754944e-38, %v1406
    %v1408 = vsel %vm1405, %v1407, %v1403
    %v1409 = vmul.f32 %v1384, %v1408
    %v1410 = vmin.f32 %v1409, 1.0
    %v1411 = vmax.f32 %v1410, -1.0
    %v1412 = vmul.f32 %v451, %v451
    %v1413 = vmin.f32 16.0, %v1412
    %v1414 = vmul.f32 %v1413, 2.1237322e-06
    %v1415 = vadd.f32 %v1414, 0.00028619796
    %v1416 = vmul.f32 %v1413, %v1415
    %v1417 = vadd.f32 %v1416, 0.0036580483
    %v1418 = vmul.f32 %v1413, %v1417
    %v1419 = vadd.f32 %v1418, 0.05243302
    %v1420 = vmul.f32 %v1413, %v1419
    %v1421 = vadd.f32 %v1420, 0.18741608
    %v1422 = vmul.f32 %v1413, %v1421
    %v1423 = vadd.f32 %v1422, 1.1283791
    %v1424 = vmul.f32 %v451, %v1423
    %v1425 = vmul.f32 %v1413, 3.8918573e-05
    %v1426 = vadd.f32 %v1425, 0.001143296
    %v1427 = vmul.f32 %v1413, %v1426
    %v1428 = vadd.f32 %v1427, 0.014752088
    %v1429 = vmul.f32 %v1413, %v1428
    %v1430 = vadd.f32 %v1429, 0.112945676
    %v1431 = vmul.f32 %v1413, %v1430
    %v1432 = vadd.f32 %v1431, 0.4994258
    %v1433 = vmul.f32 %v1413, %v1432
    %v1434 = vadd.f32 %v1433, 1.0
    %v1435 = vrcp.pop %v1434
    %v1436 = vmul.f32 %v1434, %v1435
    %v1437 = vsub.f32 1.0, %v1436
    %v1438 = vmul.f32 %v1435, %v1437
    %v1439 = vadd.f32 %v1435, %v1438
    %vm1440 = vweird.f32 %v1434
    %vm1441 = vweird.f32 %v1435
    %vm1442 = vmor %vm1440, %vm1441
    %v1443 = vsel %vm1442, %v1435, %v1439
    %v1444 = vand.u32 2147483647, %v1434
    %vm1445 = vcmp.eq.f32.partialorder %v1444, 8.507059e+37
    %v1446 = vand.u32 %v1434, 2147483648
    %v1447 = vor.u32 1.1754944e-38, %v1446
    %v1448 = vsel %vm1445, %v1447, %v1443
    %v1449 = vmul.f32 %v1424, %v1448
    %v1450 = vmin.f32 %v1449, 1.0
    %v1451 = vmax.f32 %v1450, -1.0
    %v1452 = vmul.f32 %v452, %v452
    %v1453 = vmin.f32 16.0, %v1452
    %v1454 = vmul.f32 %v1453, 2.1237322e-06
    %v1455 = vadd.f32 %v1454, 0.00028619796
    %v1456 = vmul.f32 %v1453, %v1455
    %v1457 = vadd.f32 %v1456, 0.0036580483
    %v1458 = vmul.f32 %v1453, %v1457
    %v1459 = vadd.f32 %v1458, 0.05243302
    %v1460 = vmul.f32 %v1453, %v1459
    %v1461 = vadd.f32 %v1460, 0.18741608
    %v1462 = vmul.f32 %v1453, %v1461
    %v1463 = vadd.f32 %v1462, 1.1283791
    %v1464 = vmul.f32 %v452, %v1463
    %v1465 = vmul.f32 %v1453, 3.8918573e-05
    %v1466 = vadd.f32 %v1465, 0.001143296
    %v1467 = vmul.f32 %v1453, %v1466
    %v1468 = vadd.f32 %v1467, 0.014752088
    %v1469 = vmul.f32 %v1453, %v1468
    %v1470 = vadd.f32 %v1469, 0.112945676
    %v1471 = vmul.f32 %v1453, %v1470
    %v1472 = vadd.f32 %v1471, 0.4994258
    %v1473 = vmul.f32 %v1453, %v1472
    %v1474 = vadd.f32 %v1473, 1.0
    %v1475 = vrcp.pop %v1474
    %v1476 = vmul.f32 %v1474, %v1475
    %v1477 = vsub.f32 1.0, %v1476
    %v1478 = vmul.f32 %v1475, %v1477
    %v1479 = vadd.f32 %v1475, %v1478
    %vm1480 = vweird.f32 %v1474
    %vm1481 = vweird.f32 %v1475
    %vm1482 = vmor %vm1480, %vm1481
    %v1483 = vsel %vm1482, %v1475, %v1479
    %v1484 = vand.u32 2147483647, %v1474
    %vm1485 = vcmp.eq.f32.partialorder %v1484, 8.507059e+37
    %v1486 = vand.u32 %v1474, 2147483648
    %v1487 = vor.u32 1.1754944e-38, %v1486
    %v1488 = vsel %vm1485, %v1487, %v1483
    %v1489 = vmul.f32 %v1464, %v1488
    %v1490 = vmin.f32 %v1489, 1.0
    %v1491 = vmax.f32 %v1490, -1.0
    %v1492 = vmul.f32 %v453, %v453
    %v1493 = vmin.f32 16.0, %v1492
    %v1494 = vmul.f32 %v1493, 2.1237322e-06
    %v1495 = vadd.f32 %v1494, 0.00028619796
    %v1496 = vmul.f32 %v1493, %v1495
    %v1497 = vadd.f32 %v1496, 0.0036580483
    %v1498 = vmul.f32 %v1493, %v1497
    %v1499 = vadd.f32 %v1498, 0.05243302
    %v1500 = vmul.f32 %v1493, %v1499
    %v1501 = vadd.f32 %v1500, 0.18741608
    %v1502 = vmul.f32 %v1493, %v1501
    %v1503 = vadd.f32 %v1502, 1.1283791
    %v1504 = vmul.f32 %v453, %v1503
    %v1505 = vmul.f32 %v1493, 3.8918573e-05
    %v1506 = vadd.f32 %v1505, 0.001143296
    %v1507 = vmul.f32 %v1493, %v1506
    %v1508 = vadd.f32 %v1507, 0.014752088
    %v1509 = vmul.f32 %v1493, %v1508
    %v1510 = vadd.f32 %v1509, 0.112945676
    %v1511 = vmul.f32 %v1493, %v1510
    %v1512 = vadd.f32 %v1511, 0.4994258
    %v1513 = vmul.f32 %v1493, %v1512
    %v1514 = vadd.f32 %v1513, 1.0
    %v1515 = vrcp.pop %v1514
    %v1516 = vmul.f32 %v1514, %v1515
    %v1517 = vsub.f32 1.0, %v1516
    %v1518 = vmul.f32 %v1515, %v1517
    %v1519 = vadd.f32 %v1515, %v1518
    %vm1520 = vweird.f32 %v1514
    %vm1521 = vweird.f32 %v1515
    %vm1522 = vmor %vm1520, %vm1521
    %v1523 = vsel %vm1522, %v1515, %v1519
    %v1524 = vand.u32 2147483647, %v1514
    %vm1525 = vcmp.eq.f32.partialorder %v1524, 8.507059e+37
    %v1526 = vand.u32 %v1514, 2147483648
    %v1527 = vor.u32 1.1754944e-38, %v1526
    %v1528 = vsel %vm1525, %v1527, %v1523
    %v1529 = vmul.f32 %v1504, %v1528
    %v1530 = vmin.f32 %v1529, 1.0
    %v1531 = vmax.f32 %v1530, -1.0
    %v1532 = vmul.f32 %v454, %v454
    %v1533 = vmin.f32 16.0, %v1532
    %v1534 = vmul.f32 %v1533, 2.1237322e-06
    %v1535 = vadd.f32 %v1534, 0.00028619796
    %v1536 = vmul.f32 %v1533, %v1535
    %v1537 = vadd.f32 %v1536, 0.0036580483
    %v1538 = vmul.f32 %v1533, %v1537
    %v1539 = vadd.f32 %v1538, 0.05243302
    %v1540 = vmul.f32 %v1533, %v1539
    %v1541 = vadd.f32 %v1540, 0.18741608
    %v1542 = vmul.f32 %v1533, %v1541
    %v1543 = vadd.f32 %v1542, 1.1283791
    %v1544 = vmul.f32 %v454, %v1543
    %v1545 = vmul.f32 %v1533, 3.8918573e-05
    %v1546 = vadd.f32 %v1545, 0.001143296
    %v1547 = vmul.f32 %v1533, %v1546
    %v1548 = vadd.f32 %v1547, 0.014752088
    %v1549 = vmul.f32 %v1533, %v1548
    %v1550 = vadd.f32 %v1549, 0.112945676
    %v1551 = vmul.f32 %v1533, %v1550
    %v1552 = vadd.f32 %v1551, 0.4994258
    %v1553 = vmul.f32 %v1533, %v1552
    %v1554 = vadd.f32 %v1553, 1.0
    %v1555 = vrcp.pop %v1554
    %v1556 = vmul.f32 %v1554, %v1555
    %v1557 = vsub.f32 1.0, %v1556
    %v1558 = vmul.f32 %v1555, %v1557
    %v1559 = vadd.f32 %v1555, %v1558
    %vm1560 = vweird.f32 %v1554
    %vm1561 = vweird.f32 %v1555
    %vm1562 = vmor %vm1560, %vm1561
    %v1563 = vsel %vm1562, %v1555, %v1559
    %v1564 = vand.u32 2147483647, %v1554
    %vm1565 = vcmp.eq.f32.partialorder %v1564, 8.507059e+37
    %v1566 = vand.u32 %v1554, 2147483648
    %v1567 = vor.u32 1.1754944e-38, %v1566
    %v1568 = vsel %vm1565, %v1567, %v1563
    %v1569 = vmul.f32 %v1544, %v1568
    %v1570 = vmin.f32 %v1569, 1.0
    %v1571 = vmax.f32 %v1570, -1.0
    %v1572 = vmul.f32 %v455, %v455
    %v1573 = vmin.f32 16.0, %v1572
    %v1574 = vmul.f32 %v1573, 2.1237322e-06
    %v1575 = vadd.f32 %v1574, 0.00028619796
    %v1576 = vmul.f32 %v1573, %v1575
    %v1577 = vadd.f32 %v1576, 0.0036580483
    %v1578 = vmul.f32 %v1573, %v1577
    %v1579 = vadd.f32 %v1578, 0.05243302
    %v1580 = vmul.f32 %v1573, %v1579
    %v1581 = vadd.f32 %v1580, 0.18741608
    %v1582 = vmul.f32 %v1573, %v1581
    %v1583 = vadd.f32 %v1582, 1.1283791
    %v1584 = vmul.f32 %v455, %v1583
    %v1585 = vmul.f32 %v1573, 3.8918573e-05
    %v1586 = vadd.f32 %v1585, 0.001143296
    %v1587 = vmul.f32 %v1573, %v1586
    %v1588 = vadd.f32 %v1587, 0.014752088
    %v1589 = vmul.f32 %v1573, %v1588
    %v1590 = vadd.f32 %v1589, 0.112945676
    %v1591 = vmul.f32 %v1573, %v1590
    %v1592 = vadd.f32 %v1591, 0.4994258
    %v1593 = vmul.f32 %v1573, %v1592
    %v1594 = vadd.f32 %v1593, 1.0
    %v1595 = vrcp.pop %v1594
    %v1596 = vmul.f32 %v1594, %v1595
    %v1597 = vsub.f32 1.0, %v1596
    %v1598 = vmul.f32 %v1595, %v1597
    %v1599 = vadd.f32 %v1595, %v1598
    %vm1600 = vweird.f32 %v1594
    %vm1601 = vweird.f32 %v1595
    %vm1602 = vmor %vm1600, %vm1601
    %v1603 = vsel %vm1602, %v1595, %v1599
    %v1604 = vand.u32 2147483647, %v1594
    %vm1605 = vcmp.eq.f32.partialorder %v1604, 8.507059e+37
    %v1606 = vand.u32 %v1594, 2147483648
    %v1607 = vor.u32 1.1754944e-38, %v1606
    %v1608 = vsel %vm1605, %v1607, %v1603
    %v1609 = vmul.f32 %v1584, %v1608
    %v1610 = vmin.f32 %v1609, 1.0
    %v1611 = vmax.f32 %v1610, -1.0
    %v1612 = vmul.f32 %v456, %v456
    %v1613 = vmin.f32 16.0, %v1612
    %v1614 = vmul.f32 %v1613, 2.1237322e-06
    %v1615 = vadd.f32 %v1614, 0.00028619796
    %v1616 = vmul.f32 %v1613, %v1615
    %v1617 = vadd.f32 %v1616, 0.0036580483
    %v1618 = vmul.f32 %v1613, %v1617
    %v1619 = vadd.f32 %v1618, 0.05243302
    %v1620 = vmul.f32 %v1613, %v1619
    %v1621 = vadd.f32 %v1620, 0.18741608
    %v1622 = vmul.f32 %v1613, %v1621
    %v1623 = vadd.f32 %v1622, 1.1283791
    %v1624 = vmul.f32 %v456, %v1623
    %v1625 = vmul.f32 %v1613, 3.8918573e-05
    %v1626 = vadd.f32 %v1625, 0.001143296
    %v1627 = vmul.f32 %v1613, %v1626
    %v1628 = vadd.f32 %v1627, 0.014752088
    %v1629 = vmul.f32 %v1613, %v1628
    %v1630 = vadd.f32 %v1629, 0.112945676
    %v1631 = vmul.f32 %v1613, %v1630
    %v1632 = vadd.f32 %v1631, 0.4994258
    %v1633 = vmul.f32 %v1613, %v1632
    %v1634 = vadd.f32 %v1633, 1.0
    %v1635 = vrcp.pop %v1634
    %v1636 = vmul.f32 %v1634, %v1635
    %v1637 = vsub.f32 1.0, %v1636
    %v1638 = vmul.f32 %v1635, %v1637
    %v1639 = vadd.f32 %v1635, %v1638
    %vm1640 = vweird.f32 %v1634
    %vm1641 = vweird.f32 %v1635
    %vm1642 = vmor %vm1640, %vm1641
    %v1643 = vsel %vm1642, %v1635, %v1639
    %v1644 = vand.u32 2147483647, %v1634
    %vm1645 = vcmp.eq.f32.partialorder %v1644, 8.507059e+37
    %v1646 = vand.u32 %v1634, 2147483648
    %v1647 = vor.u32 1.1754944e-38, %v1646
    %v1648 = vsel %vm1645, %v1647, %v1643
    %v1649 = vmul.f32 %v1624, %v1648
    %v1650 = vmin.f32 %v1649, 1.0
    %v1651 = vmax.f32 %v1650, -1.0
    %v1652 = vmul.f32 %v457, %v457
    %v1653 = vmin.f32 16.0, %v1652
    %v1654 = vmul.f32 %v1653, 2.1237322e-06
    %v1655 = vadd.f32 %v1654, 0.00028619796
    %v1656 = vmul.f32 %v1653, %v1655
    %v1657 = vadd.f32 %v1656, 0.0036580483
    %v1658 = vmul.f32 %v1653, %v1657
    %v1659 = vadd.f32 %v1658, 0.05243302
    %v1660 = vmul.f32 %v1653, %v1659
    %v1661 = vadd.f32 %v1660, 0.18741608
    %v1662 = vmul.f32 %v1653, %v1661
    %v1663 = vadd.f32 %v1662, 1.1283791
    %v1664 = vmul.f32 %v457, %v1663
    %v1665 = vmul.f32 %v1653, 3.8918573e-05
    %v1666 = vadd.f32 %v1665, 0.001143296
    %v1667 = vmul.f32 %v1653, %v1666
    %v1668 = vadd.f32 %v1667, 0.014752088
    %v1669 = vmul.f32 %v1653, %v1668
    %v1670 = vadd.f32 %v1669, 0.112945676
    %v1671 = vmul.f32 %v1653, %v1670
    %v1672 = vadd.f32 %v1671, 0.4994258
    %v1673 = vmul.f32 %v1653, %v1672
    %v1674 = vadd.f32 %v1673, 1.0
    %v1675 = vrcp.pop %v1674
    %v1676 = vmul.f32 %v1674, %v1675
    %v1677 = vsub.f32 1.0, %v1676
    %v1678 = vmul.f32 %v1675, %v1677
    %v1679 = vadd.f32 %v1675, %v1678
    %vm1680 = vweird.f32 %v1674
    %vm1681 = vweird.f32 %v1675
    %vm1682 = vmor %vm1680, %vm1681
    %v1683 = vsel %vm1682, %v1675, %v1679
    %v1684 = vand.u32 2147483647, %v1674
    %vm1685 = vcmp.eq.f32.partialorder %v1684, 8.507059e+37
    %v1686 = vand.u32 %v1674, 2147483648
    %v1687 = vor.u32 1.1754944e-38, %v1686
    %v1688 = vsel %vm1685, %v1687, %v1683
    %v1689 = vmul.f32 %v1664, %v1688
    %v1690 = vmin.f32 %v1689, 1.0
    %v1691 = vmax.f32 %v1690, -1.0
    %v1692 = vmul.f32 %v458, %v458
    %v1693 = vmin.f32 16.0, %v1692
    %v1694 = vmul.f32 %v1693, 2.1237322e-06
    %v1695 = vadd.f32 %v1694, 0.00028619796
    %v1696 = vmul.f32 %v1693, %v1695
    %v1697 = vadd.f32 %v1696, 0.0036580483
    %v1698 = vmul.f32 %v1693, %v1697
    %v1699 = vadd.f32 %v1698, 0.05243302
    %v1700 = vmul.f32 %v1693, %v1699
    %v1701 = vadd.f32 %v1700, 0.18741608
    %v1702 = vmul.f32 %v1693, %v1701
    %v1703 = vadd.f32 %v1702, 1.1283791
    %v1704 = vmul.f32 %v458, %v1703
    %v1705 = vmul.f32 %v1693, 3.8918573e-05
    %v1706 = vadd.f32 %v1705, 0.001143296
    %v1707 = vmul.f32 %v1693, %v1706
    %v1708 = vadd.f32 %v1707, 0.014752088
    %v1709 = vmul.f32 %v1693, %v1708
    %v1710 = vadd.f32 %v1709, 0.112945676
    %v1711 = vmul.f32 %v1693, %v1710
    %v1712 = vadd.f32 %v1711, 0.4994258
    %v1713 = vmul.f32 %v1693, %v1712
    %v1714 = vadd.f32 %v1713, 1.0
    %v1715 = vrcp.pop %v1714
    %v1716 = vmul.f32 %v1714, %v1715
    %v1717 = vsub.f32 1.0, %v1716
    %v1718 = vmul.f32 %v1715, %v1717
    %v1719 = vadd.f32 %v1715, %v1718
    %vm1720 = vweird.f32 %v1714
    %vm1721 = vweird.f32 %v1715
    %vm1722 = vmor %vm1720, %vm1721
    %v1723 = vsel %vm1722, %v1715, %v1719
    %v1724 = vand.u32 2147483647, %v1714
    %vm1725 = vcmp.eq.f32.partialorder %v1724, 8.507059e+37
    %v1726 = vand.u32 %v1714, 2147483648
    %v1727 = vor.u32 1.1754944e-38, %v1726
    %v1728 = vsel %vm1725, %v1727, %v1723
    %v1729 = vmul.f32 %v1704, %v1728
    %v1730 = vmin.f32 %v1729, 1.0
    %v1731 = vmax.f32 %v1730, -1.0
    %v1732 = vmul.f32 %v459, %v459
    %v1733 = vmin.f32 16.0, %v1732
    %v1734 = vmul.f32 %v1733, 2.1237322e-06
    %v1735 = vadd.f32 %v1734, 0.00028619796
    %v1736 = vmul.f32 %v1733, %v1735
    %v1737 = vadd.f32 %v1736, 0.0036580483
    %v1738 = vmul.f32 %v1733, %v1737
    %v1739 = vadd.f32 %v1738, 0.05243302
    %v1740 = vmul.f32 %v1733, %v1739
    %v1741 = vadd.f32 %v1740, 0.18741608
    %v1742 = vmul.f32 %v1733, %v1741
    %v1743 = vadd.f32 %v1742, 1.1283791
    %v1744 = vmul.f32 %v459, %v1743
    %v1745 = vmul.f32 %v1733, 3.8918573e-05
    %v1746 = vadd.f32 %v1745, 0.001143296
    %v1747 = vmul.f32 %v1733, %v1746
    %v1748 = vadd.f32 %v1747, 0.014752088
    %v1749 = vmul.f32 %v1733, %v1748
    %v1750 = vadd.f32 %v1749, 0.112945676
    %v1751 = vmul.f32 %v1733, %v1750
    %v1752 = vadd.f32 %v1751, 0.4994258
    %v1753 = vmul.f32 %v1733, %v1752
    %v1754 = vadd.f32 %v1753, 1.0
    %v1755 = vrcp.pop %v1754
    %v1756 = vmul.f32 %v1754, %v1755
    %v1757 = vsub.f32 1.0, %v1756
    %v1758 = vmul.f32 %v1755, %v1757
    %v1759 = vadd.f32 %v1755, %v1758
    %vm1760 = vweird.f32 %v1754
    %vm1761 = vweird.f32 %v1755
    %vm1762 = vmor %vm1760, %vm1761
    %v1763 = vsel %vm1762, %v1755, %v1759
    %v1764 = vand.u32 2147483647, %v1754
    %vm1765 = vcmp.eq.f32.partialorder %v1764, 8.507059e+37
    %v1766 = vand.u32 %v1754, 2147483648
    %v1767 = vor.u32 1.1754944e-38, %v1766
    %v1768 = vsel %vm1765, %v1767, %v1763
    %v1769 = vmul.f32 %v1744, %v1768
    %v1770 = vmin.f32 %v1769, 1.0
    %v1771 = vmax.f32 %v1770, -1.0
    %v1772 = vmul.f32 %v460, %v460
    %v1773 = vmin.f32 16.0, %v1772
    %v1774 = vmul.f32 %v1773, 2.1237322e-06
    %v1775 = vadd.f32 %v1774, 0.00028619796
    %v1776 = vmul.f32 %v1773, %v1775
    %v1777 = vadd.f32 %v1776, 0.0036580483
    %v1778 = vmul.f32 %v1773, %v1777
    %v1779 = vadd.f32 %v1778, 0.05243302
    %v1780 = vmul.f32 %v1773, %v1779
    %v1781 = vadd.f32 %v1780, 0.18741608
    %v1782 = vmul.f32 %v1773, %v1781
    %v1783 = vadd.f32 %v1782, 1.1283791
    %v1784 = vmul.f32 %v460, %v1783
    %v1785 = vmul.f32 %v1773, 3.8918573e-05
    %v1786 = vadd.f32 %v1785, 0.001143296
    %v1787 = vmul.f32 %v1773, %v1786
    %v1788 = vadd.f32 %v1787, 0.014752088
    %v1789 = vmul.f32 %v1773, %v1788
    %v1790 = vadd.f32 %v1789, 0.112945676
    %v1791 = vmul.f32 %v1773, %v1790
    %v1792 = vadd.f32 %v1791, 0.4994258
    %v1793 = vmul.f32 %v1773, %v1792
    %v1794 = vadd.f32 %v1793, 1.0
    %v1795 = vrcp.pop %v1794
    %v1796 = vmul.f32 %v1794, %v1795
    %v1797 = vsub.f32 1.0, %v1796
    %v1798 = vmul.f32 %v1795, %v1797
    %v1799 = vadd.f32 %v1795, %v1798
    %vm1800 = vweird.f32 %v1794
    %vm1801 = vweird.f32 %v1795
    %vm1802 = vmor %vm1800, %vm1801
    %v1803 = vsel %vm1802, %v1795, %v1799
    %v1804 = vand.u32 2147483647, %v1794
    %vm1805 = vcmp.eq.f32.partialorder %v1804, 8.507059e+37
    %v1806 = vand.u32 %v1794, 2147483648
    %v1807 = vor.u32 1.1754944e-38, %v1806
    %v1808 = vsel %vm1805, %v1807, %v1803
    %v1809 = vmul.f32 %v1784, %v1808
    %v1810 = vmin.f32 %v1809, 1.0
    %v1811 = vmax.f32 %v1810, -1.0
    %v1812 = vmul.f32 %v461, %v461
    %v1813 = vmin.f32 16.0, %v1812
    %v1814 = vmul.f32 %v1813, 2.1237322e-06
    %v1815 = vadd.f32 %v1814, 0.00028619796
    %v1816 = vmul.f32 %v1813, %v1815
    %v1817 = vadd.f32 %v1816, 0.0036580483
    %v1818 = vmul.f32 %v1813, %v1817
    %v1819 = vadd.f32 %v1818, 0.05243302
    %v1820 = vmul.f32 %v1813, %v1819
    %v1821 = vadd.f32 %v1820, 0.18741608
    %v1822 = vmul.f32 %v1813, %v1821
    %v1823 = vadd.f32 %v1822, 1.1283791
    %v1824 = vmul.f32 %v461, %v1823
    %v1825 = vmul.f32 %v1813, 3.8918573e-05
    %v1826 = vadd.f32 %v1825, 0.001143296
    %v1827 = vmul.f32 %v1813, %v1826
    %v1828 = vadd.f32 %v1827, 0.014752088
    %v1829 = vmul.f32 %v1813, %v1828
    %v1830 = vadd.f32 %v1829, 0.112945676
    %v1831 = vmul.f32 %v1813, %v1830
    %v1832 = vadd.f32 %v1831, 0.4994258
    %v1833 = vmul.f32 %v1813, %v1832
    %v1834 = vadd.f32 %v1833, 1.0
    %v1835 = vrcp.pop %v1834
    %v1836 = vmul.f32 %v1834, %v1835
    %v1837 = vsub.f32 1.0, %v1836
    %v1838 = vmul.f32 %v1835, %v1837
    %v1839 = vadd.f32 %v1835, %v1838
    %vm1840 = vweird.f32 %v1834
    %vm1841 = vweird.f32 %v1835
    %vm1842 = vmor %vm1840, %vm1841
    %v1843 = vsel %vm1842, %v1835, %v1839
    %v1844 = vand.u32 2147483647, %v1834
    %vm1845 = vcmp.eq.f32.partialorder %v1844, 8.507059e+37
    %v1846 = vand.u32 %v1834, 2147483648
    %v1847 = vor.u32 1.1754944e-38, %v1846
    %v1848 = vsel %vm1845, %v1847, %v1843
    %v1849 = vmul.f32 %v1824, %v1848
    %v1850 = vmin.f32 %v1849, 1.0
    %v1851 = vmax.f32 %v1850, -1.0
    %v1852 = vmul.f32 %v462, %v462
    %v1853 = vmin.f32 16.0, %v1852
    %v1854 = vmul.f32 %v1853, 2.1237322e-06
    %v1855 = vadd.f32 %v1854, 0.00028619796
    %v1856 = vmul.f32 %v1853, %v1855
    %v1857 = vadd.f32 %v1856, 0.0036580483
    %v1858 = vmul.f32 %v1853, %v1857
    %v1859 = vadd.f32 %v1858, 0.05243302
    %v1860 = vmul.f32 %v1853, %v1859
    %v1861 = vadd.f32 %v1860, 0.18741608
    %v1862 = vmul.f32 %v1853, %v1861
    %v1863 = vadd.f32 %v1862, 1.1283791
    %v1864 = vmul.f32 %v462, %v1863
    %v1865 = vmul.f32 %v1853, 3.8918573e-05
    %v1866 = vadd.f32 %v1865, 0.001143296
    %v1867 = vmul.f32 %v1853, %v1866
    %v1868 = vadd.f32 %v1867, 0.014752088
    %v1869 = vmul.f32 %v1853, %v1868
    %v1870 = vadd.f32 %v1869, 0.112945676
    %v1871 = vmul.f32 %v1853, %v1870
    %v1872 = vadd.f32 %v1871, 0.4994258
    %v1873 = vmul.f32 %v1853, %v1872
    %v1874 = vadd.f32 %v1873, 1.0
    %v1875 = vrcp.pop %v1874
    %v1876 = vmul.f32 %v1874, %v1875
    %v1877 = vsub.f32 1.0, %v1876
    %v1878 = vmul.f32 %v1875, %v1877
    %v1879 = vadd.f32 %v1875, %v1878
    %vm1880 = vweird.f32 %v1874
    %vm1881 = vweird.f32 %v1875
    %vm1882 = vmor %vm1880, %vm1881
    %v1883 = vsel %vm1882, %v1875, %v1879
    %v1884 = vand.u32 2147483647, %v1874
    %vm1885 = vcmp.eq.f32.partialorder %v1884, 8.507059e+37
    %v1886 = vand.u32 %v1874, 2147483648
    %v1887 = vor.u32 1.1754944e-38, %v1886
    %v1888 = vsel %vm1885, %v1887, %v1883
    %v1889 = vmul.f32 %v1864, %v1888
    %v1890 = vmin.f32 %v1889, 1.0
    %v1891 = vmax.f32 %v1890, -1.0
    %v1892 = vmul.f32 %v463, %v463
    %v1893 = vmin.f32 16.0, %v1892
    %v1894 = vmul.f32 %v1893, 2.1237322e-06
    %v1895 = vadd.f32 %v1894, 0.00028619796
    %v1896 = vmul.f32 %v1893, %v1895
    %v1897 = vadd.f32 %v1896, 0.0036580483
    %v1898 = vmul.f32 %v1893, %v1897
    %v1899 = vadd.f32 %v1898, 0.05243302
    %v1900 = vmul.f32 %v1893, %v1899
    %v1901 = vadd.f32 %v1900, 0.18741608
    %v1902 = vmul.f32 %v1893, %v1901
    %v1903 = vadd.f32 %v1902, 1.1283791
    %v1904 = vmul.f32 %v463, %v1903
    %v1905 = vmul.f32 %v1893, 3.8918573e-05
    %v1906 = vadd.f32 %v1905, 0.001143296
    %v1907 = vmul.f32 %v1893, %v1906
    %v1908 = vadd.f32 %v1907, 0.014752088
    %v1909 = vmul.f32 %v1893, %v1908
    %v1910 = vadd.f32 %v1909, 0.112945676
    %v1911 = vmul.f32 %v1893, %v1910
    %v1912 = vadd.f32 %v1911, 0.4994258
    %v1913 = vmul.f32 %v1893, %v1912
    %v1914 = vadd.f32 %v1913, 1.0
    %v1915 = vrcp.pop %v1914
    %v1916 = vmul.f32 %v1914, %v1915
    %v1917 = vsub.f32 1.0, %v1916
    %v1918 = vmul.f32 %v1915, %v1917
    %v1919 = vadd.f32 %v1915, %v1918
    %vm1920 = vweird.f32 %v1914
    %vm1921 = vweird.f32 %v1915
    %vm1922 = vmor %vm1920, %vm1921
    %v1923 = vsel %vm1922, %v1915, %v1919
    %v1924 = vand.u32 2147483647, %v1914
    %vm1925 = vcmp.eq.f32.partialorder %v1924, 8.507059e+37
    %v1926 = vand.u32 %v1914, 2147483648
    %v1927 = vor.u32 1.1754944e-38, %v1926
    %v1928 = vsel %vm1925, %v1927, %v1923
    %v1929 = vmul.f32 %v1904, %v1928
    %v1930 = vmin.f32 %v1929, 1.0
    %v1931 = vmax.f32 %v1930, -1.0
    %v1932 = vmul.f32 %v464, %v464
    %v1933 = vmin.f32 16.0, %v1932
    %v1934 = vmul.f32 %v1933, 2.1237322e-06
    %v1935 = vadd.f32 %v1934, 0.00028619796
    %v1936 = vmul.f32 %v1933, %v1935
    %v1937 = vadd.f32 %v1936, 0.0036580483
    %v1938 = vmul.f32 %v1933, %v1937
    %v1939 = vadd.f32 %v1938, 0.05243302
    %v1940 = vmul.f32 %v1933, %v1939
    %v1941 = vadd.f32 %v1940, 0.18741608
    %v1942 = vmul.f32 %v1933, %v1941
    %v1943 = vadd.f32 %v1942, 1.1283791
    %v1944 = vmul.f32 %v464, %v1943
    %v1945 = vmul.f32 %v1933, 3.8918573e-05
    %v1946 = vadd.f32 %v1945, 0.001143296
    %v1947 = vmul.f32 %v1933, %v1946
    %v1948 = vadd.f32 %v1947, 0.014752088
    %v1949 = vmul.f32 %v1933, %v1948
    %v1950 = vadd.f32 %v1949, 0.112945676
    %v1951 = vmul.f32 %v1933, %v1950
    %v1952 = vadd.f32 %v1951, 0.4994258
    %v1953 = vmul.f32 %v1933, %v1952
    %v1954 = vadd.f32 %v1953, 1.0
    %v1955 = vrcp.pop %v1954
    %v1956 = vmul.f32 %v1954, %v1955
    %v1957 = vsub.f32 1.0, %v1956
    %v1958 = vmul.f32 %v1955, %v1957
    %v1959 = vadd.f32 %v1955, %v1958
    %vm1960 = vweird.f32 %v1954
    %vm1961 = vweird.f32 %v1955
    %vm1962 = vmor %vm1960, %vm1961
    %v1963 = vsel %vm1962, %v1955, %v1959
    %v1964 = vand.u32 2147483647, %v1954
    %vm1965 = vcmp.eq.f32.partialorder %v1964, 8.507059e+37
    %v1966 = vand.u32 %v1954, 2147483648
    %v1967 = vor.u32 1.1754944e-38, %v1966
    %v1968 = vsel %vm1965, %v1967, %v1963
    %v1969 = vmul.f32 %v1944, %v1968
    %v1970 = vmin.f32 %v1969, 1.0
    %v1971 = vmax.f32 %v1970, -1.0
    %v1972 = vmul.f32 %v465, %v465
    %v1973 = vmin.f32 16.0, %v1972
    %v1974 = vmul.f32 %v1973, 2.1237322e-06
    %v1975 = vadd.f32 %v1974, 0.00028619796
    %v1976 = vmul.f32 %v1973, %v1975
    %v1977 = vadd.f32 %v1976, 0.0036580483
    %v1978 = vmul.f32 %v1973, %v1977
    %v1979 = vadd.f32 %v1978, 0.05243302
    %v1980 = vmul.f32 %v1973, %v1979
    %v1981 = vadd.f32 %v1980, 0.18741608
    %v1982 = vmul.f32 %v1973, %v1981
    %v1983 = vadd.f32 %v1982, 1.1283791
    %v1984 = vmul.f32 %v465, %v1983
    %v1985 = vmul.f32 %v1973, 3.8918573e-05
    %v1986 = vadd.f32 %v1985, 0.001143296
    %v1987 = vmul.f32 %v1973, %v1986
    %v1988 = vadd.f32 %v1987, 0.014752088
    %v1989 = vmul.f32 %v1973, %v1988
    %v1990 = vadd.f32 %v1989, 0.112945676
    %v1991 = vmul.f32 %v1973, %v1990
    %v1992 = vadd.f32 %v1991, 0.4994258
    %v1993 = vmul.f32 %v1973, %v1992
    %v1994 = vadd.f32 %v1993, 1.0
    %v1995 = vrcp.pop %v1994
    %v1996 = vmul.f32 %v1994, %v1995
    %v1997 = vsub.f32 1.0, %v1996
    %v1998 = vmul.f32 %v1995, %v1997
    %v1999 = vadd.f32 %v1995, %v1998
    %vm2000 = vweird.f32 %v1994
    %vm2001 = vweird.f32 %v1995
    %vm2002 = vmor %vm2000, %vm2001
    %v2003 = vsel %vm2002, %v1995, %v1999
    %v2004 = vand.u32 2147483647, %v1994
    %vm2005 = vcmp.eq.f32.partialorder %v2004, 8.507059e+37
    %v2006 = vand.u32 %v1994, 2147483648
    %v2007 = vor.u32 1.1754944e-38, %v2006
    %v2008 = vsel %vm2005, %v2007, %v2003
    %v2009 = vmul.f32 %v1984, %v2008
    %v2010 = vmin.f32 %v2009, 1.0
    %v2011 = vmax.f32 %v2010, -1.0
    %v2012 = vmul.f32 %v466, %v466
    %v2013 = vmin.f32 16.0, %v2012
    %v2014 = vmul.f32 %v2013, 2.1237322e-06
    %v2015 = vadd.f32 %v2014, 0.00028619796
    %v2016 = vmul.f32 %v2013, %v2015
    %v2017 = vadd.f32 %v2016, 0.0036580483
    %v2018 = vmul.f32 %v2013, %v2017
    %v2019 = vadd.f32 %v2018, 0.05243302
    %v2020 = vmul.f32 %v2013, %v2019
    %v2021 = vadd.f32 %v2020, 0.18741608
    %v2022 = vmul.f32 %v2013, %v2021
    %v2023 = vadd.f32 %v2022, 1.1283791
    %v2024 = vmul.f32 %v466, %v2023
    %v2025 = vmul.f32 %v2013, 3.8918573e-05
    %v2026 = vadd.f32 %v2025, 0.001143296
    %v2027 = vmul.f32 %v2013, %v2026
    %v2028 = vadd.f32 %v2027, 0.014752088
    %v2029 = vmul.f32 %v2013, %v2028
    %v2030 = vadd.f32 %v2029, 0.112945676
    %v2031 = vmul.f32 %v2013, %v2030
    %v2032 = vadd.f32 %v2031, 0.4994258
    %v2033 = vmul.f32 %v2013, %v2032
    %v2034 = vadd.f32 %v2033, 1.0
    %v2035 = vrcp.pop %v2034
    %v2036 = vmul.f32 %v2034, %v2035
    %v2037 = vsub.f32 1.0, %v2036
    %v2038 = vmul.f32 %v2035, %v2037
    %v2039 = vadd.f32 %v2035, %v2038
    %vm2040 = vweird.f32 %v2034
    %vm2041 = vweird.f32 %v2035
    %vm2042 = vmor %vm2040, %vm2041
    %v2043 = vsel %vm2042, %v2035, %v2039
    %v2044 = vand.u32 2147483647, %v2034
    %vm2045 = vcmp.eq.f32.partialorder %v2044, 8.507059e+37
    %v2046 = vand.u32 %v2034, 2147483648
    %v2047 = vor.u32 1.1754944e-38, %v2046
    %v2048 = vsel %vm2045, %v2047, %v2043
    %v2049 = vmul.f32 %v2024, %v2048
    %v2050 = vmin.f32 %v2049, 1.0
    %v2051 = vmax.f32 %v2050, -1.0
    %v2052 = vmul.f32 %v467, %v467
    %v2053 = vmin.f32 16.0, %v2052
    %v2054 = vmul.f32 %v2053, 2.1237322e-06
    %v2055 = vadd.f32 %v2054, 0.00028619796
    %v2056 = vmul.f32 %v2053, %v2055
    %v2057 = vadd.f32 %v2056, 0.0036580483
    %v2058 = vmul.f32 %v2053, %v2057
    %v2059 = vadd.f32 %v2058, 0.05243302
    %v2060 = vmul.f32 %v2053, %v2059
    %v2061 = vadd.f32 %v2060, 0.18741608
    %v2062 = vmul.f32 %v2053, %v2061
    %v2063 = vadd.f32 %v2062, 1.1283791
    %v2064 = vmul.f32 %v467, %v2063
    %v2065 = vmul.f32 %v2053, 3.8918573e-05
    %v2066 = vadd.f32 %v2065, 0.001143296
    %v2067 = vmul.f32 %v2053, %v2066
    %v2068 = vadd.f32 %v2067, 0.014752088
    %v2069 = vmul.f32 %v2053, %v2068
    %v2070 = vadd.f32 %v2069, 0.112945676
    %v2071 = vmul.f32 %v2053, %v2070
    %v2072 = vadd.f32 %v2071, 0.4994258
    %v2073 = vmul.f32 %v2053, %v2072
    %v2074 = vadd.f32 %v2073, 1.0
    %v2075 = vrcp.pop %v2074
    %v2076 = vmul.f32 %v2074, %v2075
    %v2077 = vsub.f32 1.0, %v2076
    %v2078 = vmul.f32 %v2075, %v2077
    %v2079 = vadd.f32 %v2075, %v2078
    %vm2080 = vweird.f32 %v2074
    %vm2081 = vweird.f32 %v2075
    %vm2082 = vmor %vm2080, %vm2081
    %v2083 = vsel %vm2082, %v2075, %v2079
    %v2084 = vand.u32 2147483647, %v2074
    %vm2085 = vcmp.eq.f32.partialorder %v2084, 8.507059e+37
    %v2086 = vand.u32 %v2074, 2147483648
    %v2087 = vor.u32 1.1754944e-38, %v2086
    %v2088 = vsel %vm2085, %v2087, %v2083
    %v2089 = vmul.f32 %v2064, %v2088
    %v2090 = vmin.f32 %v2089, 1.0
    %v2091 = vmax.f32 %v2090, -1.0
    %v2092 = vmul.f32 %v468, %v468
    %v2093 = vmin.f32 16.0, %v2092
    %v2094 = vmul.f32 %v2093, 2.1237322e-06
    %v2095 = vadd.f32 %v2094, 0.00028619796
    %v2096 = vmul.f32 %v2093, %v2095
    %v2097 = vadd.f32 %v2096, 0.0036580483
    %v2098 = vmul.f32 %v2093, %v2097
    %v2099 = vadd.f32 %v2098, 0.05243302
    %v2100 = vmul.f32 %v2093, %v2099
    %v2101 = vadd.f32 %v2100, 0.18741608
    %v2102 = vmul.f32 %v2093, %v2101
    %v2103 = vadd.f32 %v2102, 1.1283791
    %v2104 = vmul.f32 %v468, %v2103
    %v2105 = vmul.f32 %v2093, 3.8918573e-05
    %v2106 = vadd.f32 %v2105, 0.001143296
    %v2107 = vmul.f32 %v2093, %v2106
    %v2108 = vadd.f32 %v2107, 0.014752088
    %v2109 = vmul.f32 %v2093, %v2108
    %v2110 = vadd.f32 %v2109, 0.112945676
    %v2111 = vmul.f32 %v2093, %v2110
    %v2112 = vadd.f32 %v2111, 0.4994258
    %v2113 = vmul.f32 %v2093, %v2112
    %v2114 = vadd.f32 %v2113, 1.0
    %v2115 = vrcp.pop %v2114
    %v2116 = vmul.f32 %v2114, %v2115
    %v2117 = vsub.f32 1.0, %v2116
    %v2118 = vmul.f32 %v2115, %v2117
    %v2119 = vadd.f32 %v2115, %v2118
    %vm2120 = vweird.f32 %v2114
    %vm2121 = vweird.f32 %v2115
    %vm2122 = vmor %vm2120, %vm2121
    %v2123 = vsel %vm2122, %v2115, %v2119
    %v2124 = vand.u32 2147483647, %v2114
    %vm2125 = vcmp.eq.f32.partialorder %v2124, 8.507059e+37
    %v2126 = vand.u32 %v2114, 2147483648
    %v2127 = vor.u32 1.1754944e-38, %v2126
    %v2128 = vsel %vm2125, %v2127, %v2123
    %v2129 = vmul.f32 %v2104, %v2128
    %v2130 = vmin.f32 %v2129, 1.0
    %v2131 = vmax.f32 %v2130, -1.0
    %v2132 = vmul.f32 %v469, %v469
    %v2133 = vmin.f32 16.0, %v2132
    %v2134 = vmul.f32 %v2133, 2.1237322e-06
    %v2135 = vadd.f32 %v2134, 0.00028619796
    %v2136 = vmul.f32 %v2133, %v2135
    %v2137 = vadd.f32 %v2136, 0.0036580483
    %v2138 = vmul.f32 %v2133, %v2137
    %v2139 = vadd.f32 %v2138, 0.05243302
    %v2140 = vmul.f32 %v2133, %v2139
    %v2141 = vadd.f32 %v2140, 0.18741608
    %v2142 = vmul.f32 %v2133, %v2141
    %v2143 = vadd.f32 %v2142, 1.1283791
    %v2144 = vmul.f32 %v469, %v2143
    %v2145 = vmul.f32 %v2133, 3.8918573e-05
    %v2146 = vadd.f32 %v2145, 0.001143296
    %v2147 = vmul.f32 %v2133, %v2146
    %v2148 = vadd.f32 %v2147, 0.014752088
    %v2149 = vmul.f32 %v2133, %v2148
    %v2150 = vadd.f32 %v2149, 0.112945676
    %v2151 = vmul.f32 %v2133, %v2150
    %v2152 = vadd.f32 %v2151, 0.4994258
    %v2153 = vmul.f32 %v2133, %v2152
    %v2154 = vadd.f32 %v2153, 1.0
    %v2155 = vrcp.pop %v2154
    %v2156 = vmul.f32 %v2154, %v2155
    %v2157 = vsub.f32 1.0, %v2156
    %v2158 = vmul.f32 %v2155, %v2157
    %v2159 = vadd.f32 %v2155, %v2158
    %vm2160 = vweird.f32 %v2154
    %vm2161 = vweird.f32 %v2155
    %vm2162 = vmor %vm2160, %vm2161
    %v2163 = vsel %vm2162, %v2155, %v2159
    %v2164 = vand.u32 2147483647, %v2154
    %vm2165 = vcmp.eq.f32.partialorder %v2164, 8.507059e+37
    %v2166 = vand.u32 %v2154, 2147483648
    %v2167 = vor.u32 1.1754944e-38, %v2166
    %v2168 = vsel %vm2165, %v2167, %v2163
    %v2169 = vmul.f32 %v2144, %v2168
    %v2170 = vmin.f32 %v2169, 1.0
    %v2171 = vmax.f32 %v2170, -1.0
    %v2172 = vmul.f32 %v470, %v470
    %v2173 = vmin.f32 16.0, %v2172
    %v2174 = vmul.f32 %v2173, 2.1237322e-06
    %v2175 = vadd.f32 %v2174, 0.00028619796
    %v2176 = vmul.f32 %v2173, %v2175
    %v2177 = vadd.f32 %v2176, 0.0036580483
    %v2178 = vmul.f32 %v2173, %v2177
    %v2179 = vadd.f32 %v2178, 0.05243302
    %v2180 = vmul.f32 %v2173, %v2179
    %v2181 = vadd.f32 %v2180, 0.18741608
    %v2182 = vmul.f32 %v2173, %v2181
    %v2183 = vadd.f32 %v2182, 1.1283791
    %v2184 = vmul.f32 %v470, %v2183
    %v2185 = vmul.f32 %v2173, 3.8918573e-05
    %v2186 = vadd.f32 %v2185, 0.001143296
    %v2187 = vmul.f32 %v2173, %v2186
    %v2188 = vadd.f32 %v2187, 0.014752088
    %v2189 = vmul.f32 %v2173, %v2188
    %v2190 = vadd.f32 %v2189, 0.112945676
    %v2191 = vmul.f32 %v2173, %v2190
    %v2192 = vadd.f32 %v2191, 0.4994258
    %v2193 = vmul.f32 %v2173, %v2192
    %v2194 = vadd.f32 %v2193, 1.0
    %v2195 = vrcp.pop %v2194
    %v2196 = vmul.f32 %v2194, %v2195
    %v2197 = vsub.f32 1.0, %v2196
    %v2198 = vmul.f32 %v2195, %v2197
    %v2199 = vadd.f32 %v2195, %v2198
    %vm2200 = vweird.f32 %v2194
    %vm2201 = vweird.f32 %v2195
    %vm2202 = vmor %vm2200, %vm2201
    %v2203 = vsel %vm2202, %v2195, %v2199
    %v2204 = vand.u32 2147483647, %v2194
    %vm2205 = vcmp.eq.f32.partialorder %v2204, 8.507059e+37
    %v2206 = vand.u32 %v2194, 2147483648
    %v2207 = vor.u32 1.1754944e-38, %v2206
    %v2208 = vsel %vm2205, %v2207, %v2203
    %v2209 = vmul.f32 %v2184, %v2208
    %v2210 = vmin.f32 %v2209, 1.0
    %v2211 = vmax.f32 %v2210, -1.0
    %v2212 = vmul.f32 %v471, %v471
    %v2213 = vmin.f32 16.0, %v2212
    %v2214 = vmul.f32 %v2213, 2.1237322e-06
    %v2215 = vadd.f32 %v2214, 0.00028619796
    %v2216 = vmul.f32 %v2213, %v2215
    %v2217 = vadd.f32 %v2216, 0.0036580483
    %v2218 = vmul.f32 %v2213, %v2217
    %v2219 = vadd.f32 %v2218, 0.05243302
    %v2220 = vmul.f32 %v2213, %v2219
    %v2221 = vadd.f32 %v2220, 0.18741608
    %v2222 = vmul.f32 %v2213, %v2221
    %v2223 = vadd.f32 %v2222, 1.1283791
    %v2224 = vmul.f32 %v471, %v2223
    %v2225 = vmul.f32 %v2213, 3.8918573e-05
    %v2226 = vadd.f32 %v2225, 0.001143296
    %v2227 = vmul.f32 %v2213, %v2226
    %v2228 = vadd.f32 %v2227, 0.014752088
    %v2229 = vmul.f32 %v2213, %v2228
    %v2230 = vadd.f32 %v2229, 0.112945676
    %v2231 = vmul.f32 %v2213, %v2230
    %v2232 = vadd.f32 %v2231, 0.4994258
    %v2233 = vmul.f32 %v2213, %v2232
    %v2234 = vadd.f32 %v2233, 1.0
    %v2235 = vrcp.pop %v2234
    %v2236 = vmul.f32 %v2234, %v2235
    %v2237 = vsub.f32 1.0, %v2236
    %v2238 = vmul.f32 %v2235, %v2237
    %v2239 = vadd.f32 %v2235, %v2238
    %vm2240 = vweird.f32 %v2234
    %vm2241 = vweird.f32 %v2235
    %vm2242 = vmor %vm2240, %vm2241
    %v2243 = vsel %vm2242, %v2235, %v2239
    %v2244 = vand.u32 2147483647, %v2234
    %vm2245 = vcmp.eq.f32.partialorder %v2244, 8.507059e+37
    %v2246 = vand.u32 %v2234, 2147483648
    %v2247 = vor.u32 1.1754944e-38, %v2246
    %v2248 = vsel %vm2245, %v2247, %v2243
    %v2249 = vmul.f32 %v2224, %v2248
    %v2250 = vmin.f32 %v2249, 1.0
    %v2251 = vmax.f32 %v2250, -1.0
    %v2252 = vmul.f32 %v472, %v472
    %v2253 = vmin.f32 16.0, %v2252
    %v2254 = vmul.f32 %v2253, 2.1237322e-06
    %v2255 = vadd.f32 %v2254, 0.00028619796
    %v2256 = vmul.f32 %v2253, %v2255
    %v2257 = vadd.f32 %v2256, 0.0036580483
    %v2258 = vmul.f32 %v2253, %v2257
    %v2259 = vadd.f32 %v2258, 0.05243302
    %v2260 = vmul.f32 %v2253, %v2259
    %v2261 = vadd.f32 %v2260, 0.18741608
    %v2262 = vmul.f32 %v2253, %v2261
    %v2263 = vadd.f32 %v2262, 1.1283791
    %v2264 = vmul.f32 %v472, %v2263
    %v2265 = vmul.f32 %v2253, 3.8918573e-05
    %v2266 = vadd.f32 %v2265, 0.001143296
    %v2267 = vmul.f32 %v2253, %v2266
    %v2268 = vadd.f32 %v2267, 0.014752088
    %v2269 = vmul.f32 %v2253, %v2268
    %v2270 = vadd.f32 %v2269, 0.112945676
    %v2271 = vmul.f32 %v2253, %v2270
    %v2272 = vadd.f32 %v2271, 0.4994258
    %v2273 = vmul.f32 %v2253, %v2272
    %v2274 = vadd.f32 %v2273, 1.0
    %v2275 = vrcp.pop %v2274
    %v2276 = vmul.f32 %v2274, %v2275
    %v2277 = vsub.f32 1.0, %v2276
    %v2278 = vmul.f32 %v2275, %v2277
    %v2279 = vadd.f32 %v2275, %v2278
    %vm2280 = vweird.f32 %v2274
    %vm2281 = vweird.f32 %v2275
    %vm2282 = vmor %vm2280, %vm2281
    %v2283 = vsel %vm2282, %v2275, %v2279
    %v2284 = vand.u32 2147483647, %v2274
    %vm2285 = vcmp.eq.f32.partialorder %v2284, 8.507059e+37
    %v2286 = vand.u32 %v2274, 2147483648
    %v2287 = vor.u32 1.1754944e-38, %v2286
    %v2288 = vsel %vm2285, %v2287, %v2283
    %v2289 = vmul.f32 %v2264, %v2288
    %v2290 = vmin.f32 %v2289, 1.0
    %v2291 = vmax.f32 %v2290, -1.0
    %v2292 = vmul.f32 %v473, %v473
    %v2293 = vmin.f32 16.0, %v2292
    %v2294 = vmul.f32 %v2293, 2.1237322e-06
    %v2295 = vadd.f32 %v2294, 0.00028619796
    %v2296 = vmul.f32 %v2293, %v2295
    %v2297 = vadd.f32 %v2296, 0.0036580483
    %v2298 = vmul.f32 %v2293, %v2297
    %v2299 = vadd.f32 %v2298, 0.05243302
    %v2300 = vmul.f32 %v2293, %v2299
    %v2301 = vadd.f32 %v2300, 0.18741608
    %v2302 = vmul.f32 %v2293, %v2301
    %v2303 = vadd.f32 %v2302, 1.1283791
    %v2304 = vmul.f32 %v473, %v2303
    %v2305 = vmul.f32 %v2293, 3.8918573e-05
    %v2306 = vadd.f32 %v2305, 0.001143296
    %v2307 = vmul.f32 %v2293, %v2306
    %v2308 = vadd.f32 %v2307, 0.014752088
    %v2309 = vmul.f32 %v2293, %v2308
    %v2310 = vadd.f32 %v2309, 0.112945676
    %v2311 = vmul.f32 %v2293, %v2310
    %v2312 = vadd.f32 %v2311, 0.4994258
    %v2313 = vmul.f32 %v2293, %v2312
    %v2314 = vadd.f32 %v2313, 1.0
    %v2315 = vrcp.pop %v2314
    %v2316 = vmul.f32 %v2314, %v2315
    %v2317 = vsub.f32 1.0, %v2316
    %v2318 = vmul.f32 %v2315, %v2317
    %v2319 = vadd.f32 %v2315, %v2318
    %vm2320 = vweird.f32 %v2314
    %vm2321 = vweird.f32 %v2315
    %vm2322 = vmor %vm2320, %vm2321
    %v2323 = vsel %vm2322, %v2315, %v2319
    %v2324 = vand.u32 2147483647, %v2314
    %vm2325 = vcmp.eq.f32.partialorder %v2324, 8.507059e+37
    %v2326 = vand.u32 %v2314, 2147483648
    %v2327 = vor.u32 1.1754944e-38, %v2326
    %v2328 = vsel %vm2325, %v2327, %v2323
    %v2329 = vmul.f32 %v2304, %v2328
    %v2330 = vmin.f32 %v2329, 1.0
    %v2331 = vmax.f32 %v2330, -1.0
    %v2332 = vmul.f32 %v474, %v474
    %v2333 = vmin.f32 16.0, %v2332
    %v2334 = vmul.f32 %v2333, 2.1237322e-06
    %v2335 = vadd.f32 %v2334, 0.00028619796
    %v2336 = vmul.f32 %v2333, %v2335
    %v2337 = vadd.f32 %v2336, 0.0036580483
    %v2338 = vmul.f32 %v2333, %v2337
    %v2339 = vadd.f32 %v2338, 0.05243302
    %v2340 = vmul.f32 %v2333, %v2339
    %v2341 = vadd.f32 %v2340, 0.18741608
    %v2342 = vmul.f32 %v2333, %v2341
    %v2343 = vadd.f32 %v2342, 1.1283791
    %v2344 = vmul.f32 %v474, %v2343
    %v2345 = vmul.f32 %v2333, 3.8918573e-05
    %v2346 = vadd.f32 %v2345, 0.001143296
    %v2347 = vmul.f32 %v2333, %v2346
    %v2348 = vadd.f32 %v2347, 0.014752088
    %v2349 = vmul.f32 %v2333, %v2348
    %v2350 = vadd.f32 %v2349, 0.112945676
    %v2351 = vmul.f32 %v2333, %v2350
    %v2352 = vadd.f32 %v2351, 0.4994258
    %v2353 = vmul.f32 %v2333, %v2352
    %v2354 = vadd.f32 %v2353, 1.0
    %v2355 = vrcp.pop %v2354
    %v2356 = vmul.f32 %v2354, %v2355
    %v2357 = vsub.f32 1.0, %v2356
    %v2358 = vmul.f32 %v2355, %v2357
    %v2359 = vadd.f32 %v2355, %v2358
    %vm2360 = vweird.f32 %v2354
    %vm2361 = vweird.f32 %v2355
    %vm2362 = vmor %vm2360, %vm2361
    %v2363 = vsel %vm2362, %v2355, %v2359
    %v2364 = vand.u32 2147483647, %v2354
    %vm2365 = vcmp.eq.f32.partialorder %v2364, 8.507059e+37
    %v2366 = vand.u32 %v2354, 2147483648
    %v2367 = vor.u32 1.1754944e-38, %v2366
    %v2368 = vsel %vm2365, %v2367, %v2363
    %v2369 = vmul.f32 %v2344, %v2368
    %v2370 = vmin.f32 %v2369, 1.0
    %v2371 = vmax.f32 %v2370, -1.0
    %v2372 = vmul.f32 %v475, %v475
    %v2373 = vmin.f32 16.0, %v2372
    %v2374 = vmul.f32 %v2373, 2.1237322e-06
    %v2375 = vadd.f32 %v2374, 0.00028619796
    %v2376 = vmul.f32 %v2373, %v2375
    %v2377 = vadd.f32 %v2376, 0.0036580483
    %v2378 = vmul.f32 %v2373, %v2377
    %v2379 = vadd.f32 %v2378, 0.05243302
    %v2380 = vmul.f32 %v2373, %v2379
    %v2381 = vadd.f32 %v2380, 0.18741608
    %v2382 = vmul.f32 %v2373, %v2381
    %v2383 = vadd.f32 %v2382, 1.1283791
    %v2384 = vmul.f32 %v475, %v2383
    %v2385 = vmul.f32 %v2373, 3.8918573e-05
    %v2386 = vadd.f32 %v2385, 0.001143296
    %v2387 = vmul.f32 %v2373, %v2386
    %v2388 = vadd.f32 %v2387, 0.014752088
    %v2389 = vmul.f32 %v2373, %v2388
    %v2390 = vadd.f32 %v2389, 0.112945676
    %v2391 = vmul.f32 %v2373, %v2390
    %v2392 = vadd.f32 %v2391, 0.4994258
    %v2393 = vmul.f32 %v2373, %v2392
    %v2394 = vadd.f32 %v2393, 1.0
    %v2395 = vrcp.pop %v2394
    %v2396 = vmul.f32 %v2394, %v2395
    %v2397 = vsub.f32 1.0, %v2396
    %v2398 = vmul.f32 %v2395, %v2397
    %v2399 = vadd.f32 %v2395, %v2398
    %vm2400 = vweird.f32 %v2394
    %vm2401 = vweird.f32 %v2395
    %vm2402 = vmor %vm2400, %vm2401
    %v2403 = vsel %vm2402, %v2395, %v2399
    %v2404 = vand.u32 2147483647, %v2394
    %vm2405 = vcmp.eq.f32.partialorder %v2404, 8.507059e+37
    %v2406 = vand.u32 %v2394, 2147483648
    %v2407 = vor.u32 1.1754944e-38, %v2406
    %v2408 = vsel %vm2405, %v2407, %v2403
    %v2409 = vmul.f32 %v2384, %v2408
    %v2410 = vmin.f32 %v2409, 1.0
    %v2411 = vmax.f32 %v2410, -1.0
    %v2412 = vmul.f32 %v476, %v476
    %v2413 = vmin.f32 16.0, %v2412
    %v2414 = vmul.f32 %v2413, 2.1237322e-06
    %v2415 = vadd.f32 %v2414, 0.00028619796
    %v2416 = vmul.f32 %v2413, %v2415
    %v2417 = vadd.f32 %v2416, 0.0036580483
    %v2418 = vmul.f32 %v2413, %v2417
    %v2419 = vadd.f32 %v2418, 0.05243302
    %v2420 = vmul.f32 %v2413, %v2419
    %v2421 = vadd.f32 %v2420, 0.18741608
    %v2422 = vmul.f32 %v2413, %v2421
    %v2423 = vadd.f32 %v2422, 1.1283791
    %v2424 = vmul.f32 %v476, %v2423
    %v2425 = vmul.f32 %v2413, 3.8918573e-05
    %v2426 = vadd.f32 %v2425, 0.001143296
    %v2427 = vmul.f32 %v2413, %v2426
    %v2428 = vadd.f32 %v2427, 0.014752088
    %v2429 = vmul.f32 %v2413, %v2428
    %v2430 = vadd.f32 %v2429, 0.112945676
    %v2431 = vmul.f32 %v2413, %v2430
    %v2432 = vadd.f32 %v2431, 0.4994258
    %v2433 = vmul.f32 %v2413, %v2432
    %v2434 = vadd.f32 %v2433, 1.0
    %v2435 = vrcp.pop %v2434
    %v2436 = vmul.f32 %v2434, %v2435
    %v2437 = vsub.f32 1.0, %v2436
    %v2438 = vmul.f32 %v2435, %v2437
    %v2439 = vadd.f32 %v2435, %v2438
    %vm2440 = vweird.f32 %v2434
    %vm2441 = vweird.f32 %v2435
    %vm2442 = vmor %vm2440, %vm2441
    %v2443 = vsel %vm2442, %v2435, %v2439
    %v2444 = vand.u32 2147483647, %v2434
    %vm2445 = vcmp.eq.f32.partialorder %v2444, 8.507059e+37
    %v2446 = vand.u32 %v2434, 2147483648
    %v2447 = vor.u32 1.1754944e-38, %v2446
    %v2448 = vsel %vm2445, %v2447, %v2443
    %v2449 = vmul.f32 %v2424, %v2448
    %v2450 = vmin.f32 %v2449, 1.0
    %v2451 = vmax.f32 %v2450, -1.0
    %v2452 = vmul.f32 %v477, %v477
    %v2453 = vmin.f32 16.0, %v2452
    %v2454 = vmul.f32 %v2453, 2.1237322e-06
    %v2455 = vadd.f32 %v2454, 0.00028619796
    %v2456 = vmul.f32 %v2453, %v2455
    %v2457 = vadd.f32 %v2456, 0.0036580483
    %v2458 = vmul.f32 %v2453, %v2457
    %v2459 = vadd.f32 %v2458, 0.05243302
    %v2460 = vmul.f32 %v2453, %v2459
    %v2461 = vadd.f32 %v2460, 0.18741608
    %v2462 = vmul.f32 %v2453, %v2461
    %v2463 = vadd.f32 %v2462, 1.1283791
    %v2464 = vmul.f32 %v477, %v2463
    %v2465 = vmul.f32 %v2453, 3.8918573e-05
    %v2466 = vadd.f32 %v2465, 0.001143296
    %v2467 = vmul.f32 %v2453, %v2466
    %v2468 = vadd.f32 %v2467, 0.014752088
    %v2469 = vmul.f32 %v2453, %v2468
    %v2470 = vadd.f32 %v2469, 0.112945676
    %v2471 = vmul.f32 %v2453, %v2470
    %v2472 = vadd.f32 %v2471, 0.4994258
    %v2473 = vmul.f32 %v2453, %v2472
    %v2474 = vadd.f32 %v2473, 1.0
    %v2475 = vrcp.pop %v2474
    %v2476 = vmul.f32 %v2474, %v2475
    %v2477 = vsub.f32 1.0, %v2476
    %v2478 = vmul.f32 %v2475, %v2477
    %v2479 = vadd.f32 %v2475, %v2478
    %vm2480 = vweird.f32 %v2474
    %vm2481 = vweird.f32 %v2475
    %vm2482 = vmor %vm2480, %vm2481
    %v2483 = vsel %vm2482, %v2475, %v2479
    %v2484 = vand.u32 2147483647, %v2474
    %vm2485 = vcmp.eq.f32.partialorder %v2484, 8.507059e+37
    %v2486 = vand.u32 %v2474, 2147483648
    %v2487 = vor.u32 1.1754944e-38, %v2486
    %v2488 = vsel %vm2485, %v2487, %v2483
    %v2489 = vmul.f32 %v2464, %v2488
    %v2490 = vmin.f32 %v2489, 1.0
    %v2491 = vmax.f32 %v2490, -1.0
    %v2492 = vmul.f32 %v478, %v478
    %v2493 = vmin.f32 16.0, %v2492
    %v2494 = vmul.f32 %v2493, 2.1237322e-06
    %v2495 = vadd.f32 %v2494, 0.00028619796
    %v2496 = vmul.f32 %v2493, %v2495
    %v2497 = vadd.f32 %v2496, 0.0036580483
    %v2498 = vmul.f32 %v2493, %v2497
    %v2499 = vadd.f32 %v2498, 0.05243302
    %v2500 = vmul.f32 %v2493, %v2499
    %v2501 = vadd.f32 %v2500, 0.18741608
    %v2502 = vmul.f32 %v2493, %v2501
    %v2503 = vadd.f32 %v2502, 1.1283791
    %v2504 = vmul.f32 %v478, %v2503
    %v2505 = vmul.f32 %v2493, 3.8918573e-05
    %v2506 = vadd.f32 %v2505, 0.001143296
    %v2507 = vmul.f32 %v2493, %v2506
    %v2508 = vadd.f32 %v2507, 0.014752088
    %v2509 = vmul.f32 %v2493, %v2508
    %v2510 = vadd.f32 %v2509, 0.112945676
    %v2511 = vmul.f32 %v2493, %v2510
    %v2512 = vadd.f32 %v2511, 0.4994258
    %v2513 = vmul.f32 %v2493, %v2512
    %v2514 = vadd.f32 %v2513, 1.0
    %v2515 = vrcp.pop %v2514
    %v2516 = vmul.f32 %v2514, %v2515
    %v2517 = vsub.f32 1.0, %v2516
    %v2518 = vmul.f32 %v2515, %v2517
    %v2519 = vadd.f32 %v2515, %v2518
    %vm2520 = vweird.f32 %v2514
    %vm2521 = vweird.f32 %v2515
    %vm2522 = vmor %vm2520, %vm2521
    %v2523 = vsel %vm2522, %v2515, %v2519
    %v2524 = vand.u32 2147483647, %v2514
    %vm2525 = vcmp.eq.f32.partialorder %v2524, 8.507059e+37
    %v2526 = vand.u32 %v2514, 2147483648
    %v2527 = vor.u32 1.1754944e-38, %v2526
    %v2528 = vsel %vm2525, %v2527, %v2523
    %v2529 = vmul.f32 %v2504, %v2528
    %v2530 = vmin.f32 %v2529, 1.0
    %v2531 = vmax.f32 %v2530, -1.0
    %v2532 = vmul.f32 %v479, %v479
    %v2533 = vmin.f32 16.0, %v2532
    %v2534 = vmul.f32 %v2533, 2.1237322e-06
    %v2535 = vadd.f32 %v2534, 0.00028619796
    %v2536 = vmul.f32 %v2533, %v2535
    %v2537 = vadd.f32 %v2536, 0.0036580483
    %v2538 = vmul.f32 %v2533, %v2537
    %v2539 = vadd.f32 %v2538, 0.05243302
    %v2540 = vmul.f32 %v2533, %v2539
    %v2541 = vadd.f32 %v2540, 0.18741608
    %v2542 = vmul.f32 %v2533, %v2541
    %v2543 = vadd.f32 %v2542, 1.1283791
    %v2544 = vmul.f32 %v479, %v2543
    %v2545 = vmul.f32 %v2533, 3.8918573e-05
    %v2546 = vadd.f32 %v2545, 0.001143296
    %v2547 = vmul.f32 %v2533, %v2546
    %v2548 = vadd.f32 %v2547, 0.014752088
    %v2549 = vmul.f32 %v2533, %v2548
    %v2550 = vadd.f32 %v2549, 0.112945676
    %v2551 = vmul.f32 %v2533, %v2550
    %v2552 = vadd.f32 %v2551, 0.4994258
    %v2553 = vmul.f32 %v2533, %v2552
    %v2554 = vadd.f32 %v2553, 1.0
    %v2555 = vrcp.pop %v2554
    %v2556 = vmul.f32 %v2554, %v2555
    %v2557 = vsub.f32 1.0, %v2556
    %v2558 = vmul.f32 %v2555, %v2557
    %v2559 = vadd.f32 %v2555, %v2558
    %vm2560 = vweird.f32 %v2554
    %vm2561 = vweird.f32 %v2555
    %vm2562 = vmor %vm2560, %vm2561
    %v2563 = vsel %vm2562, %v2555, %v2559
    %v2564 = vand.u32 2147483647, %v2554
    %vm2565 = vcmp.eq.f32.partialorder %v2564, 8.507059e+37
    %v2566 = vand.u32 %v2554, 2147483648
    %v2567 = vor.u32 1.1754944e-38, %v2566
    %v2568 = vsel %vm2565, %v2567, %v2563
    %v2569 = vmul.f32 %v2544, %v2568
    %v2570 = vmin.f32 %v2569, 1.0
    %v2571 = vmax.f32 %v2570, -1.0
    %v2572 = vmul.f32 %v480, %v480
    %v2573 = vmin.f32 16.0, %v2572
    %v2574 = vmul.f32 %v2573, 2.1237322e-06
    %v2575 = vadd.f32 %v2574, 0.00028619796
    %v2576 = vmul.f32 %v2573, %v2575
    %v2577 = vadd.f32 %v2576, 0.0036580483
    %v2578 = vmul.f32 %v2573, %v2577
    %v2579 = vadd.f32 %v2578, 0.05243302
    %v2580 = vmul.f32 %v2573, %v2579
    %v2581 = vadd.f32 %v2580, 0.18741608
    %v2582 = vmul.f32 %v2573, %v2581
    %v2583 = vadd.f32 %v2582, 1.1283791
    %v2584 = vmul.f32 %v480, %v2583
    %v2585 = vmul.f32 %v2573, 3.8918573e-05
    %v2586 = vadd.f32 %v2585, 0.001143296
    %v2587 = vmul.f32 %v2573, %v2586
    %v2588 = vadd.f32 %v2587, 0.014752088
    %v2589 = vmul.f32 %v2573, %v2588
    %v2590 = vadd.f32 %v2589, 0.112945676
    %v2591 = vmul.f32 %v2573, %v2590
    %v2592 = vadd.f32 %v2591, 0.4994258
    %v2593 = vmul.f32 %v2573, %v2592
    %v2594 = vadd.f32 %v2593, 1.0
    %v2595 = vrcp.pop %v2594
    %v2596 = vmul.f32 %v2594, %v2595
    %v2597 = vsub.f32 1.0, %v2596
    %v2598 = vmul.f32 %v2595, %v2597
    %v2599 = vadd.f32 %v2595, %v2598
    %vm2600 = vweird.f32 %v2594
    %vm2601 = vweird.f32 %v2595
    %vm2602 = vmor %vm2600, %vm2601
    %v2603 = vsel %vm2602, %v2595, %v2599
    %v2604 = vand.u32 2147483647, %v2594
    %vm2605 = vcmp.eq.f32.partialorder %v2604, 8.507059e+37
    %v2606 = vand.u32 %v2594, 2147483648
    %v2607 = vor.u32 1.1754944e-38, %v2606
    %v2608 = vsel %vm2605, %v2607, %v2603
    %v2609 = vmul.f32 %v2584, %v2608
    %v2610 = vmin.f32 %v2609, 1.0
    %v2611 = vmax.f32 %v2610, -1.0
    %v2612 = vmul.f32 %v481, %v481
    %v2613 = vmin.f32 16.0, %v2612
    %v2614 = vmul.f32 %v2613, 2.1237322e-06
    %v2615 = vadd.f32 %v2614, 0.00028619796
    %v2616 = vmul.f32 %v2613, %v2615
    %v2617 = vadd.f32 %v2616, 0.0036580483
    %v2618 = vmul.f32 %v2613, %v2617
    %v2619 = vadd.f32 %v2618, 0.05243302
    %v2620 = vmul.f32 %v2613, %v2619
    %v2621 = vadd.f32 %v2620, 0.18741608
    %v2622 = vmul.f32 %v2613, %v2621
    %v2623 = vadd.f32 %v2622, 1.1283791
    %v2624 = vmul.f32 %v481, %v2623
    %v2625 = vmul.f32 %v2613, 3.8918573e-05
    %v2626 = vadd.f32 %v2625, 0.001143296
    %v2627 = vmul.f32 %v2613, %v2626
    %v2628 = vadd.f32 %v2627, 0.014752088
    %v2629 = vmul.f32 %v2613, %v2628
    %v2630 = vadd.f32 %v2629, 0.112945676
    %v2631 = vmul.f32 %v2613, %v2630
    %v2632 = vadd.f32 %v2631, 0.4994258
    %v2633 = vmul.f32 %v2613, %v2632
    %v2634 = vadd.f32 %v2633, 1.0
    %v2635 = vrcp.pop %v2634
    %v2636 = vmul.f32 %v2634, %v2635
    %v2637 = vsub.f32 1.0, %v2636
    %v2638 = vmul.f32 %v2635, %v2637
    %v2639 = vadd.f32 %v2635, %v2638
    %vm2640 = vweird.f32 %v2634
    %vm2641 = vweird.f32 %v2635
    %vm2642 = vmor %vm2640, %vm2641
    %v2643 = vsel %vm2642, %v2635, %v2639
    %v2644 = vand.u32 2147483647, %v2634
    %vm2645 = vcmp.eq.f32.partialorder %v2644, 8.507059e+37
    %v2646 = vand.u32 %v2634, 2147483648
    %v2647 = vor.u32 1.1754944e-38, %v2646
    %v2648 = vsel %vm2645, %v2647, %v2643
    %v2649 = vmul.f32 %v2624, %v2648
    %v2650 = vmin.f32 %v2649, 1.0
    %v2651 = vmax.f32 %v2650, -1.0
    %v2652 = vmul.f32 %v482, %v482
    %v2653 = vmin.f32 16.0, %v2652
    %v2654 = vmul.f32 %v2653, 2.1237322e-06
    %v2655 = vadd.f32 %v2654, 0.00028619796
    %v2656 = vmul.f32 %v2653, %v2655
    %v2657 = vadd.f32 %v2656, 0.0036580483
    %v2658 = vmul.f32 %v2653, %v2657
    %v2659 = vadd.f32 %v2658, 0.05243302
    %v2660 = vmul.f32 %v2653, %v2659
    %v2661 = vadd.f32 %v2660, 0.18741608
    %v2662 = vmul.f32 %v2653, %v2661
    %v2663 = vadd.f32 %v2662, 1.1283791
    %v2664 = vmul.f32 %v482, %v2663
    %v2665 = vmul.f32 %v2653, 3.8918573e-05
    %v2666 = vadd.f32 %v2665, 0.001143296
    %v2667 = vmul.f32 %v2653, %v2666
    %v2668 = vadd.f32 %v2667, 0.014752088
    %v2669 = vmul.f32 %v2653, %v2668
    %v2670 = vadd.f32 %v2669, 0.112945676
    %v2671 = vmul.f32 %v2653, %v2670
    %v2672 = vadd.f32 %v2671, 0.4994258
    %v2673 = vmul.f32 %v2653, %v2672
    %v2674 = vadd.f32 %v2673, 1.0
    %v2675 = vrcp.pop %v2674
    %v2676 = vmul.f32 %v2674, %v2675
    %v2677 = vsub.f32 1.0, %v2676
    %v2678 = vmul.f32 %v2675, %v2677
    %v2679 = vadd.f32 %v2675, %v2678
    %vm2680 = vweird.f32 %v2674
    %vm2681 = vweird.f32 %v2675
    %vm2682 = vmor %vm2680, %vm2681
    %v2683 = vsel %vm2682, %v2675, %v2679
    %v2684 = vand.u32 2147483647, %v2674
    %vm2685 = vcmp.eq.f32.partialorder %v2684, 8.507059e+37
    %v2686 = vand.u32 %v2674, 2147483648
    %v2687 = vor.u32 1.1754944e-38, %v2686
    %v2688 = vsel %vm2685, %v2687, %v2683
    %v2689 = vmul.f32 %v2664, %v2688
    %v2690 = vmin.f32 %v2689, 1.0
    %v2691 = vmax.f32 %v2690, -1.0
    %v2692 = vmul.f32 %v483, %v483
    %v2693 = vmin.f32 16.0, %v2692
    %v2694 = vmul.f32 %v2693, 2.1237322e-06
    %v2695 = vadd.f32 %v2694, 0.00028619796
    %v2696 = vmul.f32 %v2693, %v2695
    %v2697 = vadd.f32 %v2696, 0.0036580483
    %v2698 = vmul.f32 %v2693, %v2697
    %v2699 = vadd.f32 %v2698, 0.05243302
    %v2700 = vmul.f32 %v2693, %v2699
    %v2701 = vadd.f32 %v2700, 0.18741608
    %v2702 = vmul.f32 %v2693, %v2701
    %v2703 = vadd.f32 %v2702, 1.1283791
    %v2704 = vmul.f32 %v483, %v2703
    %v2705 = vmul.f32 %v2693, 3.8918573e-05
    %v2706 = vadd.f32 %v2705, 0.001143296
    %v2707 = vmul.f32 %v2693, %v2706
    %v2708 = vadd.f32 %v2707, 0.014752088
    %v2709 = vmul.f32 %v2693, %v2708
    %v2710 = vadd.f32 %v2709, 0.112945676
    %v2711 = vmul.f32 %v2693, %v2710
    %v2712 = vadd.f32 %v2711, 0.4994258
    %v2713 = vmul.f32 %v2693, %v2712
    %v2714 = vadd.f32 %v2713, 1.0
    %v2715 = vrcp.pop %v2714
    %v2716 = vmul.f32 %v2714, %v2715
    %v2717 = vsub.f32 1.0, %v2716
    %v2718 = vmul.f32 %v2715, %v2717
    %v2719 = vadd.f32 %v2715, %v2718
    %vm2720 = vweird.f32 %v2714
    %vm2721 = vweird.f32 %v2715
    %vm2722 = vmor %vm2720, %vm2721
    %v2723 = vsel %vm2722, %v2715, %v2719
    %v2724 = vand.u32 2147483647, %v2714
    %vm2725 = vcmp.eq.f32.partialorder %v2724, 8.507059e+37
    %v2726 = vand.u32 %v2714, 2147483648
    %v2727 = vor.u32 1.1754944e-38, %v2726
    %v2728 = vsel %vm2725, %v2727, %v2723
    %v2729 = vmul.f32 %v2704, %v2728
    %v2730 = vmin.f32 %v2729, 1.0
    %v2731 = vmax.f32 %v2730, -1.0
    %v2732 = vmul.f32 %v484, %v484
    %v2733 = vmin.f32 16.0, %v2732
    %v2734 = vmul.f32 %v2733, 2.1237322e-06
    %v2735 = vadd.f32 %v2734, 0.00028619796
    %v2736 = vmul.f32 %v2733, %v2735
    %v2737 = vadd.f32 %v2736, 0.0036580483
    %v2738 = vmul.f32 %v2733, %v2737
    %v2739 = vadd.f32 %v2738, 0.05243302
    %v2740 = vmul.f32 %v2733, %v2739
    %v2741 = vadd.f32 %v2740, 0.18741608
    %v2742 = vmul.f32 %v2733, %v2741
    %v2743 = vadd.f32 %v2742, 1.1283791
    %v2744 = vmul.f32 %v484, %v2743
    %v2745 = vmul.f32 %v2733, 3.8918573e-05
    %v2746 = vadd.f32 %v2745, 0.001143296
    %v2747 = vmul.f32 %v2733, %v2746
    %v2748 = vadd.f32 %v2747, 0.014752088
    %v2749 = vmul.f32 %v2733, %v2748
    %v2750 = vadd.f32 %v2749, 0.112945676
    %v2751 = vmul.f32 %v2733, %v2750
    %v2752 = vadd.f32 %v2751, 0.4994258
    %v2753 = vmul.f32 %v2733, %v2752
    %v2754 = vadd.f32 %v2753, 1.0
    %v2755 = vrcp.pop %v2754
    %v2756 = vmul.f32 %v2754, %v2755
    %v2757 = vsub.f32 1.0, %v2756
    %v2758 = vmul.f32 %v2755, %v2757
    %v2759 = vadd.f32 %v2755, %v2758
    %vm2760 = vweird.f32 %v2754
    %vm2761 = vweird.f32 %v2755
    %vm2762 = vmor %vm2760, %vm2761
    %v2763 = vsel %vm2762, %v2755, %v2759
    %v2764 = vand.u32 2147483647, %v2754
    %vm2765 = vcmp.eq.f32.partialorder %v2764, 8.507059e+37
    %v2766 = vand.u32 %v2754, 2147483648
    %v2767 = vor.u32 1.1754944e-38, %v2766
    %v2768 = vsel %vm2765, %v2767, %v2763
    %v2769 = vmul.f32 %v2744, %v2768
    %v2770 = vmin.f32 %v2769, 1.0
    %v2771 = vmax.f32 %v2770, -1.0
    %v2772 = vmul.f32 %v485, %v485
    %v2773 = vmin.f32 16.0, %v2772
    %v2774 = vmul.f32 %v2773, 2.1237322e-06
    %v2775 = vadd.f32 %v2774, 0.00028619796
    %v2776 = vmul.f32 %v2773, %v2775
    %v2777 = vadd.f32 %v2776, 0.0036580483
    %v2778 = vmul.f32 %v2773, %v2777
    %v2779 = vadd.f32 %v2778, 0.05243302
    %v2780 = vmul.f32 %v2773, %v2779
    %v2781 = vadd.f32 %v2780, 0.18741608
    %v2782 = vmul.f32 %v2773, %v2781
    %v2783 = vadd.f32 %v2782, 1.1283791
    %v2784 = vmul.f32 %v485, %v2783
    %v2785 = vmul.f32 %v2773, 3.8918573e-05
    %v2786 = vadd.f32 %v2785, 0.001143296
    %v2787 = vmul.f32 %v2773, %v2786
    %v2788 = vadd.f32 %v2787, 0.014752088
    %v2789 = vmul.f32 %v2773, %v2788
    %v2790 = vadd.f32 %v2789, 0.112945676
    %v2791 = vmul.f32 %v2773, %v2790
    %v2792 = vadd.f32 %v2791, 0.4994258
    %v2793 = vmul.f32 %v2773, %v2792
    %v2794 = vadd.f32 %v2793, 1.0
    %v2795 = vrcp.pop %v2794
    %v2796 = vmul.f32 %v2794, %v2795
    %v2797 = vsub.f32 1.0, %v2796
    %v2798 = vmul.f32 %v2795, %v2797
    %v2799 = vadd.f32 %v2795, %v2798
    %vm2800 = vweird.f32 %v2794
    %vm2801 = vweird.f32 %v2795
    %vm2802 = vmor %vm2800, %vm2801
    %v2803 = vsel %vm2802, %v2795, %v2799
    %v2804 = vand.u32 2147483647, %v2794
    %vm2805 = vcmp.eq.f32.partialorder %v2804, 8.507059e+37
    %v2806 = vand.u32 %v2794, 2147483648
    %v2807 = vor.u32 1.1754944e-38, %v2806
    %v2808 = vsel %vm2805, %v2807, %v2803
    %v2809 = vmul.f32 %v2784, %v2808
    %v2810 = vmin.f32 %v2809, 1.0
    %v2811 = vmax.f32 %v2810, -1.0
    %v2812 = vmul.f32 %v486, %v486
    %v2813 = vmin.f32 16.0, %v2812
    %v2814 = vmul.f32 %v2813, 2.1237322e-06
    %v2815 = vadd.f32 %v2814, 0.00028619796
    %v2816 = vmul.f32 %v2813, %v2815
    %v2817 = vadd.f32 %v2816, 0.0036580483
    %v2818 = vmul.f32 %v2813, %v2817
    %v2819 = vadd.f32 %v2818, 0.05243302
    %v2820 = vmul.f32 %v2813, %v2819
    %v2821 = vadd.f32 %v2820, 0.18741608
    %v2822 = vmul.f32 %v2813, %v2821
    %v2823 = vadd.f32 %v2822, 1.1283791
    %v2824 = vmul.f32 %v486, %v2823
    %v2825 = vmul.f32 %v2813, 3.8918573e-05
    %v2826 = vadd.f32 %v2825, 0.001143296
    %v2827 = vmul.f32 %v2813, %v2826
    %v2828 = vadd.f32 %v2827, 0.014752088
    %v2829 = vmul.f32 %v2813, %v2828
    %v2830 = vadd.f32 %v2829, 0.112945676
    %v2831 = vmul.f32 %v2813, %v2830
    %v2832 = vadd.f32 %v2831, 0.4994258
    %v2833 = vmul.f32 %v2813, %v2832
    %v2834 = vadd.f32 %v2833, 1.0
    %v2835 = vrcp.pop %v2834
    %v2836 = vmul.f32 %v2834, %v2835
    %v2837 = vsub.f32 1.0, %v2836
    %v2838 = vmul.f32 %v2835, %v2837
    %v2839 = vadd.f32 %v2835, %v2838
    %vm2840 = vweird.f32 %v2834
    %vm2841 = vweird.f32 %v2835
    %vm2842 = vmor %vm2840, %vm2841
    %v2843 = vsel %vm2842, %v2835, %v2839
    %v2844 = vand.u32 2147483647, %v2834
    %vm2845 = vcmp.eq.f32.partialorder %v2844, 8.507059e+37
    %v2846 = vand.u32 %v2834, 2147483648
    %v2847 = vor.u32 1.1754944e-38, %v2846
    %v2848 = vsel %vm2845, %v2847, %v2843
    %v2849 = vmul.f32 %v2824, %v2848
    %v2850 = vmin.f32 %v2849, 1.0
    %v2851 = vmax.f32 %v2850, -1.0
    %v2852 = vmul.f32 %v487, %v487
    %v2853 = vmin.f32 16.0, %v2852
    %v2854 = vmul.f32 %v2853, 2.1237322e-06
    %v2855 = vadd.f32 %v2854, 0.00028619796
    %v2856 = vmul.f32 %v2853, %v2855
    %v2857 = vadd.f32 %v2856, 0.0036580483
    %v2858 = vmul.f32 %v2853, %v2857
    %v2859 = vadd.f32 %v2858, 0.05243302
    %v2860 = vmul.f32 %v2853, %v2859
    %v2861 = vadd.f32 %v2860, 0.18741608
    %v2862 = vmul.f32 %v2853, %v2861
    %v2863 = vadd.f32 %v2862, 1.1283791
    %v2864 = vmul.f32 %v487, %v2863
    %v2865 = vmul.f32 %v2853, 3.8918573e-05
    %v2866 = vadd.f32 %v2865, 0.001143296
    %v2867 = vmul.f32 %v2853, %v2866
    %v2868 = vadd.f32 %v2867, 0.014752088
    %v2869 = vmul.f32 %v2853, %v2868
    %v2870 = vadd.f32 %v2869, 0.112945676
    %v2871 = vmul.f32 %v2853, %v2870
    %v2872 = vadd.f32 %v2871, 0.4994258
    %v2873 = vmul.f32 %v2853, %v2872
    %v2874 = vadd.f32 %v2873, 1.0
    %v2875 = vrcp.pop %v2874
    %v2876 = vmul.f32 %v2874, %v2875
    %v2877 = vsub.f32 1.0, %v2876
    %v2878 = vmul.f32 %v2875, %v2877
    %v2879 = vadd.f32 %v2875, %v2878
    %vm2880 = vweird.f32 %v2874
    %vm2881 = vweird.f32 %v2875
    %vm2882 = vmor %vm2880, %vm2881
    %v2883 = vsel %vm2882, %v2875, %v2879
    %v2884 = vand.u32 2147483647, %v2874
    %vm2885 = vcmp.eq.f32.partialorder %v2884, 8.507059e+37
    %v2886 = vand.u32 %v2874, 2147483648
    %v2887 = vor.u32 1.1754944e-38, %v2886
    %v2888 = vsel %vm2885, %v2887, %v2883
    %v2889 = vmul.f32 %v2864, %v2888
    %v2890 = vmin.f32 %v2889, 1.0
    %v2891 = vmax.f32 %v2890, -1.0
    %v2892 = vmul.f32 %v488, %v488
    %v2893 = vmin.f32 16.0, %v2892
    %v2894 = vmul.f32 %v2893, 2.1237322e-06
    %v2895 = vadd.f32 %v2894, 0.00028619796
    %v2896 = vmul.f32 %v2893, %v2895
    %v2897 = vadd.f32 %v2896, 0.0036580483
    %v2898 = vmul.f32 %v2893, %v2897
    %v2899 = vadd.f32 %v2898, 0.05243302
    %v2900 = vmul.f32 %v2893, %v2899
    %v2901 = vadd.f32 %v2900, 0.18741608
    %v2902 = vmul.f32 %v2893, %v2901
    %v2903 = vadd.f32 %v2902, 1.1283791
    %v2904 = vmul.f32 %v488, %v2903
    %v2905 = vmul.f32 %v2893, 3.8918573e-05
    %v2906 = vadd.f32 %v2905, 0.001143296
    %v2907 = vmul.f32 %v2893, %v2906
    %v2908 = vadd.f32 %v2907, 0.014752088
    %v2909 = vmul.f32 %v2893, %v2908
    %v2910 = vadd.f32 %v2909, 0.112945676
    %v2911 = vmul.f32 %v2893, %v2910
    %v2912 = vadd.f32 %v2911, 0.4994258
    %v2913 = vmul.f32 %v2893, %v2912
    %v2914 = vadd.f32 %v2913, 1.0
    %v2915 = vrcp.pop %v2914
    %v2916 = vmul.f32 %v2914, %v2915
    %v2917 = vsub.f32 1.0, %v2916
    %v2918 = vmul.f32 %v2915, %v2917
    %v2919 = vadd.f32 %v2915, %v2918
    %vm2920 = vweird.f32 %v2914
    %vm2921 = vweird.f32 %v2915
    %vm2922 = vmor %vm2920, %vm2921
    %v2923 = vsel %vm2922, %v2915, %v2919
    %v2924 = vand.u32 2147483647, %v2914
    %vm2925 = vcmp.eq.f32.partialorder %v2924, 8.507059e+37
    %v2926 = vand.u32 %v2914, 2147483648
    %v2927 = vor.u32 1.1754944e-38, %v2926
    %v2928 = vsel %vm2925, %v2927, %v2923
    %v2929 = vmul.f32 %v2904, %v2928
    %v2930 = vmin.f32 %v2929, 1.0
    %v2931 = vmax.f32 %v2930, -1.0
    %v2932 = vmul.f32 %v489, %v489
    %v2933 = vmin.f32 16.0, %v2932
    %v2934 = vmul.f32 %v2933, 2.1237322e-06
    %v2935 = vadd.f32 %v2934, 0.00028619796
    %v2936 = vmul.f32 %v2933, %v2935
    %v2937 = vadd.f32 %v2936, 0.0036580483
    %v2938 = vmul.f32 %v2933, %v2937
    %v2939 = vadd.f32 %v2938, 0.05243302
    %v2940 = vmul.f32 %v2933, %v2939
    %v2941 = vadd.f32 %v2940, 0.18741608
    %v2942 = vmul.f32 %v2933, %v2941
    %v2943 = vadd.f32 %v2942, 1.1283791
    %v2944 = vmul.f32 %v489, %v2943
    %v2945 = vmul.f32 %v2933, 3.8918573e-05
    %v2946 = vadd.f32 %v2945, 0.001143296
    %v2947 = vmul.f32 %v2933, %v2946
    %v2948 = vadd.f32 %v2947, 0.014752088
    %v2949 = vmul.f32 %v2933, %v2948
    %v2950 = vadd.f32 %v2949, 0.112945676
    %v2951 = vmul.f32 %v2933, %v2950
    %v2952 = vadd.f32 %v2951, 0.4994258
    %v2953 = vmul.f32 %v2933, %v2952
    %v2954 = vadd.f32 %v2953, 1.0
    %v2955 = vrcp.pop %v2954
    %v2956 = vmul.f32 %v2954, %v2955
    %v2957 = vsub.f32 1.0, %v2956
    %v2958 = vmul.f32 %v2955, %v2957
    %v2959 = vadd.f32 %v2955, %v2958
    %vm2960 = vweird.f32 %v2954
    %vm2961 = vweird.f32 %v2955
    %vm2962 = vmor %vm2960, %vm2961
    %v2963 = vsel %vm2962, %v2955, %v2959
    %v2964 = vand.u32 2147483647, %v2954
    %vm2965 = vcmp.eq.f32.partialorder %v2964, 8.507059e+37
    %v2966 = vand.u32 %v2954, 2147483648
    %v2967 = vor.u32 1.1754944e-38, %v2966
    %v2968 = vsel %vm2965, %v2967, %v2963
    %v2969 = vmul.f32 %v2944, %v2968
    %v2970 = vmin.f32 %v2969, 1.0
    %v2971 = vmax.f32 %v2970, -1.0
    %v2972 = vmul.f32 %v490, %v490
    %v2973 = vmin.f32 16.0, %v2972
    %v2974 = vmul.f32 %v2973, 2.1237322e-06
    %v2975 = vadd.f32 %v2974, 0.00028619796
    %v2976 = vmul.f32 %v2973, %v2975
    %v2977 = vadd.f32 %v2976, 0.0036580483
    %v2978 = vmul.f32 %v2973, %v2977
    %v2979 = vadd.f32 %v2978, 0.05243302
    %v2980 = vmul.f32 %v2973, %v2979
    %v2981 = vadd.f32 %v2980, 0.18741608
    %v2982 = vmul.f32 %v2973, %v2981
    %v2983 = vadd.f32 %v2982, 1.1283791
    %v2984 = vmul.f32 %v490, %v2983
    %v2985 = vmul.f32 %v2973, 3.8918573e-05
    %v2986 = vadd.f32 %v2985, 0.001143296
    %v2987 = vmul.f32 %v2973, %v2986
    %v2988 = vadd.f32 %v2987, 0.014752088
    %v2989 = vmul.f32 %v2973, %v2988
    %v2990 = vadd.f32 %v2989, 0.112945676
    %v2991 = vmul.f32 %v2973, %v2990
    %v2992 = vadd.f32 %v2991, 0.4994258
    %v2993 = vmul.f32 %v2973, %v2992
    %v2994 = vadd.f32 %v2993, 1.0
    %v2995 = vrcp.pop %v2994
    %v2996 = vmul.f32 %v2994, %v2995
    %v2997 = vsub.f32 1.0, %v2996
    %v2998 = vmul.f32 %v2995, %v2997
    %v2999 = vadd.f32 %v2995, %v2998
    %vm3000 = vweird.f32 %v2994
    %vm3001 = vweird.f32 %v2995
    %vm3002 = vmor %vm3000, %vm3001
    %v3003 = vsel %vm3002, %v2995, %v2999
    %v3004 = vand.u32 2147483647, %v2994
    %vm3005 = vcmp.eq.f32.partialorder %v3004, 8.507059e+37
    %v3006 = vand.u32 %v2994, 2147483648
    %v3007 = vor.u32 1.1754944e-38, %v3006
    %v3008 = vsel %vm3005, %v3007, %v3003
    %v3009 = vmul.f32 %v2984, %v3008
    %v3010 = vmin.f32 %v3009, 1.0
    %v3011 = vmax.f32 %v3010, -1.0
    %v3012 = vmul.f32 %v491, %v491
    %v3013 = vmin.f32 16.0, %v3012
    %v3014 = vmul.f32 %v3013, 2.1237322e-06
    %v3015 = vadd.f32 %v3014, 0.00028619796
    %v3016 = vmul.f32 %v3013, %v3015
    %v3017 = vadd.f32 %v3016, 0.0036580483
    %v3018 = vmul.f32 %v3013, %v3017
    %v3019 = vadd.f32 %v3018, 0.05243302
    %v3020 = vmul.f32 %v3013, %v3019
    %v3021 = vadd.f32 %v3020, 0.18741608
    %v3022 = vmul.f32 %v3013, %v3021
    %v3023 = vadd.f32 %v3022, 1.1283791
    %v3024 = vmul.f32 %v491, %v3023
    %v3025 = vmul.f32 %v3013, 3.8918573e-05
    %v3026 = vadd.f32 %v3025, 0.001143296
    %v3027 = vmul.f32 %v3013, %v3026
    %v3028 = vadd.f32 %v3027, 0.014752088
    %v3029 = vmul.f32 %v3013, %v3028
    %v3030 = vadd.f32 %v3029, 0.112945676
    %v3031 = vmul.f32 %v3013, %v3030
    %v3032 = vadd.f32 %v3031, 0.4994258
    %v3033 = vmul.f32 %v3013, %v3032
    %v3034 = vadd.f32 %v3033, 1.0
    %v3035 = vrcp.pop %v3034
    %v3036 = vmul.f32 %v3034, %v3035
    %v3037 = vsub.f32 1.0, %v3036
    %v3038 = vmul.f32 %v3035, %v3037
    %v3039 = vadd.f32 %v3035, %v3038
    %vm3040 = vweird.f32 %v3034
    %vm3041 = vweird.f32 %v3035
    %vm3042 = vmor %vm3040, %vm3041
    %v3043 = vsel %vm3042, %v3035, %v3039
    %v3044 = vand.u32 2147483647, %v3034
    %vm3045 = vcmp.eq.f32.partialorder %v3044, 8.507059e+37
    %v3046 = vand.u32 %v3034, 2147483648
    %v3047 = vor.u32 1.1754944e-38, %v3046
    %v3048 = vsel %vm3045, %v3047, %v3043
    %v3049 = vmul.f32 %v3024, %v3048
    %v3050 = vmin.f32 %v3049, 1.0
    %v3051 = vmax.f32 %v3050, -1.0
    %v3052 = vadd.f32 %v531, 1.0
    %v3053 = vadd.f32 %v571, 1.0
    %v3054 = vadd.f32 %v611, 1.0
    %v3055 = vadd.f32 %v651, 1.0
    %v3056 = vadd.f32 %v691, 1.0
    %v3057 = vadd.f32 %v731, 1.0
    %v3058 = vadd.f32 %v771, 1.0
    %v3059 = vadd.f32 %v811, 1.0
    %v3060 = vadd.f32 %v851, 1.0
    %v3061 = vadd.f32 %v891, 1.0
    %v3062 = vadd.f32 %v931, 1.0
    %v3063 = vadd.f32 %v971, 1.0
    %v3064 = vadd.f32 %v1011, 1.0
    %v3065 = vadd.f32 %v1051, 1.0
    %v3066 = vadd.f32 %v1091, 1.0
    %v3067 = vadd.f32 %v1131, 1.0
    %v3068 = vadd.f32 %v1171, 1.0
    %v3069 = vadd.f32 %v1211, 1.0
    %v3070 = vadd.f32 %v1251, 1.0
    %v3071 = vadd.f32 %v1291, 1.0
    %v3072 = vadd.f32 %v1331, 1.0
    %v3073 = vadd.f32 %v1371, 1.0
    %v3074 = vadd.f32 %v1411, 1.0
    %v3075 = vadd.f32 %v1451, 1.0
    %v3076 = vadd.f32 %v1491, 1.0
    %v3077 = vadd.f32 %v1531, 1.0
    %v3078 = vadd.f32 %v1571, 1.0
    %v3079 = vadd.f32 %v1611, 1.0
    %v3080 = vadd.f32 %v1651, 1.0
    %v3081 = vadd.f32 %v1691, 1.0
    %v3082 = vadd.f32 %v1731, 1.0
    %v3083 = vadd.f32 %v1771, 1.0
    %v3084 = vadd.f32 %v1811, 1.0
    %v3085 = vadd.f32 %v1851, 1.0
    %v3086 = vadd.f32 %v1891, 1.0
    %v3087 = vadd.f32 %v1931, 1.0
    %v3088 = vadd.f32 %v1971, 1.0
    %v3089 = vadd.f32 %v2011, 1.0
    %v3090 = vadd.f32 %v2051, 1.0
    %v3091 = vadd.f32 %v2091, 1.0
    %v3092 = vadd.f32 %v2131, 1.0
    %v3093 = vadd.f32 %v2171, 1.0
    %v3094 = vadd.f32 %v2211, 1.0
    %v3095 = vadd.f32 %v2251, 1.0
    %v3096 = vadd.f32 %v2291, 1.0
    %v3097 = vadd.f32 %v2331, 1.0
    %v3098 = vadd.f32 %v2371, 1.0
    %v3099 = vadd.f32 %v2411, 1.0
    %v3100 = vadd.f32 %v2451, 1.0
    %v3101 = vadd.f32 %v2491, 1.0
    %v3102 = vadd.f32 %v2531, 1.0
    %v3103 = vadd.f32 %v2571, 1.0
    %v3104 = vadd.f32 %v2611, 1.0
    %v3105 = vadd.f32 %v2651, 1.0
    %v3106 = vadd.f32 %v2691, 1.0
    %v3107 = vadd.f32 %v2731, 1.0
    %v3108 = vadd.f32 %v2771, 1.0
    %v3109 = vadd.f32 %v2811, 1.0
    %v3110 = vadd.f32 %v2851, 1.0
    %v3111 = vadd.f32 %v2891, 1.0
    %v3112 = vadd.f32 %v2931, 1.0
    %v3113 = vadd.f32 %v2971, 1.0
    %v3114 = vadd.f32 %v3011, 1.0
    %v3115 = vadd.f32 %v3051, 1.0
    %v3116 = vmul.f32 %v364, %v3052
    %v3117 = vmul.f32 %v365, %v3053
    %v3118 = vmul.f32 %v366, %v3054
    %v3119 = vmul.f32 %v367, %v3055
    %v3120 = vmul.f32 %v368, %v3056
    %v3121 = vmul.f32 %v369, %v3057
    %v3122 = vmul.f32 %v370, %v3058
    %v3123 = vmul.f32 %v371, %v3059
    %v3124 = vmul.f32 %v372, %v3060
    %v3125 = vmul.f32 %v373, %v3061
    %v3126 = vmul.f32 %v374, %v3062
    %v3127 = vmul.f32 %v375, %v3063
    %v3128 = vmul.f32 %v376, %v3064
    %v3129 = vmul.f32 %v377, %v3065
    %v3130 = vmul.f32 %v378, %v3066
    %v3131 = vmul.f32 %v379, %v3067
    %v3132 = vmul.f32 %v380, %v3068
    %v3133 = vmul.f32 %v381, %v3069
    %v3134 = vmul.f32 %v382, %v3070
    %v3135 = vmul.f32 %v383, %v3071
    %v3136 = vmul.f32 %v384, %v3072
    %v3137 = vmul.f32 %v385, %v3073
    %v3138 = vmul.f32 %v386, %v3074
    %v3139 = vmul.f32 %v387, %v3075
    %v3140 = vmul.f32 %v388, %v3076
    %v3141 = vmul.f32 %v389, %v3077
    %v3142 = vmul.f32 %v390, %v3078
    %v3143 = vmul.f32 %v391, %v3079
    %v3144 = vmul.f32 %v392, %v3080
    %v3145 = vmul.f32 %v393, %v3081
    %v3146 = vmul.f32 %v394, %v3082
    %v3147 = vmul.f32 %v395, %v3083
    %v3148 = vmul.f32 %v396, %v3084
    %v3149 = vmul.f32 %v397, %v3085
    %v3150 = vmul.f32 %v398, %v3086
    %v3151 = vmul.f32 %v399, %v3087
    %v3152 = vmul.f32 %v400, %v3088
    %v3153 = vmul.f32 %v401, %v3089
    %v3154 = vmul.f32 %v402, %v3090
    %v3155 = vmul.f32 %v403, %v3091
    %v3156 = vmul.f32 %v404, %v3092
    %v3157 = vmul.f32 %v405, %v3093
    %v3158 = vmul.f32 %v406, %v3094
    %v3159 = vmul.f32 %v407, %v3095
    %v3160 = vmul.f32 %v408, %v3096
    %v3161 = vmul.f32 %v409, %v3097
    %v3162 = vmul.f32 %v410, %v3098
    %v3163 = vmul.f32 %v411, %v3099
    %v3164 = vmul.f32 %v412, %v3100
    %v3165 = vmul.f32 %v413, %v3101
    %v3166 = vmul.f32 %v414, %v3102
    %v3167 = vmul.f32 %v415, %v3103
    %v3168 = vmul.f32 %v416, %v3104
    %v3169 = vmul.f32 %v417, %v3105
    %v3170 = vmul.f32 %v418, %v3106
    %v3171 = vmul.f32 %v419, %v3107
    %v3172 = vmul.f32 %v420, %v3108
    %v3173 = vmul.f32 %v421, %v3109
    %v3174 = vmul.f32 %v422, %v3110
    %v3175 = vmul.f32 %v423, %v3111
    %v3176 = vmul.f32 %v424, %v3112
    %v3177 = vmul.f32 %v425, %v3113
    %v3178 = vmul.f32 %v426, %v3114
    %v3179 = vmul.f32 %v427, %v3115
    %v3180 = vld [vmem:[#allocation7] sm:$0xff]
    %v3181 = vld [vmem:[#allocation7 + $0x8] sm:$0xff]
    %v3182 = vld [vmem:[#allocation7 + $0x10] sm:$0xff]
    %v3183 = vld [vmem:[#allocation7 + $0x18] sm:$0xff]
    %v3184 = vld [vmem:[#allocation7 + $0x20] sm:$0xff]
    %v3185 = vld [vmem:[#allocation7 + $0x28] sm:$0xff]
    %v3186 = vld [vmem:[#allocation7 + $0x30] sm:$0xff]
    %v3187 = vld [vmem:[#allocation7 + $0x38] sm:$0xff]
    %v3188 = vld [vmem:[#allocation7 + $0x40] sm:$0xff]
    %v3189 = vld [vmem:[#allocation7 + $0x48] sm:$0xff]
    %v3190 = vld [vmem:[#allocation7 + $0x50] sm:$0xff]
    %v3191 = vld [vmem:[#allocation7 + $0x58] sm:$0xff]
    %v3192 = vld [vmem:[#allocation7 + $0x60] sm:$0xff]
    %v3193 = vld [vmem:[#allocation7 + $0x68] sm:$0xff]
    %v3194 = vld [vmem:[#allocation7 + $0x70] sm:$0xff]
    %v3195 = vld [vmem:[#allocation7 + $0x78] sm:$0xff]
    %v3196 = vld [vmem:[#allocation7 + $0x80] sm:$0xff]
    %v3197 = vld [vmem:[#allocation7 + $0x88] sm:$0xff]
    %v3198 = vld [vmem:[#allocation7 + $0x90] sm:$0xff]
    %v3199 = vld [vmem:[#allocation7 + $0x98] sm:$0xff]
    %v3200 = vld [vmem:[#allocation7 + $0xa0] sm:$0xff]
    %v3201 = vld [vmem:[#allocation7 + $0xa8] sm:$0xff]
    %v3202 = vld [vmem:[#allocation7 + $0xb0] sm:$0xff]
    %v3203 = vld [vmem:[#allocation7 + $0xb8] sm:$0xff]
    %v3204 = vld [vmem:[#allocation7 + $0xc0] sm:$0xff]
    %v3205 = vld [vmem:[#allocation7 + $0xc8] sm:$0xff]
    %v3206 = vld [vmem:[#allocation7 + $0xd0] sm:$0xff]
    %v3207 = vld [vmem:[#allocation7 + $0xd8] sm:$0xff]
    %v3208 = vld [vmem:[#allocation7 + $0xe0] sm:$0xff]
    %v3209 = vld [vmem:[#allocation7 + $0xe8] sm:$0xff]
    %v3210 = vld [vmem:[#allocation7 + $0xf0] sm:$0xff]
    %v3211 = vld [vmem:[#allocation7 + $0xf8] sm:$0xff]
    %v3212 = vld [vmem:[%s4] sm:$0x1]
    %v3214 = vperm.slane %v3212, 0
    %3216 = vmatpush.msra.mxu0 %v3195
    %3217 = vmatpush.msra.mxu0 %v3194
    %3218 = vmatpush.msra.mxu0 %v3193
    %3219 = vmatpush.msra.mxu0 %v3192
    %3220 = vmatpush.msra.mxu0 %v3191
    %3221 = vmatpush.msra.mxu0 %v3190
    %3222 = vmatpush.msra.mxu0 %v3189
    %3223 = vmatpush.msra.mxu0 %v3188
    %3224 = vmatpush.msra.mxu0 %v3187
    %3225 = vmatpush.msra.mxu0 %v3186
    %3226 = vmatpush.msra.mxu0 %v3185
    %3227 = vmatpush.msra.mxu0 %v3184
    %3228 = vmatpush.msra.mxu0 %v3183
    %3229 = vmatpush.msra.mxu0 %v3182
    %3230 = vmatpush.msra.mxu0 %v3181
    %3231 = vmatpush.msra.mxu0 %v3180
    %3232 = vmatmul.f32.gmra.mxu0 %v3116
    %v3233 = vpop.f32.mrf.mxu0
    %v3234 = vadd.f32 %v3214, %v3233
    %3235 = vmatmul.f32.gmra.mxu0 %v3118
    %v3236 = vpop.f32.mrf.mxu0
    %v3237 = vadd.f32 %v3214, %v3236
    %3238 = vmatmul.f32.gmra.mxu0 %v3120
    %v3239 = vpop.f32.mrf.mxu0
    %v3240 = vadd.f32 %v3214, %v3239
    %3241 = vmatmul.f32.gmra.mxu0 %v3122
    %v3242 = vpop.f32.mrf.mxu0
    %v3243 = vadd.f32 %v3214, %v3242
    %3244 = vmatmul.f32.gmra.mxu0 %v3124
    %v3245 = vpop.f32.mrf.mxu0
    %v3246 = vadd.f32 %v3214, %v3245
    %3247 = vmatmul.f32.gmra.mxu0 %v3126
    %v3248 = vpop.f32.mrf.mxu0
    %v3249 = vadd.f32 %v3214, %v3248
    %3250 = vmatmul.f32.gmra.mxu0 %v3128
    %v3251 = vpop.f32.mrf.mxu0
    %v3252 = vadd.f32 %v3214, %v3251
    %3253 = vmatmul.f32.gmra.mxu0 %v3130
    %v3254 = vpop.f32.mrf.mxu0
    %v3255 = vadd.f32 %v3214, %v3254
    %3256 = vmatmul.f32.gmra.mxu0 %v3132
    %v3257 = vpop.f32.mrf.mxu0
    %v3258 = vadd.f32 %v3214, %v3257
    %3259 = vmatmul.f32.gmra.mxu0 %v3134
    %v3260 = vpop.f32.mrf.mxu0
    %v3261 = vadd.f32 %v3214, %v3260
    %3262 = vmatmul.f32.gmra.mxu0 %v3136
    %v3263 = vpop.f32.mrf.mxu0
    %v3264 = vadd.f32 %v3214, %v3263
    %3265 = vmatmul.f32.gmra.mxu0 %v3138
    %v3266 = vpop.f32.mrf.mxu0
    %v3267 = vadd.f32 %v3214, %v3266
    %3268 = vmatmul.f32.gmra.mxu0 %v3140
    %v3269 = vpop.f32.mrf.mxu0
    %v3270 = vadd.f32 %v3214, %v3269
    %3271 = vmatmul.f32.gmra.mxu0 %v3142
    %v3272 = vpop.f32.mrf.mxu0
    %v3273 = vadd.f32 %v3214, %v3272
    %3274 = vmatmul.f32.gmra.mxu0 %v3144
    %v3275 = vpop.f32.mrf.mxu0
    %v3276 = vadd.f32 %v3214, %v3275
    %3277 = vmatmul.f32.gmra.mxu0 %v3146
    %v3278 = vpop.f32.mrf.mxu0
    %v3279 = vadd.f32 %v3214, %v3278
    %3280 = vmatmul.f32.gmra.mxu0 %v3148
    %v3281 = vpop.f32.mrf.mxu0
    %v3282 = vadd.f32 %v3214, %v3281
    %3283 = vmatmul.f32.gmra.mxu0 %v3150
    %v3284 = vpop.f32.mrf.mxu0
    %v3285 = vadd.f32 %v3214, %v3284
    %3286 = vmatmul.f32.gmra.mxu0 %v3152
    %v3287 = vpop.f32.mrf.mxu0
    %v3288 = vadd.f32 %v3214, %v3287
    %3289 = vmatmul.f32.gmra.mxu0 %v3154
    %v3290 = vpop.f32.mrf.mxu0
    %v3291 = vadd.f32 %v3214, %v3290
    %3292 = vmatmul.f32.gmra.mxu0 %v3156
    %v3293 = vpop.f32.mrf.mxu0
    %v3294 = vadd.f32 %v3214, %v3293
    %3295 = vmatmul.f32.gmra.mxu0 %v3158
    %v3296 = vpop.f32.mrf.mxu0
    %v3297 = vadd.f32 %v3214, %v3296
    %3298 = vmatmul.f32.gmra.mxu0 %v3160
    %v3299 = vpop.f32.mrf.mxu0
    %v3300 = vadd.f32 %v3214, %v3299
    %3301 = vmatmul.f32.gmra.mxu0 %v3162
    %v3302 = vpop.f32.mrf.mxu0
    %v3303 = vadd.f32 %v3214, %v3302
    %3304 = vmatmul.f32.gmra.mxu0 %v3164
    %v3305 = vpop.f32.mrf.mxu0
    %v3306 = vadd.f32 %v3214, %v3305
    %3307 = vmatmul.f32.gmra.mxu0 %v3166
    %v3308 = vpop.f32.mrf.mxu0
    %v3309 = vadd.f32 %v3214, %v3308
    %3310 = vmatmul.f32.gmra.mxu0 %v3168
    %v3311 = vpop.f32.mrf.mxu0
    %v3312 = vadd.f32 %v3214, %v3311
    %3313 = vmatmul.f32.gmra.mxu0 %v3170
    %v3314 = vpop.f32.mrf.mxu0
    %v3315 = vadd.f32 %v3214, %v3314
    %3316 = vmatmul.f32.gmra.mxu0 %v3172
    %v3317 = vpop.f32.mrf.mxu0
    %v3318 = vadd.f32 %v3214, %v3317
    %3319 = vmatmul.f32.gmra.mxu0 %v3174
    %v3320 = vpop.f32.mrf.mxu0
    %v3321 = vadd.f32 %v3214, %v3320
    %3322 = vmatmul.f32.gmra.mxu0 %v3176
    %v3323 = vpop.f32.mrf.mxu0
    %v3324 = vadd.f32 %v3214, %v3323
    %3325 = vmatmul.f32.gmra.mxu0 %v3178
    %v3326 = vpop.f32.mrf.mxu0
    %v3327 = vadd.f32 %v3214, %v3326
    %3328 = vdwg.mxu0
    %3329 = vmatpush.msra.mxu0 %v3211
    %3330 = vmatpush.msra.mxu0 %v3210
    %3331 = vmatpush.msra.mxu0 %v3209
    %3332 = vmatpush.msra.mxu0 %v3208
    %3333 = vmatpush.msra.mxu0 %v3207
    %3334 = vmatpush.msra.mxu0 %v3206
    %3335 = vmatpush.msra.mxu0 %v3205
    %3336 = vmatpush.msra.mxu0 %v3204
    %3337 = vmatpush.msra.mxu0 %v3203
    %3338 = vmatpush.msra.mxu0 %v3202
    %3339 = vmatpush.msra.mxu0 %v3201
    %3340 = vmatpush.msra.mxu0 %v3200
    %3341 = vmatpush.msra.mxu0 %v3199
    %3342 = vmatpush.msra.mxu0 %v3198
    %3343 = vmatpush.msra.mxu0 %v3197
    %3344 = vmatpush.msra.mxu0 %v3196
    %3345 = vmatmul.f32.gmra.mxu0 %v3117
    %v3346 = vpop.f32.mrf.mxu0
    %v3347 = vadd.f32 %v3234, %v3346
    %3348 = vmatmul.f32.gmra.mxu0 %v3119
    %v3349 = vpop.f32.mrf.mxu0
    %v3350 = vadd.f32 %v3237, %v3349
    %3351 = vmatmul.f32.gmra.mxu0 %v3121
    %v3352 = vpop.f32.mrf.mxu0
    %v3353 = vadd.f32 %v3240, %v3352
    %3354 = vmatmul.f32.gmra.mxu0 %v3123
    %v3355 = vpop.f32.mrf.mxu0
    %v3356 = vadd.f32 %v3243, %v3355
    %3357 = vmatmul.f32.gmra.mxu0 %v3125
    %v3358 = vpop.f32.mrf.mxu0
    %v3359 = vadd.f32 %v3246, %v3358
    %3360 = vmatmul.f32.gmra.mxu0 %v3127
    %v3361 = vpop.f32.mrf.mxu0
    %v3362 = vadd.f32 %v3249, %v3361
    %3363 = vmatmul.f32.gmra.mxu0 %v3129
    %v3364 = vpop.f32.mrf.mxu0
    %v3365 = vadd.f32 %v3252, %v3364
    %3366 = vmatmul.f32.gmra.mxu0 %v3131
    %v3367 = vpop.f32.mrf.mxu0
    %v3368 = vadd.f32 %v3255, %v3367
    %3369 = vmatmul.f32.gmra.mxu0 %v3133
    %v3370 = vpop.f32.mrf.mxu0
    %v3371 = vadd.f32 %v3258, %v3370
    %3372 = vmatmul.f32.gmra.mxu0 %v3135
    %v3373 = vpop.f32.mrf.mxu0
    %v3374 = vadd.f32 %v3261, %v3373
    %3375 = vmatmul.f32.gmra.mxu0 %v3137
    %v3376 = vpop.f32.mrf.mxu0
    %v3377 = vadd.f32 %v3264, %v3376
    %3378 = vmatmul.f32.gmra.mxu0 %v3139
    %v3379 = vpop.f32.mrf.mxu0
    %v3380 = vadd.f32 %v3267, %v3379
    %3381 = vmatmul.f32.gmra.mxu0 %v3141
    %v3382 = vpop.f32.mrf.mxu0
    %v3383 = vadd.f32 %v3270, %v3382
    %3384 = vmatmul.f32.gmra.mxu0 %v3143
    %v3385 = vpop.f32.mrf.mxu0
    %v3386 = vadd.f32 %v3273, %v3385
    %3387 = vmatmul.f32.gmra.mxu0 %v3145
    %v3388 = vpop.f32.mrf.mxu0
    %v3389 = vadd.f32 %v3276, %v3388
    %3390 = vmatmul.f32.gmra.mxu0 %v3147
    %v3391 = vpop.f32.mrf.mxu0
    %v3392 = vadd.f32 %v3279, %v3391
    %3393 = vmatmul.f32.gmra.mxu0 %v3149
    %v3394 = vpop.f32.mrf.mxu0
    %v3395 = vadd.f32 %v3282, %v3394
    %3396 = vmatmul.f32.gmra.mxu0 %v3151
    %v3397 = vpop.f32.mrf.mxu0
    %v3398 = vadd.f32 %v3285, %v3397
    %3399 = vmatmul.f32.gmra.mxu0 %v3153
    %v3400 = vpop.f32.mrf.mxu0
    %v3401 = vadd.f32 %v3288, %v3400
    %3402 = vmatmul.f32.gmra.mxu0 %v3155
    %v3403 = vpop.f32.mrf.mxu0
    %v3404 = vadd.f32 %v3291, %v3403
    %3405 = vmatmul.f32.gmra.mxu0 %v3157
    %v3406 = vpop.f32.mrf.mxu0
    %v3407 = vadd.f32 %v3294, %v3406
    %3408 = vmatmul.f32.gmra.mxu0 %v3159
    %v3409 = vpop.f32.mrf.mxu0
    %v3410 = vadd.f32 %v3297, %v3409
    %3411 = vmatmul.f32.gmra.mxu0 %v3161
    %v3412 = vpop.f32.mrf.mxu0
    %v3413 = vadd.f32 %v3300, %v3412
    %3414 = vmatmul.f32.gmra.mxu0 %v3163
    %v3415 = vpop.f32.mrf.mxu0
    %v3416 = vadd.f32 %v3303, %v3415
    %3417 = vmatmul.f32.gmra.mxu0 %v3165
    %v3418 = vpop.f32.mrf.mxu0
    %v3419 = vadd.f32 %v3306, %v3418
    %3420 = vmatmul.f32.gmra.mxu0 %v3167
    %v3421 = vpop.f32.mrf.mxu0
    %v3422 = vadd.f32 %v3309, %v3421
    %3423 = vmatmul.f32.gmra.mxu0 %v3169
    %v3424 = vpop.f32.mrf.mxu0
    %v3425 = vadd.f32 %v3312, %v3424
    %3426 = vmatmul.f32.gmra.mxu0 %v3171
    %v3427 = vpop.f32.mrf.mxu0
    %v3428 = vadd.f32 %v3315, %v3427
    %3429 = vmatmul.f32.gmra.mxu0 %v3173
    %v3430 = vpop.f32.mrf.mxu0
    %v3431 = vadd.f32 %v3318, %v3430
    %3432 = vmatmul.f32.gmra.mxu0 %v3175
    %v3433 = vpop.f32.mrf.mxu0
    %v3434 = vadd.f32 %v3321, %v3433
    %3435 = vmatmul.f32.gmra.mxu0 %v3177
    %v3436 = vpop.f32.mrf.mxu0
    %v3437 = vadd.f32 %v3324, %v3436
    %3438 = vmatmul.f32.gmra.mxu0 %v3179
    %v3439 = vpop.f32.mrf.mxu0
    %v3440 = vadd.f32 %v3327, %v3439
    %3441 = vdwg.mxu0
    %3442 = vst [vmem:[#allocation8] sm:$0xff] %v3347
    %3443 = vst [vmem:[#allocation8 + $0x8] sm:$0xff] %v3350
    %3444 = vst [vmem:[#allocation8 + $0x10] sm:$0xff] %v3353
    %3445 = vst [vmem:[#allocation8 + $0x18] sm:$0xff] %v3356
    %3446 = vst [vmem:[#allocation8 + $0x20] sm:$0xff] %v3359
    %3447 = vst [vmem:[#allocation8 + $0x28] sm:$0xff] %v3362
    %3448 = vst [vmem:[#allocation8 + $0x30] sm:$0xff] %v3365
    %3449 = vst [vmem:[#allocation8 + $0x38] sm:$0xff] %v3368
    %3450 = vst [vmem:[#allocation8 + $0x40] sm:$0xff] %v3371
    %3451 = vst [vmem:[#allocation8 + $0x48] sm:$0xff] %v3374
    %3452 = vst [vmem:[#allocation8 + $0x50] sm:$0xff] %v3377
    %3453 = vst [vmem:[#allocation8 + $0x58] sm:$0xff] %v3380
    %3454 = vst [vmem:[#allocation8 + $0x60] sm:$0xff] %v3383
    %3455 = vst [vmem:[#allocation8 + $0x68] sm:$0xff] %v3386
    %3456 = vst [vmem:[#allocation8 + $0x70] sm:$0xff] %v3389
    %3457 = vst [vmem:[#allocation8 + $0x78] sm:$0xff] %v3392
    %3458 = vst [vmem:[#allocation8 + $0x80] sm:$0xff] %v3395
    %3459 = vst [vmem:[#allocation8 + $0x88] sm:$0xff] %v3398
    %3460 = vst [vmem:[#allocation8 + $0x90] sm:$0xff] %v3401
    %3461 = vst [vmem:[#allocation8 + $0x98] sm:$0xff] %v3404
    %3462 = vst [vmem:[#allocation8 + $0xa0] sm:$0xff] %v3407
    %3463 = vst [vmem:[#allocation8 + $0xa8] sm:$0xff] %v3410
    %3464 = vst [vmem:[#allocation8 + $0xb0] sm:$0xff] %v3413
    %3465 = vst [vmem:[#allocation8 + $0xb8] sm:$0xff] %v3416
    %3466 = vst [vmem:[#allocation8 + $0xc0] sm:$0xff] %v3419
    %3467 = vst [vmem:[#allocation8 + $0xc8] sm:$0xff] %v3422
    %3468 = vst [vmem:[#allocation8 + $0xd0] sm:$0xff] %v3425
    %3469 = vst [vmem:[#allocation8 + $0xd8] sm:$0xff] %v3428
    %3470 = vst [vmem:[#allocation8 + $0xe0] sm:$0xff] %v3431
    %3471 = vst [vmem:[#allocation8 + $0xe8] sm:$0xff] %v3434
    %3472 = vst [vmem:[#allocation8 + $0xf0] sm:$0xff] %v3437
    %3473 = vst [vmem:[#allocation8 + $0xf8] sm:$0xff] %v3440
    // Predicated region
    $region34: #{feed_forward.1} parent=1 // pred_check
      _
    $region35: #{feed_forward.1} parent=1 // pred_check_branch
      %3475 = sbr.rel (0) target = $region37
    $region36: #{feed_forward.1} parent=1 // pred_region
      %3477 = vsyncadd [#allocation4], 0
      %s3478 = sshll.u32 [#allocation8], 4
      %s3479 = int_to_ptr.vmem [resolvable:$true] %s3478
      %s3480 = sshll.u32 %s5, 4
      %s3481 = int_to_ptr.hbm [resolvable:$true] %s3480
      %3486 = dma.vmem_to_hbm [thread:$0]  %s3479, 4096, %s3481, [#allocation4], 128, 128, 8
    $region37: #{feed_forward.1} parent=1 // pred_fallthru
      _
    // Predicated region
    $region38: #{feed_forward.1} parent=1 // pred_check
      _
    $region39: #{feed_forward.1} parent=1 // pred_check_branch
      %3488 = sbr.rel (0) target = $region41
    $region40: #{feed_forward.1} parent=1 // pred_region
      %3490 = dma.done [#allocation4], 4096
    $region41: #{feed_forward.1} parent=1 // pred_fallthru
      _
    %3491 = vsyncpa [#allocation3], 1
    %3492 = vsyncpa [#allocation6], 1
    %3493 = vsyncpa [#allocation4], 1

</llo_original>
